<compile_context>
chip_gen: v7x
topology: tpu7x:2x2x1
jax: 0.10.0
libtpu: 0.0.40
codegen_flags: <defaults>
</compile_context>

<pallas_src>
from functools import partial

import numpy as np
import jax
import jax.numpy as jnp
from jax.experimental import pallas as pl
from jax.experimental.pallas import tpu as pltpu

NO_OF_CLASSES = 10   # synthetic stand-in for len(os.listdir(datapath))
K = 3                # conv kernel size
CIN = 3              # input channels
C1 = 16              # conv1 output channels
C2 = 32              # conv2 output channels
HIDDEN = 128         # fc1 width
LANE = 128


def _round_up(v, m):
    return (v + m - 1) // m * m


# ----------------------------- fused Pallas kernel -----------------------------

def _build_fused_forward(batch, oh1, oh2, c2w, ph_n, n_cls_pad, flat_w):
    def kernel(x_ref, a1_ref, b1_ref, a2_ref, b2_ref,
               wf_ref, bf_ref, wo_ref, bo_ref, o_ref, flat_s):
        for n in range(batch):                    # tiny static batch -> unroll
            # ---- conv1 + relu: ONE banded GEMM (bands pre-stacked along K
            # in the wrapper); result stays a value (vregs), no scratch. ----
            y1 = jnp.maximum(
                jnp.dot(x_ref[n], a1_ref[...],
                        preferred_element_type=jnp.float32) + b1_ref[...],
                0.0)                                          # (oh1, c1w_pad) f32

            # ---- conv2 + relu: merge the K row-bands along lanes.  The
            # pieces are 128-aligned because conv1's output width was padded
            # to a lane multiple, so the concat is cheap layout placement. ----
            y1b = jnp.concatenate([y1[di:di + oh2, :] for di in range(K)],
                                  axis=1)                     # (oh2, K*c1w_pad)
            y2 = jnp.maximum(
                jnp.dot(y1b.astype(jnp.bfloat16), a2_ref[...],
                        preferred_element_type=jnp.float32) + b2_ref[...],
                0.0)                                          # (oh2, c2w) f32

            # ---- 2x2 maxpool, vectorized: vertical max per row pair (VPU,
            # full lanes) + horizontal max via an XLU lane roll by C2.  The
            # result stays lane-spread (window pw at lane group 2*pw); fc1's
            # weight is zero-padded to match, so NO compaction stores. ----
            for p in range(ph_n):
                vmax = jnp.maximum(y2[2 * p:2 * p + 1, :],
                                   y2[2 * p + 1:2 * p + 2, :])        # (1, c2w)
                hmax = jnp.maximum(vmax,
                                   pltpu.roll(vmax, shift=c2w - C2, axis=1))
                base = (n * ph_n + p) * c2w          # static, 128-aligned offset
                flat_s[:, base:base + c2w] = hmax    # full-vreg unmasked stores

        # ---- fc1 + relu: one long-K matvec over the whole flattened batch
        # (torch.flatten includes the batch dim). ----
        h = jnp.maximum(
            jnp.dot(flat_s[...].astype(jnp.bfloat16), wf_ref[...],
                    preferred_element_type=jnp.float32) + bf_ref[...],
            0.0)                                              # (1, HIDDEN)

        # TODO(synk): nn.Dropout(p=0.99) implemented as inference-mode identity;
        # training-mode masking would use pltpu.prng_seed / pltpu.prng_random_bits.

        # ---- classifier head, lane-dense padded output (sliced outside). ----
        o_ref[...] = (jnp.dot(h.astype(jnp.bfloat16), wo_ref[...],
                              preferred_element_type=jnp.float32)
                      + bo_ref[...])                          # (1, n_cls_pad)

    vmem = lambda: pl.BlockSpec(memory_space=pltpu.MemorySpace.VMEM)
    return pl.pallas_call(
        kernel,
        out_shape=jax.ShapeDtypeStruct((1, n_cls_pad), jnp.float32),
        in_specs=[vmem() for _ in range(9)],
        out_specs=vmem(),
        scratch_shapes=[pltpu.VMEM((1, flat_w), jnp.float32)],   # spread flat feats
        compiler_params=pltpu.CompilerParams(vmem_limit_bytes=32 * 1024 * 1024),
    )


# ----------------------------- parameter packing -----------------------------

def _band_conv_weight(w, in_w):
    """Banded GEMM weights for a KxK 'valid' conv on a (rows, in_w*Cin) layout.

    w: (Cout, Cin, K, K) torch-layout conv weight.  Returns (K, in_w*Cin, OW*Cout)
    with  a[di, (ow+dj)*Cin + ci, ow*Cout + co] = w[co, ci, di, dj]
    so that  y[oh, ow*Cout + co] = sum_di  x2d[oh + di, :] @ a[di].
    """
    w = np.asarray(w, np.float32)
    cout, cin, k, _ = w.shape
    ow = in_w - k + 1
    a = np.zeros((k, in_w * cin, ow * cout), np.float32)
    for di in range(k):
        for dj in range(k):
            tap = w[:, :, di, dj].T                     # (cin, cout)
            for owi in range(ow):
                r0 = (owi + dj) * cin
                c0 = owi * cout
                a[di, r0:r0 + cin, c0:c0 + cout] = tap
    return a


def _spread_fc1_weight(fc1_w, batch, ph_n, pw_n, ow2):
    """Fold torch.flatten's NCHW order AND the pool 'compaction' into fc1's weight.

    The kernel leaves pooled features lane-spread: sample n, pooled row p,
    window pw, channel c sits at flat index ((n*ph_n+p)*ow2 + 2*pw)*C2 + c.
    Odd lane groups hold garbage and get zero weight rows.
    """
    fc1_w = np.asarray(fc1_w, np.float32)               # (N*C2*PH*PW, HIDDEN)
    hidden = fc1_w.shape[1]
    src = fc1_w.reshape(batch, C2, ph_n, pw_n, hidden)  # torch flatten order
    out = np.zeros((batch * ph_n * ow2 * C2, hidden), np.float32)
    for n in range(batch):
        for ph in range(ph_n):
            for pw in range(pw_n):
                dst = ((n * ph_n + ph) * ow2 + 2 * pw) * C2
                out[dst:dst + C2, :] = src[n, :, ph, pw, :]
    return out


def init_params(key, no_of_classes, flat_features):
    """PyTorch-layout parameters (deterministic stand-in for nn.Module init)."""
    ks = jax.random.split(key, 8)

    def uni(k, shape, fan_in):
        bound = 1.0 / np.sqrt(float(fan_in))
        return jax.random.uniform(k, shape, jnp.float32, -bound, bound)

    return {
        "conv1_w": uni(ks[0], (C1, CIN, K, K), CIN * K * K),
        "conv1_b": uni(ks[1], (C1,), CIN * K * K),
        "conv2_w": uni(ks[2], (C2, C1, K, K), C1 * K * K),
        "conv2_b": uni(ks[3], (C2,), C1 * K * K),
        # NOTE: the torch module re-creates fc1 inside forward(); here it is
        # initialised deterministically once (fan_in = flat_features), stored
        # transposed as (flat, HIDDEN).
        "fc1_w": uni(ks[4], (flat_features, HIDDEN), flat_features),
        "fc1_b": uni(ks[5], (HIDDEN,), flat_features),
        "op_w": uni(ks[6], (HIDDEN, no_of_classes), HIDDEN),
        "op_b": uni(ks[7], (no_of_classes,), HIDDEN),
    }


def prepare_params(params, batch, height, width):
    """One-time host-side repack of torch-layout weights into kernel layouts."""
    oh1, ow1 = height - K + 1, width - K + 1
    oh2, ow2 = oh1 - K + 1, ow1 - K + 1
    ph_n, pw_n = oh2 // 2, ow2 // 2

    c1w = ow1 * C1
    c1w_pad = _round_up(c1w, LANE)      # lane-align conv1 output so conv2's
    c2w = ow2 * C2                      # in-kernel band concat is 128-aligned

    # conv1: stack K bands along the contraction dim, pad output cols.
    a1 = _band_conv_weight(params["conv1_w"], width)           # (K, W*CIN, c1w)
    a1 = np.pad(a1, ((0, 0), (0, 0), (0, c1w_pad - c1w)))
    a1 = a1.reshape(K * width * CIN, c1w_pad)
    b1 = np.zeros((1, c1w_pad), np.float32)
    b1[0, :c1w] = np.tile(np.asarray(params["conv1_b"], np.float32), ow1)

    # conv2: pad the (padded) input rows, stack K bands along contraction dim.
    a2 = _band_conv_weight(params["conv2_w"], ow1)             # (K, c1w, c2w)
    a2 = np.pad(a2, ((0, 0), (0, c1w_pad - c1w), (0, 0)))
    a2 = a2.reshape(K * c1w_pad, c2w)
    b2 = np.tile(np.asarray(params["conv2_b"], np.float32), ow2).reshape(1, -1)

    # fc1: fold NCHW flatten + lane-spread pool layout into the weight.
    wf = _spread_fc1_weight(params["fc1_w"], batch, ph_n, pw_n, ow2)

    # classifier head: zero-pad to a lane-dense 128-wide output tile.
    op_w = np.asarray(params["op_w"], np.float32)
    n_cls = op_w.shape[1]
    n_cls_pad = _round_up(n_cls, LANE)
    wo = np.zeros((HIDDEN, n_cls_pad), np.float32)
    wo[:, :n_cls] = op_w
    bo = np.zeros((1, n_cls_pad), np.float32)
    bo[0, :n_cls] = np.asarray(params["op_b"], np.float32)

    # bf16 weights for the MXU; accumulation stays f32 (preferred_element_type).
    return {
        "a1": jnp.asarray(a1, jnp.bfloat16),
        "b1": jnp.asarray(b1),
        "a2": jnp.asarray(a2, jnp.bfloat16),
        "b2": jnp.asarray(b2),
        "wf": jnp.asarray(wf, jnp.bfloat16),
        "bf": jnp.asarray(np.asarray(params["fc1_b"], np.float32).reshape(1, -1)),
        "wo": jnp.asarray(wo, jnp.bfloat16),
        "bo": jnp.asarray(bo),
    }


# --------------------------------- forward ---------------------------------

@partial(jax.jit, static_argnames=("n_classes",))
def net_forward(kparams, x_nchw, *, n_classes):
    n, cin, h, w = x_nchw.shape
    oh1 = h - K + 1
    oh2, ow2 = oh1 - K + 1, (w - K + 1) - K + 1
    ph_n = oh2 // 2
    c2w = ow2 * C2
    flat_w = n * ph_n * c2w

    # torch.flatten includes the batch dim -> fc1 was prepared for this batch.
    assert kparams["wf"].shape[0] == flat_w, (
        "fc1 was prepared for a different batch / image size")

    # VMEM-budget guard: this single-invocation design keeps everything in
    # VMEM; for larger images/batches switch to a batch grid with BlockSpecs.
    est = (2 * sum(int(np.prod(v.shape)) * v.dtype.itemsize for v in kparams.values())
           + 4 * flat_w + 2 * n * oh1 * K * w * cin)
    assert est < 24 * 1024 * 1024, (
        "problem too large for the fused whole-VMEM kernel; tile over batch")

    # NCHW -> lane-dense (N, H, W*Cin), then stack the K conv1 row-bands along
    # the contraction dim (one-time layout plumbing on the tiny input) so
    # conv1 is a single bf16 GEMM in-kernel.
    x2d = jnp.transpose(x_nchw.astype(jnp.float32),
                        (0, 2, 3, 1)).reshape(n, h, w * cin)
    xb = jnp.concatenate([x2d[:, di:di + oh1, :] for di in range(K)],
                         axis=-1).astype(jnp.bfloat16)        # (N, OH1, K*W*CIN)

    fwd = _build_fused_forward(n, oh1, oh2, c2w, ph_n,
                               kparams["wo"].shape[1], flat_w)
    out = fwd(xb, kparams["a1"], kparams["b1"], kparams["a2"], kparams["b2"],
              kparams["wf"], kparams["bf"], kparams["wo"], kparams["bo"])
    return out[0, :n_classes]                                 # (n_classes,)


if __name__ == "__main__":
    key = jax.random.PRNGKey(0)
    kx, kp = jax.random.split(key)

    N, H, W = 2, 16, 16
    x = jax.random.normal(kx, (N, CIN, H, W), jnp.float32)

    # flattened size implied by the forward: N * 32 * ((H-4)//2) * ((W-4)//2)
    ph = (H - 2 * (K - 1)) // 2
    pw = (W - 2 * (K - 1)) // 2
    flat_features = N * C2 * ph * pw

    params = init_params(kp, NO_OF_CLASSES, flat_features)
    kparams = prepare_params(params, N, H, W)                 # one-time repack

    out = net_forward(kparams, x, n_classes=NO_OF_CLASSES)
    jax.block_until_ready(out)
    assert out.shape == (NO_OF_CLASSES,)
    print("KERNEL_OK")
</pallas_src>

<mosaic_0001>
module attributes {stable_mosaic.version = 11 : i64} {
  func.func @kernel(%arg0: memref<2x14x144xbf16, #tpu.memory_space<vmem>>, %arg1: memref<144x256xbf16, #tpu.memory_space<vmem>>, %arg2: memref<1x256xf32, #tpu.memory_space<vmem>>, %arg3: memref<768x384xbf16, #tpu.memory_space<vmem>>, %arg4: memref<1x384xf32, #tpu.memory_space<vmem>>, %arg5: memref<4608x128xbf16, #tpu.memory_space<vmem>>, %arg6: memref<1x128xf32, #tpu.memory_space<vmem>>, %arg7: memref<128x128xbf16, #tpu.memory_space<vmem>>, %arg8: memref<1x128xf32, #tpu.memory_space<vmem>>, %arg9: memref<1x128xf32, #tpu.memory_space<vmem>>, %arg10: memref<1x4608xf32, #tpu.memory_space<vmem>>) attributes {dimension_semantics = [], scalar_prefetch = 0 : i64, scratch_operands = 1 : i64, tpu.core_type = #tpu.core_type<tc>} {
    %c0 = arith.constant 0 : index
    %c0_0 = arith.constant 0 : index
    %c0_1 = arith.constant 0 : index
    %0 = vector.load %arg0[%c0, %c0_0, %c0_1] : memref<2x14x144xbf16, #tpu.memory_space<vmem>>, vector<1x14x144xbf16>
    %1 = vector.shape_cast %0 : vector<1x14x144xbf16> to vector<14x144xbf16>
    %c0_2 = arith.constant 0 : index
    %c0_3 = arith.constant 0 : index
    %2 = vector.load %arg1[%c0_2, %c0_3] : memref<144x256xbf16, #tpu.memory_space<vmem>>, vector<144x256xbf16>
    %cst = arith.constant dense<0.000000e+00> : vector<14x256xf32>
    %3 = tpu.matmul %1, %2, %cst {dimension_numbers = #tpu.dot_dimension_numbers<[1], [0], [0], [1], [0, 0, 1, 1], [], []>} : vector<14x144xbf16>, vector<144x256xbf16>, vector<14x256xf32> -> vector<14x256xf32>
    %c0_4 = arith.constant 0 : index
    %c0_5 = arith.constant 0 : index
    %4 = vector.load %arg2[%c0_4, %c0_5] : memref<1x256xf32, #tpu.memory_space<vmem>>, vector<1x256xf32>
    %5 = vector.broadcast %4 : vector<1x256xf32> to vector<14x256xf32>
    %6 = arith.addf %3, %5 : vector<14x256xf32>
    %cst_6 = arith.constant 0.000000e+00 : f32
    %7 = vector.broadcast %cst_6 : f32 to vector<14x256xf32>
    %8 = arith.maximumf %6, %7 : vector<14x256xf32>
    %9 = vector.extract_strided_slice %8 {offsets = [0, 0], sizes = [12, 256], strides = [1, 1]} : vector<14x256xf32> to vector<12x256xf32>
    %10 = vector.extract_strided_slice %8 {offsets = [1, 0], sizes = [12, 256], strides = [1, 1]} : vector<14x256xf32> to vector<12x256xf32>
    %11 = vector.extract_strided_slice %8 {offsets = [2, 0], sizes = [12, 256], strides = [1, 1]} : vector<14x256xf32> to vector<12x256xf32>
    %12 = tpu.concatenate %9, %10, %11 in 1 : vector<12x256xf32>, vector<12x256xf32>, vector<12x256xf32> -> vector<12x768xf32>
    %13 = arith.truncf %12 : vector<12x768xf32> to vector<12x768xbf16>
    %c0_7 = arith.constant 0 : index
    %c0_8 = arith.constant 0 : index
    %14 = vector.load %arg3[%c0_7, %c0_8] : memref<768x384xbf16, #tpu.memory_space<vmem>>, vector<768x384xbf16>
    %cst_9 = arith.constant dense<0.000000e+00> : vector<12x384xf32>
    %15 = tpu.matmul %13, %14, %cst_9 {dimension_numbers = #tpu.dot_dimension_numbers<[1], [0], [0], [1], [0, 0, 1, 1], [], []>} : vector<12x768xbf16>, vector<768x384xbf16>, vector<12x384xf32> -> vector<12x384xf32>
    %c0_10 = arith.constant 0 : index
    %c0_11 = arith.constant 0 : index
    %16 = vector.load %arg4[%c0_10, %c0_11] : memref<1x384xf32, #tpu.memory_space<vmem>>, vector<1x384xf32>
    %17 = vector.broadcast %16 : vector<1x384xf32> to vector<12x384xf32>
    %18 = arith.addf %15, %17 : vector<12x384xf32>
    %cst_12 = arith.constant 0.000000e+00 : f32
    %19 = vector.broadcast %cst_12 : f32 to vector<12x384xf32>
    %20 = arith.maximumf %18, %19 : vector<12x384xf32>
    %21 = vector.extract_strided_slice %20 {offsets = [0, 0], sizes = [1, 384], strides = [1, 1]} : vector<12x384xf32> to vector<1x384xf32>
    %22 = vector.extract_strided_slice %20 {offsets = [1, 0], sizes = [1, 384], strides = [1, 1]} : vector<12x384xf32> to vector<1x384xf32>
    %23 = arith.maximumf %21, %22 : vector<1x384xf32>
    %c352_i32 = arith.constant 352 : i32
    %24 = tpu.dynamic_rotate %23 by %c352_i32 dim 1 : vector<1x384xf32>, i32 -> vector<1x384xf32>
    %25 = arith.maximumf %23, %24 : vector<1x384xf32>
    %c0_13 = arith.constant 0 : index
    %c0_14 = arith.constant 0 : index
    %26 = vector.load %arg10[%c0_13, %c0_14] : memref<1x4608xf32, #tpu.memory_space<vmem>>, vector<1x384xf32>
    tpu.vector_store %arg10[%c0_13, %c0_14], %25 {strides = array<i32>} : memref<1x4608xf32, #tpu.memory_space<vmem>>, vector<1x384xf32>,
    %27 = vector.extract_strided_slice %20 {offsets = [2, 0], sizes = [1, 384], strides = [1, 1]} : vector<12x384xf32> to vector<1x384xf32>
    %28 = vector.extract_strided_slice %20 {offsets = [3, 0], sizes = [1, 384], strides = [1, 1]} : vector<12x384xf32> to vector<1x384xf32>
    %29 = arith.maximumf %27, %28 : vector<1x384xf32>
    %c352_i32_15 = arith.constant 352 : i32
    %30 = tpu.dynamic_rotate %29 by %c352_i32_15 dim 1 : vector<1x384xf32>, i32 -> vector<1x384xf32>
    %31 = arith.maximumf %29, %30 : vector<1x384xf32>
    %c0_16 = arith.constant 0 : index
    %c384 = arith.constant 384 : index
    %32 = vector.load %arg10[%c0_16, %c384] : memref<1x4608xf32, #tpu.memory_space<vmem>>, vector<1x384xf32>
    tpu.vector_store %arg10[%c0_16, %c384], %31 {strides = array<i32>} : memref<1x4608xf32, #tpu.memory_space<vmem>>, vector<1x384xf32>,
    %33 = vector.extract_strided_slice %20 {offsets = [4, 0], sizes = [1, 384], strides = [1, 1]} : vector<12x384xf32> to vector<1x384xf32>
    %34 = vector.extract_strided_slice %20 {offsets = [5, 0], sizes = [1, 384], strides = [1, 1]} : vector<12x384xf32> to vector<1x384xf32>
    %35 = arith.maximumf %33, %34 : vector<1x384xf32>
    %c352_i32_17 = arith.constant 352 : i32
    %36 = tpu.dynamic_rotate %35 by %c352_i32_17 dim 1 : vector<1x384xf32>, i32 -> vector<1x384xf32>
    %37 = arith.maximumf %35, %36 : vector<1x384xf32>
    %c0_18 = arith.constant 0 : index
    %c768 = arith.constant 768 : index
    %38 = vector.load %arg10[%c0_18, %c768] : memref<1x4608xf32, #tpu.memory_space<vmem>>, vector<1x384xf32>
    tpu.vector_store %arg10[%c0_18, %c768], %37 {strides = array<i32>} : memref<1x4608xf32, #tpu.memory_space<vmem>>, vector<1x384xf32>,
    %39 = vector.extract_strided_slice %20 {offsets = [6, 0], sizes = [1, 384], strides = [1, 1]} : vector<12x384xf32> to vector<1x384xf32>
    %40 = vector.extract_strided_slice %20 {offsets = [7, 0], sizes = [1, 384], strides = [1, 1]} : vector<12x384xf32> to vector<1x384xf32>
    %41 = arith.maximumf %39, %40 : vector<1x384xf32>
    %c352_i32_19 = arith.constant 352 : i32
    %42 = tpu.dynamic_rotate %41 by %c352_i32_19 dim 1 : vector<1x384xf32>, i32 -> vector<1x384xf32>
    %43 = arith.maximumf %41, %42 : vector<1x384xf32>
    %c0_20 = arith.constant 0 : index
    %c1152 = arith.constant 1152 : index
    %44 = vector.load %arg10[%c0_20, %c1152] : memref<1x4608xf32, #tpu.memory_space<vmem>>, vector<1x384xf32>
    tpu.vector_store %arg10[%c0_20, %c1152], %43 {strides = array<i32>} : memref<1x4608xf32, #tpu.memory_space<vmem>>, vector<1x384xf32>,
    %45 = vector.extract_strided_slice %20 {offsets = [8, 0], sizes = [1, 384], strides = [1, 1]} : vector<12x384xf32> to vector<1x384xf32>
    %46 = vector.extract_strided_slice %20 {offsets = [9, 0], sizes = [1, 384], strides = [1, 1]} : vector<12x384xf32> to vector<1x384xf32>
    %47 = arith.maximumf %45, %46 : vector<1x384xf32>
    %c352_i32_21 = arith.constant 352 : i32
    %48 = tpu.dynamic_rotate %47 by %c352_i32_21 dim 1 : vector<1x384xf32>, i32 -> vector<1x384xf32>
    %49 = arith.maximumf %47, %48 : vector<1x384xf32>
    %c0_22 = arith.constant 0 : index
    %c1536 = arith.constant 1536 : index
    %50 = vector.load %arg10[%c0_22, %c1536] : memref<1x4608xf32, #tpu.memory_space<vmem>>, vector<1x384xf32>
    tpu.vector_store %arg10[%c0_22, %c1536], %49 {strides = array<i32>} : memref<1x4608xf32, #tpu.memory_space<vmem>>, vector<1x384xf32>,
    %51 = vector.extract_strided_slice %20 {offsets = [10, 0], sizes = [1, 384], strides = [1, 1]} : vector<12x384xf32> to vector<1x384xf32>
    %52 = vector.extract_strided_slice %20 {offsets = [11, 0], sizes = [1, 384], strides = [1, 1]} : vector<12x384xf32> to vector<1x384xf32>
    %53 = arith.maximumf %51, %52 : vector<1x384xf32>
    %c352_i32_23 = arith.constant 352 : i32
    %54 = tpu.dynamic_rotate %53 by %c352_i32_23 dim 1 : vector<1x384xf32>, i32 -> vector<1x384xf32>
    %55 = arith.maximumf %53, %54 : vector<1x384xf32>
    %c0_24 = arith.constant 0 : index
    %c1920 = arith.constant 1920 : index
    %56 = vector.load %arg10[%c0_24, %c1920] : memref<1x4608xf32, #tpu.memory_space<vmem>>, vector<1x384xf32>
    tpu.vector_store %arg10[%c0_24, %c1920], %55 {strides = array<i32>} : memref<1x4608xf32, #tpu.memory_space<vmem>>, vector<1x384xf32>,
    %c1 = arith.constant 1 : index
    %c0_25 = arith.constant 0 : index
    %c0_26 = arith.constant 0 : index
    %57 = vector.load %arg0[%c1, %c0_25, %c0_26] : memref<2x14x144xbf16, #tpu.memory_space<vmem>>, vector<1x14x144xbf16>
    %58 = vector.shape_cast %57 : vector<1x14x144xbf16> to vector<14x144xbf16>
    %c0_27 = arith.constant 0 : index
    %c0_28 = arith.constant 0 : index
    %59 = vector.load %arg1[%c0_27, %c0_28] : memref<144x256xbf16, #tpu.memory_space<vmem>>, vector<144x256xbf16>
    %cst_29 = arith.constant dense<0.000000e+00> : vector<14x256xf32>
    %60 = tpu.matmul %58, %59, %cst_29 {dimension_numbers = #tpu.dot_dimension_numbers<[1], [0], [0], [1], [0, 0, 1, 1], [], []>} : vector<14x144xbf16>, vector<144x256xbf16>, vector<14x256xf32> -> vector<14x256xf32>
    %c0_30 = arith.constant 0 : index
    %c0_31 = arith.constant 0 : index
    %61 = vector.load %arg2[%c0_30, %c0_31] : memref<1x256xf32, #tpu.memory_space<vmem>>, vector<1x256xf32>
    %62 = vector.broadcast %61 : vector<1x256xf32> to vector<14x256xf32>
    %63 = arith.addf %60, %62 : vector<14x256xf32>
    %cst_32 = arith.constant 0.000000e+00 : f32
    %64 = vector.broadcast %cst_32 : f32 to vector<14x256xf32>
    %65 = arith.maximumf %63, %64 : vector<14x256xf32>
    %66 = vector.extract_strided_slice %65 {offsets = [0, 0], sizes = [12, 256], strides = [1, 1]} : vector<14x256xf32> to vector<12x256xf32>
    %67 = vector.extract_strided_slice %65 {offsets = [1, 0], sizes = [12, 256], strides = [1, 1]} : vector<14x256xf32> to vector<12x256xf32>
    %68 = vector.extract_strided_slice %65 {offsets = [2, 0], sizes = [12, 256], strides = [1, 1]} : vector<14x256xf32> to vector<12x256xf32>
    %69 = tpu.concatenate %66, %67, %68 in 1 : vector<12x256xf32>, vector<12x256xf32>, vector<12x256xf32> -> vector<12x768xf32>
    %70 = arith.truncf %69 : vector<12x768xf32> to vector<12x768xbf16>
    %c0_33 = arith.constant 0 : index
    %c0_34 = arith.constant 0 : index
    %71 = vector.load %arg3[%c0_33, %c0_34] : memref<768x384xbf16, #tpu.memory_space<vmem>>, vector<768x384xbf16>
    %cst_35 = arith.constant dense<0.000000e+00> : vector<12x384xf32>
    %72 = tpu.matmul %70, %71, %cst_35 {dimension_numbers = #tpu.dot_dimension_numbers<[1], [0], [0], [1], [0, 0, 1, 1], [], []>} : vector<12x768xbf16>, vector<768x384xbf16>, vector<12x384xf32> -> vector<12x384xf32>
    %c0_36 = arith.constant 0 : index
    %c0_37 = arith.constant 0 : index
    %73 = vector.load %arg4[%c0_36, %c0_37] : memref<1x384xf32, #tpu.memory_space<vmem>>, vector<1x384xf32>
    %74 = vector.broadcast %73 : vector<1x384xf32> to vector<12x384xf32>
    %75 = arith.addf %72, %74 : vector<12x384xf32>
    %cst_38 = arith.constant 0.000000e+00 : f32
    %76 = vector.broadcast %cst_38 : f32 to vector<12x384xf32>
    %77 = arith.maximumf %75, %76 : vector<12x384xf32>
    %78 = vector.extract_strided_slice %77 {offsets = [0, 0], sizes = [1, 384], strides = [1, 1]} : vector<12x384xf32> to vector<1x384xf32>
    %79 = vector.extract_strided_slice %77 {offsets = [1, 0], sizes = [1, 384], strides = [1, 1]} : vector<12x384xf32> to vector<1x384xf32>
    %80 = arith.maximumf %78, %79 : vector<1x384xf32>
    %c352_i32_39 = arith.constant 352 : i32
    %81 = tpu.dynamic_rotate %80 by %c352_i32_39 dim 1 : vector<1x384xf32>, i32 -> vector<1x384xf32>
    %82 = arith.maximumf %80, %81 : vector<1x384xf32>
    %c0_40 = arith.constant 0 : index
    %c2304 = arith.constant 2304 : index
    %83 = vector.load %arg10[%c0_40, %c2304] : memref<1x4608xf32, #tpu.memory_space<vmem>>, vector<1x384xf32>
    tpu.vector_store %arg10[%c0_40, %c2304], %82 {strides = array<i32>} : memref<1x4608xf32, #tpu.memory_space<vmem>>, vector<1x384xf32>,
    %84 = vector.extract_strided_slice %77 {offsets = [2, 0], sizes = [1, 384], strides = [1, 1]} : vector<12x384xf32> to vector<1x384xf32>
    %85 = vector.extract_strided_slice %77 {offsets = [3, 0], sizes = [1, 384], strides = [1, 1]} : vector<12x384xf32> to vector<1x384xf32>
    %86 = arith.maximumf %84, %85 : vector<1x384xf32>
    %c352_i32_41 = arith.constant 352 : i32
    %87 = tpu.dynamic_rotate %86 by %c352_i32_41 dim 1 : vector<1x384xf32>, i32 -> vector<1x384xf32>
    %88 = arith.maximumf %86, %87 : vector<1x384xf32>
    %c0_42 = arith.constant 0 : index
    %c2688 = arith.constant 2688 : index
    %89 = vector.load %arg10[%c0_42, %c2688] : memref<1x4608xf32, #tpu.memory_space<vmem>>, vector<1x384xf32>
    tpu.vector_store %arg10[%c0_42, %c2688], %88 {strides = array<i32>} : memref<1x4608xf32, #tpu.memory_space<vmem>>, vector<1x384xf32>,
    %90 = vector.extract_strided_slice %77 {offsets = [4, 0], sizes = [1, 384], strides = [1, 1]} : vector<12x384xf32> to vector<1x384xf32>
    %91 = vector.extract_strided_slice %77 {offsets = [5, 0], sizes = [1, 384], strides = [1, 1]} : vector<12x384xf32> to vector<1x384xf32>
    %92 = arith.maximumf %90, %91 : vector<1x384xf32>
    %c352_i32_43 = arith.constant 352 : i32
    %93 = tpu.dynamic_rotate %92 by %c352_i32_43 dim 1 : vector<1x384xf32>, i32 -> vector<1x384xf32>
    %94 = arith.maximumf %92, %93 : vector<1x384xf32>
    %c0_44 = arith.constant 0 : index
    %c3072 = arith.constant 3072 : index
    %95 = vector.load %arg10[%c0_44, %c3072] : memref<1x4608xf32, #tpu.memory_space<vmem>>, vector<1x384xf32>
    tpu.vector_store %arg10[%c0_44, %c3072], %94 {strides = array<i32>} : memref<1x4608xf32, #tpu.memory_space<vmem>>, vector<1x384xf32>,
    %96 = vector.extract_strided_slice %77 {offsets = [6, 0], sizes = [1, 384], strides = [1, 1]} : vector<12x384xf32> to vector<1x384xf32>
    %97 = vector.extract_strided_slice %77 {offsets = [7, 0], sizes = [1, 384], strides = [1, 1]} : vector<12x384xf32> to vector<1x384xf32>
    %98 = arith.maximumf %96, %97 : vector<1x384xf32>
    %c352_i32_45 = arith.constant 352 : i32
    %99 = tpu.dynamic_rotate %98 by %c352_i32_45 dim 1 : vector<1x384xf32>, i32 -> vector<1x384xf32>
    %100 = arith.maximumf %98, %99 : vector<1x384xf32>
    %c0_46 = arith.constant 0 : index
    %c3456 = arith.constant 3456 : index
    %101 = vector.load %arg10[%c0_46, %c3456] : memref<1x4608xf32, #tpu.memory_space<vmem>>, vector<1x384xf32>
    tpu.vector_store %arg10[%c0_46, %c3456], %100 {strides = array<i32>} : memref<1x4608xf32, #tpu.memory_space<vmem>>, vector<1x384xf32>,
    %102 = vector.extract_strided_slice %77 {offsets = [8, 0], sizes = [1, 384], strides = [1, 1]} : vector<12x384xf32> to vector<1x384xf32>
    %103 = vector.extract_strided_slice %77 {offsets = [9, 0], sizes = [1, 384], strides = [1, 1]} : vector<12x384xf32> to vector<1x384xf32>
    %104 = arith.maximumf %102, %103 : vector<1x384xf32>
    %c352_i32_47 = arith.constant 352 : i32
    %105 = tpu.dynamic_rotate %104 by %c352_i32_47 dim 1 : vector<1x384xf32>, i32 -> vector<1x384xf32>
    %106 = arith.maximumf %104, %105 : vector<1x384xf32>
    %c0_48 = arith.constant 0 : index
    %c3840 = arith.constant 3840 : index
    %107 = vector.load %arg10[%c0_48, %c3840] : memref<1x4608xf32, #tpu.memory_space<vmem>>, vector<1x384xf32>
    tpu.vector_store %arg10[%c0_48, %c3840], %106 {strides = array<i32>} : memref<1x4608xf32, #tpu.memory_space<vmem>>, vector<1x384xf32>,
    %108 = vector.extract_strided_slice %77 {offsets = [10, 0], sizes = [1, 384], strides = [1, 1]} : vector<12x384xf32> to vector<1x384xf32>
    %109 = vector.extract_strided_slice %77 {offsets = [11, 0], sizes = [1, 384], strides = [1, 1]} : vector<12x384xf32> to vector<1x384xf32>
    %110 = arith.maximumf %108, %109 : vector<1x384xf32>
    %c352_i32_49 = arith.constant 352 : i32
    %111 = tpu.dynamic_rotate %110 by %c352_i32_49 dim 1 : vector<1x384xf32>, i32 -> vector<1x384xf32>
    %112 = arith.maximumf %110, %111 : vector<1x384xf32>
    %c0_50 = arith.constant 0 : index
    %c4224 = arith.constant 4224 : index
    %113 = vector.load %arg10[%c0_50, %c4224] : memref<1x4608xf32, #tpu.memory_space<vmem>>, vector<1x384xf32>
    tpu.vector_store %arg10[%c0_50, %c4224], %112 {strides = array<i32>} : memref<1x4608xf32, #tpu.memory_space<vmem>>, vector<1x384xf32>,
    %c0_51 = arith.constant 0 : index
    %c0_52 = arith.constant 0 : index
    %114 = vector.load %arg10[%c0_51, %c0_52] : memref<1x4608xf32, #tpu.memory_space<vmem>>, vector<1x4608xf32>
    %115 = arith.truncf %114 : vector<1x4608xf32> to vector<1x4608xbf16>
    %c0_53 = arith.constant 0 : index
    %c0_54 = arith.constant 0 : index
    %116 = vector.load %arg5[%c0_53, %c0_54] : memref<4608x128xbf16, #tpu.memory_space<vmem>>, vector<4608x128xbf16>
    %cst_55 = arith.constant dense<0.000000e+00> : vector<1x128xf32>
    %117 = tpu.matmul %115, %116, %cst_55 {dimension_numbers = #tpu.dot_dimension_numbers<[1], [0], [0], [1], [0, 0, 1, 1], [], []>} : vector<1x4608xbf16>, vector<4608x128xbf16>, vector<1x128xf32> -> vector<1x128xf32>
    %c0_56 = arith.constant 0 : index
    %c0_57 = arith.constant 0 : index
    %118 = vector.load %arg6[%c0_56, %c0_57] : memref<1x128xf32, #tpu.memory_space<vmem>>, vector<1x128xf32>
    %119 = arith.addf %117, %118 : vector<1x128xf32>
    %cst_58 = arith.constant 0.000000e+00 : f32
    %120 = vector.broadcast %cst_58 : f32 to vector<1x128xf32>
    %121 = arith.maximumf %119, %120 : vector<1x128xf32>
    %122 = arith.truncf %121 : vector<1x128xf32> to vector<1x128xbf16>
    %c0_59 = arith.constant 0 : index
    %c0_60 = arith.constant 0 : index
    %123 = vector.load %arg7[%c0_59, %c0_60] : memref<128x128xbf16, #tpu.memory_space<vmem>>, vector<128x128xbf16>
    %cst_61 = arith.constant dense<0.000000e+00> : vector<1x128xf32>
    %124 = tpu.matmul %122, %123, %cst_61 {dimension_numbers = #tpu.dot_dimension_numbers<[1], [0], [0], [1], [0, 0, 1, 1], [], []>} : vector<1x128xbf16>, vector<128x128xbf16>, vector<1x128xf32> -> vector<1x128xf32>
    %c0_62 = arith.constant 0 : index
    %c0_63 = arith.constant 0 : index
    %125 = vector.load %arg8[%c0_62, %c0_63] : memref<1x128xf32, #tpu.memory_space<vmem>>, vector<1x128xf32>
    %126 = arith.addf %124, %125 : vector<1x128xf32>
    %c0_64 = arith.constant 0 : index
    %c0_65 = arith.constant 0 : index
    %127 = vector.load %arg9[%c0_64, %c0_65] : memref<1x128xf32, #tpu.memory_space<vmem>>, vector<1x128xf32>
    tpu.vector_store %arg9[%c0_64, %c0_65], %126 {strides = array<i32>} : memref<1x128xf32, #tpu.memory_space<vmem>>, vector<1x128xf32>,
    return
  }
}

</mosaic_0001>

<llo_original>
// kernel: net_forward.1
$region0: #{net_forward.1}
  #allocation0 [shape = 'u32[]', space=smem, size = 0x4, offset = 0x4, fixed_abs, tag = 'smem constant byte address 0x4 - core index']
  #allocation1 [shape = 'u32[144,128]{1,0:T(1,128)}', space=vmem, size = 0x12000, scoped, tag = 'internal scratch']
  #allocation2 [shape = 'f32[1,4608]{1,0:T(1,128)}', space=vmem, size = 0x4800, scoped, tag = 'scratch operand']
  %s0 = inlined_call_operand.vmem [shape: bf16[2,14,144], index: 0, kind: input, shape index: {}]
  %s1 = inlined_call_operand.hbm [shape: bf16[144,256], index: 1, kind: input, shape index: {}]
  %s2 = inlined_call_operand.hbm [shape: f32[1,256], index: 2, kind: input, shape index: {}]
  %s3 = inlined_call_operand.hbm [shape: bf16[768,384], index: 3, kind: input, shape index: {}]
  %s4 = inlined_call_operand.hbm [shape: f32[1,384], index: 4, kind: input, shape index: {}]
  %s5 = inlined_call_operand.hbm [shape: bf16[4608,128], index: 5, kind: input, shape index: {}]
  %s6 = inlined_call_operand.hbm [shape: f32[1,128], index: 6, kind: input, shape index: {}]
  %s7 = inlined_call_operand.hbm [shape: bf16[128,128], index: 7, kind: input, shape index: {}]
  %s8 = inlined_call_operand.hbm [shape: f32[1,128], index: 8, kind: input, shape index: {}]
  %s9 = inlined_call_operand.vmem [shape: f32[1,128], index: 9, kind: output, shape index: {}]
  %s10 = sld [smem:[#allocation0]]
  $region78: #{net_forward.1} parent=0
    _
  %s12 = ssub.s32 1, %s10
  %s13 = scalar_select 0, %s12, %s10
  $region1: #{net_forward.1} parent=0
    #allocation3 [shape = 'u8[73728]{0}', space=vmem, size = 0x12000, scoped, tag = 'input window, operand 1, single buffered']
    #allocation4 [shape = 's32[1]{0}', space=sflag, size = 0x4, scoped, tag = 'scoped memory for net_forward.1']
    #allocation5 [shape = 'u8[1024]{0}', space=vmem, size = 0x400, scoped, tag = 'input window, operand 2, single buffered']
    #allocation6 [shape = 's32[1]{0}', space=sflag, size = 0x4, scoped, tag = 'scoped memory for net_forward.1']
    #allocation7 [shape = 'u8[589824]{0}', space=vmem, size = 0x90000, scoped, tag = 'input window, operand 3, single buffered']
    #allocation8 [shape = 'u8[1536]{0}', space=vmem, size = 0x800, scoped, tag = 'input window, operand 4, single buffered']
    #allocation9 [shape = 's32[1]{0}', space=sflag, size = 0x4, scoped, tag = 'scoped memory for net_forward.1']
    #allocation10 [shape = 'u8[1179648]{0}', space=vmem, size = 0x120000, scoped, tag = 'input window, operand 5, single buffered']
    #allocation11 [shape = 'u8[512]{0}', space=vmem, size = 0x400, scoped, tag = 'input window, operand 6, single buffered']
    #allocation12 [shape = 's32[1]{0}', space=sflag, size = 0x4, scoped, tag = 'scoped memory for net_forward.1']
    #allocation13 [shape = 'u8[32768]{0}', space=vmem, size = 0x8000, scoped, tag = 'input window, operand 7, single buffered']
    #allocation14 [shape = 'u8[512]{0}', space=vmem, size = 0x400, scoped, tag = 'input window, operand 8, single buffered']
    #allocation15 [shape = 's32[1]{0}', space=sflag, size = 0x4, scoped, tag = 'scoped memory for net_forward.1']
    %14 = vsyncpa [#allocation4], 0
    %15 = vsyncpa [#allocation6], 0
    %16 = vsyncpa [#allocation9], 0
    %17 = vsyncpa [#allocation12], 0
    %18 = vsyncpa [#allocation15], 0
    // Predicated region
    $region2: #{net_forward.1} parent=1 // pred_check
      _
    $region3: #{net_forward.1} parent=1 // pred_check_branch
      %20 = sbr.rel (0) target = $region5
    $region4: #{net_forward.1} parent=1 // pred_region
      _
    $region5: #{net_forward.1} parent=1 // pred_fallthru
      _
    // Predicated region
    $region6: #{net_forward.1} parent=1 // pred_check
      _
    $region7: #{net_forward.1} parent=1 // pred_check_branch
      %22 = sbr.rel (0) target = $region9
    $region8: #{net_forward.1} parent=1 // pred_region
      %s24 = ssub.s32 2304, 2304
      %25 = vsyncadd [#allocation4], %s24
      %s26 = sshll.u32 [#allocation3], 4
      %s27 = int_to_ptr.vmem [resolvable:$true] %s26
      %32 = dma.hbm_to_vmem [thread:$0]  %s1, 2304, %s27, [#allocation4], 128, 128, 8
    $region9: #{net_forward.1} parent=1 // pred_fallthru
      _
    // Predicated region
    $region10: #{net_forward.1} parent=1 // pred_check
      _
    $region11: #{net_forward.1} parent=1 // pred_check_branch
      %34 = sbr.rel (0) target = $region13
    $region12: #{net_forward.1} parent=1 // pred_region
      %s36 = ssub.s32 32, 32
      %37 = vsyncadd [#allocation6], %s36
      %s39 = sshll.u32 [#allocation5], 4
      %s40 = int_to_ptr.vmem [resolvable:$true] %s39
      %42 = dma.hbm_to_vmem [thread:$0]  %s2, 32, %s40, [#allocation6]
    $region13: #{net_forward.1} parent=1 // pred_fallthru
      _
    // Predicated region
    $region14: #{net_forward.1} parent=1 // pred_check
      _
    $region15: #{net_forward.1} parent=1 // pred_check_branch
      %44 = sbr.rel (0) target = $region17
    $region16: #{net_forward.1} parent=1 // pred_region
      %s46 = ssub.s32 18432, 18432
      %47 = vsyncadd [#allocation6], %s46
      %s48 = sshll.u32 [#allocation7], 4
      %s49 = int_to_ptr.vmem [resolvable:$true] %s48
      %54 = dma.hbm_to_vmem [thread:$0]  %s3, 18432, %s49, [#allocation6], 192, 192, 12
    $region17: #{net_forward.1} parent=1 // pred_fallthru
      _
    // Predicated region
    $region18: #{net_forward.1} parent=1 // pred_check
      _
    $region19: #{net_forward.1} parent=1 // pred_check_branch
      %56 = sbr.rel (0) target = $region21
    $region20: #{net_forward.1} parent=1 // pred_region
      %s58 = ssub.s32 48, 48
      %59 = vsyncadd [#allocation9], %s58
      %s61 = sshll.u32 [#allocation8], 4
      %s62 = int_to_ptr.vmem [resolvable:$true] %s61
      %64 = dma.hbm_to_vmem [thread:$0]  %s4, 48, %s62, [#allocation9]
    $region21: #{net_forward.1} parent=1 // pred_fallthru
      _
    // Predicated region
    $region22: #{net_forward.1} parent=1 // pred_check
      _
    $region23: #{net_forward.1} parent=1 // pred_check_branch
      %66 = sbr.rel (0) target = $region25
    $region24: #{net_forward.1} parent=1 // pred_region
      %s68 = ssub.s32 36864, 36864
      %69 = vsyncadd [#allocation9], %s68
      %s70 = sshll.u32 [#allocation10], 4
      %s71 = int_to_ptr.vmem [resolvable:$true] %s70
      %76 = dma.hbm_to_vmem [thread:$0]  %s5, 36864, %s71, [#allocation9], 64, 64, 4
    $region25: #{net_forward.1} parent=1 // pred_fallthru
      _
    // Predicated region
    $region26: #{net_forward.1} parent=1 // pred_check
      _
    $region27: #{net_forward.1} parent=1 // pred_check_branch
      %78 = sbr.rel (0) target = $region29
    $region28: #{net_forward.1} parent=1 // pred_region
      %s80 = ssub.s32 16, 16
      %81 = vsyncadd [#allocation12], %s80
      %s83 = sshll.u32 [#allocation11], 4
      %s84 = int_to_ptr.vmem [resolvable:$true] %s83
      %86 = dma.hbm_to_vmem [thread:$0]  %s6, 16, %s84, [#allocation12]
    $region29: #{net_forward.1} parent=1 // pred_fallthru
      _
    // Predicated region
    $region30: #{net_forward.1} parent=1 // pred_check
      _
    $region31: #{net_forward.1} parent=1 // pred_check_branch
      %88 = sbr.rel (0) target = $region33
    $region32: #{net_forward.1} parent=1 // pred_region
      %s90 = ssub.s32 1024, 1024
      %91 = vsyncadd [#allocation12], %s90
      %s92 = sshll.u32 [#allocation13], 4
      %s93 = int_to_ptr.vmem [resolvable:$true] %s92
      %98 = dma.hbm_to_vmem [thread:$0]  %s7, 1024, %s93, [#allocation12], 64, 64, 4
    $region33: #{net_forward.1} parent=1 // pred_fallthru
      _
    // Predicated region
    $region34: #{net_forward.1} parent=1 // pred_check
      _
    $region35: #{net_forward.1} parent=1 // pred_check_branch
      %100 = sbr.rel (0) target = $region37
    $region36: #{net_forward.1} parent=1 // pred_region
      %s102 = ssub.s32 16, 16
      %103 = vsyncadd [#allocation15], %s102
      %s105 = sshll.u32 [#allocation14], 4
      %s106 = int_to_ptr.vmem [resolvable:$true] %s105
      %108 = dma.hbm_to_vmem [thread:$0]  %s8, 16, %s106, [#allocation15]
    $region37: #{net_forward.1} parent=1 // pred_fallthru
      _
    // Predicated region
    $region38: #{net_forward.1} parent=1 // pred_check
      _
    $region39: #{net_forward.1} parent=1 // pred_check_branch
      %110 = sbr.rel (0) target = $region41
    $region40: #{net_forward.1} parent=1 // pred_region
      %111 = dma.done [#allocation4], 2304
    $region41: #{net_forward.1} parent=1 // pred_fallthru
      _
    // Predicated region
    $region42: #{net_forward.1} parent=1 // pred_check
      _
    $region43: #{net_forward.1} parent=1 // pred_check_branch
      %113 = sbr.rel (0) target = $region45
    $region44: #{net_forward.1} parent=1 // pred_region
      %114 = dma.done [#allocation6], 32
    $region45: #{net_forward.1} parent=1 // pred_fallthru
      _
    // Predicated region
    $region46: #{net_forward.1} parent=1 // pred_check
      _
    $region47: #{net_forward.1} parent=1 // pred_check_branch
      %116 = sbr.rel (0) target = $region49
    $region48: #{net_forward.1} parent=1 // pred_region
      %117 = dma.done [#allocation6], 18432
    $region49: #{net_forward.1} parent=1 // pred_fallthru
      _
    // Predicated region
    $region50: #{net_forward.1} parent=1 // pred_check
      _
    $region51: #{net_forward.1} parent=1 // pred_check_branch
      %119 = sbr.rel (0) target = $region53
    $region52: #{net_forward.1} parent=1 // pred_region
      %120 = dma.done [#allocation9], 48
    $region53: #{net_forward.1} parent=1 // pred_fallthru
      _
    // Predicated region
    $region54: #{net_forward.1} parent=1 // pred_check
      _
    $region55: #{net_forward.1} parent=1 // pred_check_branch
      %122 = sbr.rel (0) target = $region57
    $region56: #{net_forward.1} parent=1 // pred_region
      %123 = dma.done [#allocation9], 36864
    $region57: #{net_forward.1} parent=1 // pred_fallthru
      _
    // Predicated region
    $region58: #{net_forward.1} parent=1 // pred_check
      _
    $region59: #{net_forward.1} parent=1 // pred_check_branch
      %125 = sbr.rel (0) target = $region61
    $region60: #{net_forward.1} parent=1 // pred_region
      %126 = dma.done [#allocation12], 16
    $region61: #{net_forward.1} parent=1 // pred_fallthru
      _
    // Predicated region
    $region62: #{net_forward.1} parent=1 // pred_check
      _
    $region63: #{net_forward.1} parent=1 // pred_check_branch
      %128 = sbr.rel (0) target = $region65
    $region64: #{net_forward.1} parent=1 // pred_region
      %129 = dma.done [#allocation12], 1024
    $region65: #{net_forward.1} parent=1 // pred_fallthru
      _
    // Predicated region
    $region66: #{net_forward.1} parent=1 // pred_check
      _
    $region67: #{net_forward.1} parent=1 // pred_check_branch
      %131 = sbr.rel (0) target = $region69
    $region68: #{net_forward.1} parent=1 // pred_region
      %132 = dma.done [#allocation15], 16
    $region69: #{net_forward.1} parent=1 // pred_fallthru
      _
    %v134 = vld [vmem:[%s0] sm:$0xff]
    %v135 = vld [vmem:[%s0 + $0x8] sm:$0x77]
    %v136 = vld [vmem:[#allocation3] sm:$0xff]
    %v137 = vld [vmem:[#allocation3 + $0x8] sm:$0xff]
    %v138 = vld [vmem:[#allocation3 + $0x10] sm:$0xff]
    %v139 = vld [vmem:[#allocation3 + $0x18] sm:$0xff]
    %v140 = vld [vmem:[#allocation3 + $0x20] sm:$0xff]
    %v141 = vld [vmem:[#allocation3 + $0x28] sm:$0xff]
    %v142 = vld [vmem:[#allocation3 + $0x30] sm:$0xff]
    %v143 = vld [vmem:[#allocation3 + $0x38] sm:$0xff]
    %v144 = vld [vmem:[#allocation3 + $0x40] sm:$0xff]
    %v145 = vld [vmem:[#allocation3 + $0x48] sm:$0xff]
    %v146 = vld [vmem:[#allocation3 + $0x50] sm:$0xff]
    %v147 = vld [vmem:[#allocation3 + $0x58] sm:$0xff]
    %v148 = vld [vmem:[#allocation3 + $0x60] sm:$0xff]
    %v149 = vld [vmem:[#allocation3 + $0x68] sm:$0xff]
    %v150 = vld [vmem:[#allocation3 + $0x70] sm:$0xff]
    %v151 = vld [vmem:[#allocation3 + $0x78] sm:$0xff]
    %v152 = vld [vmem:[#allocation3 + $0x80] sm:$0xff]
    %v153 = vld [vmem:[#allocation3 + $0x88] sm:$0xff]
    %v154 = vld [vmem:[#allocation5] sm:$0x3]
    %v156 = vlaneseq
    %v157 = vshrl.u32 %v156, 7
    %v158 = vsub.s32 0, %v157
    %v159 = vrot.slane %v154, %v158
    %v160 = vlaneseq
    %v161 = vshrl.u32 %v160, 7
    %v162 = vsub.s32 1, %v161
    %v163 = vrot.slane %v154, %v162
    %v168 = vunpack.c.l.b16 %v134
    %v169 = vunpack.c.h.b16 %v134
    %v170 = vunpack.c.l.b16 %v135
    %v171 = vunpack.c.h.b16 %v135
    %v172 = vpack.c.b16 %v170, %v168
    %v173 = vpack.c.b16 %v171, %v169
    %v193 = vunpack.c.l.b16 %v136
    %v194 = vunpack.c.h.b16 %v136
    %v195 = vunpack.c.l.b16 %v137
    %v196 = vunpack.c.h.b16 %v137
    %v197 = vunpack.c.l.b16 %v138
    %v198 = vunpack.c.h.b16 %v138
    %v199 = vunpack.c.l.b16 %v139
    %v200 = vunpack.c.h.b16 %v139
    %v201 = vunpack.c.l.b16 %v140
    %v202 = vunpack.c.h.b16 %v140
    %v203 = vunpack.c.l.b16 %v141
    %v204 = vunpack.c.h.b16 %v141
    %v205 = vunpack.c.l.b16 %v142
    %v206 = vunpack.c.h.b16 %v142
    %v207 = vunpack.c.l.b16 %v143
    %v208 = vunpack.c.h.b16 %v143
    %v209 = vunpack.c.l.b16 %v144
    %v210 = vunpack.c.h.b16 %v144
    %v211 = vunpack.c.l.b16 %v145
    %v212 = vunpack.c.h.b16 %v145
    %v213 = vunpack.c.l.b16 %v146
    %v214 = vunpack.c.h.b16 %v146
    %v215 = vunpack.c.l.b16 %v147
    %v216 = vunpack.c.h.b16 %v147
    %v217 = vunpack.c.l.b16 %v148
    %v218 = vunpack.c.h.b16 %v148
    %v219 = vunpack.c.l.b16 %v149
    %v220 = vunpack.c.h.b16 %v149
    %v221 = vunpack.c.l.b16 %v150
    %v222 = vunpack.c.h.b16 %v150
    %v223 = vunpack.c.l.b16 %v151
    %v224 = vunpack.c.h.b16 %v151
    %v225 = vunpack.c.l.b16 %v152
    %v226 = vunpack.c.h.b16 %v152
    %v227 = vunpack.c.l.b16 %v153
    %v228 = vunpack.c.h.b16 %v153
    %v229 = vpack.c.b16 %v195, %v193
    %v230 = vpack.c.b16 %v196, %v194
    %v231 = vpack.c.b16 %v199, %v197
    %v232 = vpack.c.b16 %v200, %v198
    %v233 = vpack.c.b16 %v203, %v201
    %v234 = vpack.c.b16 %v204, %v202
    %v235 = vpack.c.b16 %v207, %v205
    %v236 = vpack.c.b16 %v208, %v206
    %v237 = vpack.c.b16 %v211, %v209
    %v238 = vpack.c.b16 %v212, %v210
    %v239 = vpack.c.b16 %v215, %v213
    %v240 = vpack.c.b16 %v216, %v214
    %v241 = vpack.c.b16 %v219, %v217
    %v242 = vpack.c.b16 %v220, %v218
    %v243 = vpack.c.b16 %v223, %v221
    %v244 = vpack.c.b16 %v224, %v222
    %v245 = vpack.c.b16 %v227, %v225
    %v246 = vpack.c.b16 %v228, %v226
    %vm265 = vcmask 130048
    %v267 = vsel %vm265, %v173, 0
    %269 = vmatprep.subr.bf16.mxu0 %v230
    %270 = vmatpush1.bf16.msra.mxu0 %v229
    %271 = vmatprep.subr.bf16.mxu0 %v232
    %272 = vmatpush1.bf16.msra.mxu0 %v231
    %273 = vmatprep.subr.bf16.mxu0 %v234
    %274 = vmatpush1.bf16.msra.mxu0 %v233
    %275 = vmatprep.subr.bf16.mxu0 %v236
    %276 = vmatpush1.bf16.msra.mxu0 %v235
    %277 = vmatprep.subr.bf16.mxu0 %v238
    %278 = vmatpush1.bf16.msra.mxu0 %v237
    %279 = vmatprep.subr.bf16.mxu0 %v240
    %280 = vmatpush1.bf16.msra.mxu0 %v239
    %281 = vmatprep.subr.bf16.mxu0 %v242
    %282 = vmatpush1.bf16.msra.mxu0 %v241
    %283 = vmatprep.subr.bf16.mxu0 %v244
    %284 = vmatpush1.bf16.msra.mxu0 %v243
    %285 = vmatprep.subr.bf16.mxu0 %v246
    %286 = vmatpush1.bf16.msra.mxu0 %v245
    %287 = vmatprep.subr.bf16.mxu0 0
    %288 = vmatpush1.bf16.msra.mxu0 0
    %289 = vmatprep.subr.bf16.mxu0 0
    %290 = vmatpush1.bf16.msra.mxu0 0
    %291 = vmatprep.subr.bf16.mxu0 0
    %292 = vmatpush1.bf16.msra.mxu0 0
    %293 = vmatprep.subr.bf16.mxu0 0
    %294 = vmatpush1.bf16.msra.mxu0 0
    %295 = vmatprep.subr.bf16.mxu0 0
    %296 = vmatpush1.bf16.msra.mxu0 0
    %297 = vmatprep.subr.bf16.mxu0 0
    %298 = vmatpush1.bf16.msra.mxu0 0
    %299 = vmatprep.subr.bf16.mxu0 0
    %300 = vmatpush1.bf16.msra.mxu0 0
    %301 = vmatprep.mubr.bf16.mxu0 %v267
    %302 = vmatmul.mubr.bf16.gmra.mrb[0].mxu0 %v172
    %v303 = vpop.f32.mrb[0].mxu0
    %v304 = vadd.f32 %v159, %v303
    %v305 = vpop.f32.mrb[0].mxu0
    %v306 = vadd.f32 %v163, %v305
    %v307 = vpop.f32.mrb[0].mxu0
    %v308 = vadd.f32 %v159, %v307
    %v309 = vpop.f32.mrb[0].mxu0
    %v310 = vadd.f32 %v163, %v309
    %311 = vdwg.mxu0
    %v312 = vmax.f32 %v304, 0.0
    %v313 = vmax.f32 %v306, 0.0
    %v314 = vmax.f32 %v308, 0.0
    %v315 = vmax.f32 %v310, 0.0
    %vm320 = vcmask 1046528
    %v321 = vrot.slane %v312, 1
    %v322 = vrot.slane %v314, 1
    %v323 = vsel %vm320, %v321, %v322
    %v324 = vrot.slane %v313, 1
    %v325 = vrot.slane %v315, 1
    %v326 = vsel %vm320, %v324, %v325
    %vm331 = vcmask 1045504
    %v332 = vrot.slane %v312, 2
    %v333 = vrot.slane %v314, 2
    %v334 = vsel %vm331, %v332, %v333
    %v335 = vrot.slane %v313, 2
    %v336 = vrot.slane %v315, 2
    %v337 = vsel %vm331, %v335, %v336
    %v342 = vpack.c.bf16 %v314, %v312
    %v343 = vpack.c.bf16 %v315, %v313
    %v344 = vpack.c.bf16 %v322, %v323
    %v345 = vpack.c.bf16 %v325, %v326
    %v346 = vpack.c.bf16 %v333, %v334
    %v347 = vpack.c.bf16 %v336, %v337
    %v348 = vld [vmem:[#allocation7] sm:$0xff]
    %v349 = vld [vmem:[#allocation7 + $0x8] sm:$0xf]
    %v350 = vld [vmem:[#allocation7 + $0xc] sm:$0xff]
    %v351 = vld [vmem:[#allocation7 + $0x14] sm:$0xf]
    %v352 = vld [vmem:[#allocation7 + $0x18] sm:$0xff]
    %v353 = vld [vmem:[#allocation7 + $0x20] sm:$0xf]
    %v354 = vld [vmem:[#allocation7 + $0x24] sm:$0xff]
    %v355 = vld [vmem:[#allocation7 + $0x2c] sm:$0xf]
    %v356 = vld [vmem:[#allocation7 + $0x30] sm:$0xff]
    %v357 = vld [vmem:[#allocation7 + $0x38] sm:$0xf]
    %v358 = vld [vmem:[#allocation7 + $0x3c] sm:$0xff]
    %v359 = vld [vmem:[#allocation7 + $0x44] sm:$0xf]
    %v360 = vld [vmem:[#allocation7 + $0x48] sm:$0xff]
    %v361 = vld [vmem:[#allocation7 + $0x50] sm:$0xf]
    %v362 = vld [vmem:[#allocation7 + $0x54] sm:$0xff]
    %v363 = vld [vmem:[#allocation7 + $0x5c] sm:$0xf]
    %v364 = vld [vmem:[#allocation7 + $0x60] sm:$0xff]
    %v365 = vld [vmem:[#allocation7 + $0x68] sm:$0xf]
    %v366 = vld [vmem:[#allocation7 + $0x6c] sm:$0xff]
    %v367 = vld [vmem:[#allocation7 + $0x74] sm:$0xf]
    %v368 = vld [vmem:[#allocation7 + $0x78] sm:$0xff]
    %v369 = vld [vmem:[#allocation7 + $0x80] sm:$0xf]
    %v370 = vld [vmem:[#allocation7 + $0x84] sm:$0xff]
    %v371 = vld [vmem:[#allocation7 + $0x8c] sm:$0xf]
    %v372 = vld [vmem:[#allocation7 + $0x90] sm:$0xff]
    %v373 = vld [vmem:[#allocation7 + $0x98] sm:$0xf]
    %v374 = vld [vmem:[#allocation7 + $0x9c] sm:$0xff]
    %v375 = vld [vmem:[#allocation7 + $0xa4] sm:$0xf]
    %v376 = vld [vmem:[#allocation7 + $0xa8] sm:$0xff]
    %v377 = vld [vmem:[#allocation7 + $0xb0] sm:$0xf]
    %v378 = vld [vmem:[#allocation7 + $0xb4] sm:$0xff]
    %v379 = vld [vmem:[#allocation7 + $0xbc] sm:$0xf]
    %v380 = vld [vmem:[#allocation7 + $0xc0] sm:$0xff]
    %v381 = vld [vmem:[#allocation7 + $0xc8] sm:$0xf]
    %v382 = vld [vmem:[#allocation7 + $0xcc] sm:$0xff]
    %v383 = vld [vmem:[#allocation7 + $0xd4] sm:$0xf]
    %v384 = vld [vmem:[#allocation7 + $0xd8] sm:$0xff]
    %v385 = vld [vmem:[#allocation7 + $0xe0] sm:$0xf]
    %v386 = vld [vmem:[#allocation7 + $0xe4] sm:$0xff]
    %v387 = vld [vmem:[#allocation7 + $0xec] sm:$0xf]
    %v388 = vld [vmem:[#allocation7 + $0xf0] sm:$0xff]
    %v389 = vld [vmem:[#allocation7 + $0xf8] sm:$0xf]
    %v390 = vld [vmem:[#allocation7 + $0xfc] sm:$0xff]
    %v391 = vld [vmem:[#allocation7 + $0x104] sm:$0xf]
    %v392 = vld [vmem:[#allocation7 + $0x108] sm:$0xff]
    %v393 = vld [vmem:[#allocation7 + $0x110] sm:$0xf]
    %v394 = vld [vmem:[#allocation7 + $0x114] sm:$0xff]
    %v395 = vld [vmem:[#allocation7 + $0x11c] sm:$0xf]
    %v396 = vld [vmem:[#allocation7 + $0x120] sm:$0xff]
    %v397 = vld [vmem:[#allocation7 + $0x128] sm:$0xf]
    %v398 = vld [vmem:[#allocation7 + $0x12c] sm:$0xff]
    %v399 = vld [vmem:[#allocation7 + $0x134] sm:$0xf]
    %v400 = vld [vmem:[#allocation7 + $0x138] sm:$0xff]
    %v401 = vld [vmem:[#allocation7 + $0x140] sm:$0xf]
    %v402 = vld [vmem:[#allocation7 + $0x144] sm:$0xff]
    %v403 = vld [vmem:[#allocation7 + $0x14c] sm:$0xf]
    %v404 = vld [vmem:[#allocation7 + $0x150] sm:$0xff]
    %v405 = vld [vmem:[#allocation7 + $0x158] sm:$0xf]
    %v406 = vld [vmem:[#allocation7 + $0x15c] sm:$0xff]
    %v407 = vld [vmem:[#allocation7 + $0x164] sm:$0xf]
    %v408 = vld [vmem:[#allocation7 + $0x168] sm:$0xff]
    %v409 = vld [vmem:[#allocation7 + $0x170] sm:$0xf]
    %v410 = vld [vmem:[#allocation7 + $0x174] sm:$0xff]
    %v411 = vld [vmem:[#allocation7 + $0x17c] sm:$0xf]
    %v412 = vld [vmem:[#allocation7 + $0x180] sm:$0xff]
    %v413 = vld [vmem:[#allocation7 + $0x188] sm:$0xf]
    %v414 = vld [vmem:[#allocation7 + $0x18c] sm:$0xff]
    %v415 = vld [vmem:[#allocation7 + $0x194] sm:$0xf]
    %v416 = vld [vmem:[#allocation7 + $0x198] sm:$0xff]
    %v417 = vld [vmem:[#allocation7 + $0x1a0] sm:$0xf]
    %v418 = vld [vmem:[#allocation7 + $0x1a4] sm:$0xff]
    %v419 = vld [vmem:[#allocation7 + $0x1ac] sm:$0xf]
    %v420 = vld [vmem:[#allocation7 + $0x1b0] sm:$0xff]
    %v421 = vld [vmem:[#allocation7 + $0x1b8] sm:$0xf]
    %v422 = vld [vmem:[#allocation7 + $0x1bc] sm:$0xff]
    %v423 = vld [vmem:[#allocation7 + $0x1c4] sm:$0xf]
    %v424 = vld [vmem:[#allocation7 + $0x1c8] sm:$0xff]
    %v425 = vld [vmem:[#allocation7 + $0x1d0] sm:$0xf]
    %v426 = vld [vmem:[#allocation7 + $0x1d4] sm:$0xff]
    %v427 = vld [vmem:[#allocation7 + $0x1dc] sm:$0xf]
    %v428 = vld [vmem:[#allocation7 + $0x1e0] sm:$0xff]
    %v429 = vld [vmem:[#allocation7 + $0x1e8] sm:$0xf]
    %v430 = vld [vmem:[#allocation7 + $0x1ec] sm:$0xff]
    %v431 = vld [vmem:[#allocation7 + $0x1f4] sm:$0xf]
    %v432 = vld [vmem:[#allocation7 + $0x1f8] sm:$0xff]
    %v433 = vld [vmem:[#allocation7 + $0x200] sm:$0xf]
    %v434 = vld [vmem:[#allocation7 + $0x204] sm:$0xff]
    %v435 = vld [vmem:[#allocation7 + $0x20c] sm:$0xf]
    %v436 = vld [vmem:[#allocation7 + $0x210] sm:$0xff]
    %v437 = vld [vmem:[#allocation7 + $0x218] sm:$0xf]
    %v438 = vld [vmem:[#allocation7 + $0x21c] sm:$0xff]
    %v439 = vld [vmem:[#allocation7 + $0x224] sm:$0xf]
    %v440 = vld [vmem:[#allocation7 + $0x228] sm:$0xff]
    %v441 = vld [vmem:[#allocation7 + $0x230] sm:$0xf]
    %v442 = vld [vmem:[#allocation7 + $0x234] sm:$0xff]
    %v443 = vld [vmem:[#allocation7 + $0x23c] sm:$0xf]
    %v444 = vld [vmem:[#allocation7 + $0x240] sm:$0xff]
    %v445 = vld [vmem:[#allocation7 + $0x248] sm:$0xf]
    %v446 = vld [vmem:[#allocation7 + $0x24c] sm:$0xff]
    %v447 = vld [vmem:[#allocation7 + $0x254] sm:$0xf]
    %v448 = vld [vmem:[#allocation7 + $0x258] sm:$0xff]
    %v449 = vld [vmem:[#allocation7 + $0x260] sm:$0xf]
    %v450 = vld [vmem:[#allocation7 + $0x264] sm:$0xff]
    %v451 = vld [vmem:[#allocation7 + $0x26c] sm:$0xf]
    %v452 = vld [vmem:[#allocation7 + $0x270] sm:$0xff]
    %v453 = vld [vmem:[#allocation7 + $0x278] sm:$0xf]
    %v454 = vld [vmem:[#allocation7 + $0x27c] sm:$0xff]
    %v455 = vld [vmem:[#allocation7 + $0x284] sm:$0xf]
    %v456 = vld [vmem:[#allocation7 + $0x288] sm:$0xff]
    %v457 = vld [vmem:[#allocation7 + $0x290] sm:$0xf]
    %v458 = vld [vmem:[#allocation7 + $0x294] sm:$0xff]
    %v459 = vld [vmem:[#allocation7 + $0x29c] sm:$0xf]
    %v460 = vld [vmem:[#allocation7 + $0x2a0] sm:$0xff]
    %v461 = vld [vmem:[#allocation7 + $0x2a8] sm:$0xf]
    %v462 = vld [vmem:[#allocation7 + $0x2ac] sm:$0xff]
    %v463 = vld [vmem:[#allocation7 + $0x2b4] sm:$0xf]
    %v464 = vld [vmem:[#allocation7 + $0x2b8] sm:$0xff]
    %v465 = vld [vmem:[#allocation7 + $0x2c0] sm:$0xf]
    %v466 = vld [vmem:[#allocation7 + $0x2c4] sm:$0xff]
    %v467 = vld [vmem:[#allocation7 + $0x2cc] sm:$0xf]
    %v468 = vld [vmem:[#allocation7 + $0x2d0] sm:$0xff]
    %v469 = vld [vmem:[#allocation7 + $0x2d8] sm:$0xf]
    %v470 = vld [vmem:[#allocation7 + $0x2dc] sm:$0xff]
    %v471 = vld [vmem:[#allocation7 + $0x2e4] sm:$0xf]
    %v472 = vld [vmem:[#allocation7 + $0x2e8] sm:$0xff]
    %v473 = vld [vmem:[#allocation7 + $0x2f0] sm:$0xf]
    %v474 = vld [vmem:[#allocation7 + $0x2f4] sm:$0xff]
    %v475 = vld [vmem:[#allocation7 + $0x2fc] sm:$0xf]
    %v476 = vld [vmem:[#allocation7 + $0x300] sm:$0xff]
    %v477 = vld [vmem:[#allocation7 + $0x308] sm:$0xf]
    %v478 = vld [vmem:[#allocation7 + $0x30c] sm:$0xff]
    %v479 = vld [vmem:[#allocation7 + $0x314] sm:$0xf]
    %v480 = vld [vmem:[#allocation7 + $0x318] sm:$0xff]
    %v481 = vld [vmem:[#allocation7 + $0x320] sm:$0xf]
    %v482 = vld [vmem:[#allocation7 + $0x324] sm:$0xff]
    %v483 = vld [vmem:[#allocation7 + $0x32c] sm:$0xf]
    %v484 = vld [vmem:[#allocation7 + $0x330] sm:$0xff]
    %v485 = vld [vmem:[#allocation7 + $0x338] sm:$0xf]
    %v486 = vld [vmem:[#allocation7 + $0x33c] sm:$0xff]
    %v487 = vld [vmem:[#allocation7 + $0x344] sm:$0xf]
    %v488 = vld [vmem:[#allocation7 + $0x348] sm:$0xff]
    %v489 = vld [vmem:[#allocation7 + $0x350] sm:$0xf]
    %v490 = vld [vmem:[#allocation7 + $0x354] sm:$0xff]
    %v491 = vld [vmem:[#allocation7 + $0x35c] sm:$0xf]
    %v492 = vld [vmem:[#allocation7 + $0x360] sm:$0xff]
    %v493 = vld [vmem:[#allocation7 + $0x368] sm:$0xf]
    %v494 = vld [vmem:[#allocation7 + $0x36c] sm:$0xff]
    %v495 = vld [vmem:[#allocation7 + $0x374] sm:$0xf]
    %v496 = vld [vmem:[#allocation7 + $0x378] sm:$0xff]
    %v497 = vld [vmem:[#allocation7 + $0x380] sm:$0xf]
    %v498 = vld [vmem:[#allocation7 + $0x384] sm:$0xff]
    %v499 = vld [vmem:[#allocation7 + $0x38c] sm:$0xf]
    %v500 = vld [vmem:[#allocation7 + $0x390] sm:$0xff]
    %v501 = vld [vmem:[#allocation7 + $0x398] sm:$0xf]
    %v502 = vld [vmem:[#allocation7 + $0x39c] sm:$0xff]
    %v503 = vld [vmem:[#allocation7 + $0x3a4] sm:$0xf]
    %v504 = vld [vmem:[#allocation7 + $0x3a8] sm:$0xff]
    %v505 = vld [vmem:[#allocation7 + $0x3b0] sm:$0xf]
    %v506 = vld [vmem:[#allocation7 + $0x3b4] sm:$0xff]
    %v507 = vld [vmem:[#allocation7 + $0x3bc] sm:$0xf]
    %v508 = vld [vmem:[#allocation7 + $0x3c0] sm:$0xff]
    %v509 = vld [vmem:[#allocation7 + $0x3c8] sm:$0xf]
    %v510 = vld [vmem:[#allocation7 + $0x3cc] sm:$0xff]
    %v511 = vld [vmem:[#allocation7 + $0x3d4] sm:$0xf]
    %v512 = vld [vmem:[#allocation7 + $0x3d8] sm:$0xff]
    %v513 = vld [vmem:[#allocation7 + $0x3e0] sm:$0xf]
    %v514 = vld [vmem:[#allocation7 + $0x3e4] sm:$0xff]
    %v515 = vld [vmem:[#allocation7 + $0x3ec] sm:$0xf]
    %v516 = vld [vmem:[#allocation7 + $0x3f0] sm:$0xff]
    %v517 = vld [vmem:[#allocation7 + $0x3f8] sm:$0xf]
    %v518 = vld [vmem:[#allocation7 + $0x3fc] sm:$0xff]
    %v519 = vld [vmem:[#allocation7 + $0x404] sm:$0xf]
    %v520 = vld [vmem:[#allocation7 + $0x408] sm:$0xff]
    %v521 = vld [vmem:[#allocation7 + $0x410] sm:$0xf]
    %v522 = vld [vmem:[#allocation7 + $0x414] sm:$0xff]
    %v523 = vld [vmem:[#allocation7 + $0x41c] sm:$0xf]
    %v524 = vld [vmem:[#allocation7 + $0x420] sm:$0xff]
    %v525 = vld [vmem:[#allocation7 + $0x428] sm:$0xf]
    %v526 = vld [vmem:[#allocation7 + $0x42c] sm:$0xff]
    %v527 = vld [vmem:[#allocation7 + $0x434] sm:$0xf]
    %v528 = vld [vmem:[#allocation7 + $0x438] sm:$0xff]
    %v529 = vld [vmem:[#allocation7 + $0x440] sm:$0xf]
    %v530 = vld [vmem:[#allocation7 + $0x444] sm:$0xff]
    %v531 = vld [vmem:[#allocation7 + $0x44c] sm:$0xf]
    %v532 = vld [vmem:[#allocation7 + $0x450] sm:$0xff]
    %v533 = vld [vmem:[#allocation7 + $0x458] sm:$0xf]
    %v534 = vld [vmem:[#allocation7 + $0x45c] sm:$0xff]
    %v535 = vld [vmem:[#allocation7 + $0x464] sm:$0xf]
    %v536 = vld [vmem:[#allocation7 + $0x468] sm:$0xff]
    %v537 = vld [vmem:[#allocation7 + $0x470] sm:$0xf]
    %v538 = vld [vmem:[#allocation7 + $0x474] sm:$0xff]
    %v539 = vld [vmem:[#allocation7 + $0x47c] sm:$0xf]
    %v540 = vld [vmem:[#allocation8] sm:$0x7]
    %v542 = vlaneseq
    %v543 = vshrl.u32 %v542, 7
    %v544 = vsub.s32 0, %v543
    %v545 = vrot.slane %v540, %v544
    %v546 = vlaneseq
    %v547 = vshrl.u32 %v546, 7
    %v548 = vsub.s32 1, %v547
    %v549 = vrot.slane %v540, %v548
    %v550 = vlaneseq
    %v551 = vshrl.u32 %v550, 7
    %v552 = vsub.s32 2, %v551
    %v553 = vrot.slane %v540, %v552
    %v749 = vunpack.c.l.b16 %v348
    %v750 = vunpack.c.h.b16 %v348
    %v751 = vunpack.c.l.b16 %v349
    %v752 = vunpack.c.l.b16 %v350
    %v753 = vunpack.c.h.b16 %v350
    %v754 = vunpack.c.l.b16 %v351
    %v755 = vunpack.c.l.b16 %v352
    %v756 = vunpack.c.h.b16 %v352
    %v757 = vunpack.c.l.b16 %v353
    %v758 = vunpack.c.l.b16 %v354
    %v759 = vunpack.c.h.b16 %v354
    %v760 = vunpack.c.l.b16 %v355
    %v761 = vunpack.c.l.b16 %v356
    %v762 = vunpack.c.h.b16 %v356
    %v763 = vunpack.c.l.b16 %v357
    %v764 = vunpack.c.l.b16 %v358
    %v765 = vunpack.c.h.b16 %v358
    %v766 = vunpack.c.l.b16 %v359
    %v767 = vunpack.c.l.b16 %v360
    %v768 = vunpack.c.h.b16 %v360
    %v769 = vunpack.c.l.b16 %v361
    %v770 = vunpack.c.l.b16 %v362
    %v771 = vunpack.c.h.b16 %v362
    %v772 = vunpack.c.l.b16 %v363
    %v773 = vunpack.c.l.b16 %v364
    %v774 = vunpack.c.h.b16 %v364
    %v775 = vunpack.c.l.b16 %v365
    %v776 = vunpack.c.l.b16 %v366
    %v777 = vunpack.c.h.b16 %v366
    %v778 = vunpack.c.l.b16 %v367
    %v779 = vunpack.c.l.b16 %v368
    %v780 = vunpack.c.h.b16 %v368
    %v781 = vunpack.c.l.b16 %v369
    %v782 = vunpack.c.l.b16 %v370
    %v783 = vunpack.c.h.b16 %v370
    %v784 = vunpack.c.l.b16 %v371
    %v785 = vunpack.c.l.b16 %v372
    %v786 = vunpack.c.h.b16 %v372
    %v787 = vunpack.c.l.b16 %v373
    %v788 = vunpack.c.l.b16 %v374
    %v789 = vunpack.c.h.b16 %v374
    %v790 = vunpack.c.l.b16 %v375
    %v791 = vunpack.c.l.b16 %v376
    %v792 = vunpack.c.h.b16 %v376
    %v793 = vunpack.c.l.b16 %v377
    %v794 = vunpack.c.l.b16 %v378
    %v795 = vunpack.c.h.b16 %v378
    %v796 = vunpack.c.l.b16 %v379
    %v797 = vunpack.c.l.b16 %v380
    %v798 = vunpack.c.h.b16 %v380
    %v799 = vunpack.c.l.b16 %v381
    %v800 = vunpack.c.l.b16 %v382
    %v801 = vunpack.c.h.b16 %v382
    %v802 = vunpack.c.l.b16 %v383
    %v803 = vunpack.c.l.b16 %v384
    %v804 = vunpack.c.h.b16 %v384
    %v805 = vunpack.c.l.b16 %v385
    %v806 = vunpack.c.l.b16 %v386
    %v807 = vunpack.c.h.b16 %v386
    %v808 = vunpack.c.l.b16 %v387
    %v809 = vunpack.c.l.b16 %v388
    %v810 = vunpack.c.h.b16 %v388
    %v811 = vunpack.c.l.b16 %v389
    %v812 = vunpack.c.l.b16 %v390
    %v813 = vunpack.c.h.b16 %v390
    %v814 = vunpack.c.l.b16 %v391
    %v815 = vunpack.c.l.b16 %v392
    %v816 = vunpack.c.h.b16 %v392
    %v817 = vunpack.c.l.b16 %v393
    %v818 = vunpack.c.l.b16 %v394
    %v819 = vunpack.c.h.b16 %v394
    %v820 = vunpack.c.l.b16 %v395
    %v821 = vunpack.c.l.b16 %v396
    %v822 = vunpack.c.h.b16 %v396
    %v823 = vunpack.c.l.b16 %v397
    %v824 = vunpack.c.l.b16 %v398
    %v825 = vunpack.c.h.b16 %v398
    %v826 = vunpack.c.l.b16 %v399
    %v827 = vunpack.c.l.b16 %v400
    %v828 = vunpack.c.h.b16 %v400
    %v829 = vunpack.c.l.b16 %v401
    %v830 = vunpack.c.l.b16 %v402
    %v831 = vunpack.c.h.b16 %v402
    %v832 = vunpack.c.l.b16 %v403
    %v833 = vunpack.c.l.b16 %v404
    %v834 = vunpack.c.h.b16 %v404
    %v835 = vunpack.c.l.b16 %v405
    %v836 = vunpack.c.l.b16 %v406
    %v837 = vunpack.c.h.b16 %v406
    %v838 = vunpack.c.l.b16 %v407
    %v839 = vunpack.c.l.b16 %v408
    %v840 = vunpack.c.h.b16 %v408
    %v841 = vunpack.c.l.b16 %v409
    %v842 = vunpack.c.l.b16 %v410
    %v843 = vunpack.c.h.b16 %v410
    %v844 = vunpack.c.l.b16 %v411
    %v845 = vunpack.c.l.b16 %v412
    %v846 = vunpack.c.h.b16 %v412
    %v847 = vunpack.c.l.b16 %v413
    %v848 = vunpack.c.l.b16 %v414
    %v849 = vunpack.c.h.b16 %v414
    %v850 = vunpack.c.l.b16 %v415
    %v851 = vunpack.c.l.b16 %v416
    %v852 = vunpack.c.h.b16 %v416
    %v853 = vunpack.c.l.b16 %v417
    %v854 = vunpack.c.l.b16 %v418
    %v855 = vunpack.c.h.b16 %v418
    %v856 = vunpack.c.l.b16 %v419
    %v857 = vunpack.c.l.b16 %v420
    %v858 = vunpack.c.h.b16 %v420
    %v859 = vunpack.c.l.b16 %v421
    %v860 = vunpack.c.l.b16 %v422
    %v861 = vunpack.c.h.b16 %v422
    %v862 = vunpack.c.l.b16 %v423
    %v863 = vunpack.c.l.b16 %v424
    %v864 = vunpack.c.h.b16 %v424
    %v865 = vunpack.c.l.b16 %v425
    %v866 = vunpack.c.l.b16 %v426
    %v867 = vunpack.c.h.b16 %v426
    %v868 = vunpack.c.l.b16 %v427
    %v869 = vunpack.c.l.b16 %v428
    %v870 = vunpack.c.h.b16 %v428
    %v871 = vunpack.c.l.b16 %v429
    %v872 = vunpack.c.l.b16 %v430
    %v873 = vunpack.c.h.b16 %v430
    %v874 = vunpack.c.l.b16 %v431
    %v875 = vunpack.c.l.b16 %v432
    %v876 = vunpack.c.h.b16 %v432
    %v877 = vunpack.c.l.b16 %v433
    %v878 = vunpack.c.l.b16 %v434
    %v879 = vunpack.c.h.b16 %v434
    %v880 = vunpack.c.l.b16 %v435
    %v881 = vunpack.c.l.b16 %v436
    %v882 = vunpack.c.h.b16 %v436
    %v883 = vunpack.c.l.b16 %v437
    %v884 = vunpack.c.l.b16 %v438
    %v885 = vunpack.c.h.b16 %v438
    %v886 = vunpack.c.l.b16 %v439
    %v887 = vunpack.c.l.b16 %v440
    %v888 = vunpack.c.h.b16 %v440
    %v889 = vunpack.c.l.b16 %v441
    %v890 = vunpack.c.l.b16 %v442
    %v891 = vunpack.c.h.b16 %v442
    %v892 = vunpack.c.l.b16 %v443
    %v893 = vunpack.c.l.b16 %v444
    %v894 = vunpack.c.h.b16 %v444
    %v895 = vunpack.c.l.b16 %v445
    %v896 = vunpack.c.l.b16 %v446
    %v897 = vunpack.c.h.b16 %v446
    %v898 = vunpack.c.l.b16 %v447
    %v899 = vunpack.c.l.b16 %v448
    %v900 = vunpack.c.h.b16 %v448
    %v901 = vunpack.c.l.b16 %v449
    %v902 = vunpack.c.l.b16 %v450
    %v903 = vunpack.c.h.b16 %v450
    %v904 = vunpack.c.l.b16 %v451
    %v905 = vunpack.c.l.b16 %v452
    %v906 = vunpack.c.h.b16 %v452
    %v907 = vunpack.c.l.b16 %v453
    %v908 = vunpack.c.l.b16 %v454
    %v909 = vunpack.c.h.b16 %v454
    %v910 = vunpack.c.l.b16 %v455
    %v911 = vunpack.c.l.b16 %v456
    %v912 = vunpack.c.h.b16 %v456
    %v913 = vunpack.c.l.b16 %v457
    %v914 = vunpack.c.l.b16 %v458
    %v915 = vunpack.c.h.b16 %v458
    %v916 = vunpack.c.l.b16 %v459
    %v917 = vunpack.c.l.b16 %v460
    %v918 = vunpack.c.h.b16 %v460
    %v919 = vunpack.c.l.b16 %v461
    %v920 = vunpack.c.l.b16 %v462
    %v921 = vunpack.c.h.b16 %v462
    %v922 = vunpack.c.l.b16 %v463
    %v923 = vunpack.c.l.b16 %v464
    %v924 = vunpack.c.h.b16 %v464
    %v925 = vunpack.c.l.b16 %v465
    %v926 = vunpack.c.l.b16 %v466
    %v927 = vunpack.c.h.b16 %v466
    %v928 = vunpack.c.l.b16 %v467
    %v929 = vunpack.c.l.b16 %v468
    %v930 = vunpack.c.h.b16 %v468
    %v931 = vunpack.c.l.b16 %v469
    %v932 = vunpack.c.l.b16 %v470
    %v933 = vunpack.c.h.b16 %v470
    %v934 = vunpack.c.l.b16 %v471
    %v935 = vunpack.c.l.b16 %v472
    %v936 = vunpack.c.h.b16 %v472
    %v937 = vunpack.c.l.b16 %v473
    %v938 = vunpack.c.l.b16 %v474
    %v939 = vunpack.c.h.b16 %v474
    %v940 = vunpack.c.l.b16 %v475
    %v941 = vunpack.c.l.b16 %v476
    %v942 = vunpack.c.h.b16 %v476
    %v943 = vunpack.c.l.b16 %v477
    %v944 = vunpack.c.l.b16 %v478
    %v945 = vunpack.c.h.b16 %v478
    %v946 = vunpack.c.l.b16 %v479
    %v947 = vunpack.c.l.b16 %v480
    %v948 = vunpack.c.h.b16 %v480
    %v949 = vunpack.c.l.b16 %v481
    %v950 = vunpack.c.l.b16 %v482
    %v951 = vunpack.c.h.b16 %v482
    %v952 = vunpack.c.l.b16 %v483
    %v953 = vunpack.c.l.b16 %v484
    %v954 = vunpack.c.h.b16 %v484
    %v955 = vunpack.c.l.b16 %v485
    %v956 = vunpack.c.l.b16 %v486
    %v957 = vunpack.c.h.b16 %v486
    %v958 = vunpack.c.l.b16 %v487
    %v959 = vunpack.c.l.b16 %v488
    %v960 = vunpack.c.h.b16 %v488
    %v961 = vunpack.c.l.b16 %v489
    %v962 = vunpack.c.l.b16 %v490
    %v963 = vunpack.c.h.b16 %v490
    %v964 = vunpack.c.l.b16 %v491
    %v965 = vunpack.c.l.b16 %v492
    %v966 = vunpack.c.h.b16 %v492
    %v967 = vunpack.c.l.b16 %v493
    %v968 = vunpack.c.l.b16 %v494
    %v969 = vunpack.c.h.b16 %v494
    %v970 = vunpack.c.l.b16 %v495
    %v971 = vunpack.c.l.b16 %v496
    %v972 = vunpack.c.h.b16 %v496
    %v973 = vunpack.c.l.b16 %v497
    %v974 = vunpack.c.l.b16 %v498
    %v975 = vunpack.c.h.b16 %v498
    %v976 = vunpack.c.l.b16 %v499
    %v977 = vunpack.c.l.b16 %v500
    %v978 = vunpack.c.h.b16 %v500
    %v979 = vunpack.c.l.b16 %v501
    %v980 = vunpack.c.l.b16 %v502
    %v981 = vunpack.c.h.b16 %v502
    %v982 = vunpack.c.l.b16 %v503
    %v983 = vunpack.c.l.b16 %v504
    %v984 = vunpack.c.h.b16 %v504
    %v985 = vunpack.c.l.b16 %v505
    %v986 = vunpack.c.l.b16 %v506
    %v987 = vunpack.c.h.b16 %v506
    %v988 = vunpack.c.l.b16 %v507
    %v989 = vunpack.c.l.b16 %v508
    %v990 = vunpack.c.h.b16 %v508
    %v991 = vunpack.c.l.b16 %v509
    %v992 = vunpack.c.l.b16 %v510
    %v993 = vunpack.c.h.b16 %v510
    %v994 = vunpack.c.l.b16 %v511
    %v995 = vunpack.c.l.b16 %v512
    %v996 = vunpack.c.h.b16 %v512
    %v997 = vunpack.c.l.b16 %v513
    %v998 = vunpack.c.l.b16 %v514
    %v999 = vunpack.c.h.b16 %v514
    %v1000 = vunpack.c.l.b16 %v515
    %v1001 = vunpack.c.l.b16 %v516
    %v1002 = vunpack.c.h.b16 %v516
    %v1003 = vunpack.c.l.b16 %v517
    %v1004 = vunpack.c.l.b16 %v518
    %v1005 = vunpack.c.h.b16 %v518
    %v1006 = vunpack.c.l.b16 %v519
    %v1007 = vunpack.c.l.b16 %v520
    %v1008 = vunpack.c.h.b16 %v520
    %v1009 = vunpack.c.l.b16 %v521
    %v1010 = vunpack.c.l.b16 %v522
    %v1011 = vunpack.c.h.b16 %v522
    %v1012 = vunpack.c.l.b16 %v523
    %v1013 = vunpack.c.l.b16 %v524
    %v1014 = vunpack.c.h.b16 %v524
    %v1015 = vunpack.c.l.b16 %v525
    %v1016 = vunpack.c.l.b16 %v526
    %v1017 = vunpack.c.h.b16 %v526
    %v1018 = vunpack.c.l.b16 %v527
    %v1019 = vunpack.c.l.b16 %v528
    %v1020 = vunpack.c.h.b16 %v528
    %v1021 = vunpack.c.l.b16 %v529
    %v1022 = vunpack.c.l.b16 %v530
    %v1023 = vunpack.c.h.b16 %v530
    %v1024 = vunpack.c.l.b16 %v531
    %v1025 = vunpack.c.l.b16 %v532
    %v1026 = vunpack.c.h.b16 %v532
    %v1027 = vunpack.c.l.b16 %v533
    %v1028 = vunpack.c.l.b16 %v534
    %v1029 = vunpack.c.h.b16 %v534
    %v1030 = vunpack.c.l.b16 %v535
    %v1031 = vunpack.c.l.b16 %v536
    %v1032 = vunpack.c.h.b16 %v536
    %v1033 = vunpack.c.l.b16 %v537
    %v1034 = vunpack.c.l.b16 %v538
    %v1035 = vunpack.c.h.b16 %v538
    %v1036 = vunpack.c.l.b16 %v539
    %v1037 = vpack.c.b16 %v752, %v749
    %v1038 = vpack.c.b16 %v753, %v750
    %v1039 = vpack.c.b16 %v754, %v751
    %v1040 = vpack.c.b16 %v758, %v755
    %v1041 = vpack.c.b16 %v759, %v756
    %v1042 = vpack.c.b16 %v760, %v757
    %v1043 = vpack.c.b16 %v764, %v761
    %v1044 = vpack.c.b16 %v765, %v762
    %v1045 = vpack.c.b16 %v766, %v763
    %v1046 = vpack.c.b16 %v770, %v767
    %v1047 = vpack.c.b16 %v771, %v768
    %v1048 = vpack.c.b16 %v772, %v769
    %v1049 = vpack.c.b16 %v776, %v773
    %v1050 = vpack.c.b16 %v777, %v774
    %v1051 = vpack.c.b16 %v778, %v775
    %v1052 = vpack.c.b16 %v782, %v779
    %v1053 = vpack.c.b16 %v783, %v780
    %v1054 = vpack.c.b16 %v784, %v781
    %v1055 = vpack.c.b16 %v788, %v785
    %v1056 = vpack.c.b16 %v789, %v786
    %v1057 = vpack.c.b16 %v790, %v787
    %v1058 = vpack.c.b16 %v794, %v791
    %v1059 = vpack.c.b16 %v795, %v792
    %v1060 = vpack.c.b16 %v796, %v793
    %v1061 = vpack.c.b16 %v800, %v797
    %v1062 = vpack.c.b16 %v801, %v798
    %v1063 = vpack.c.b16 %v802, %v799
    %v1064 = vpack.c.b16 %v806, %v803
    %v1065 = vpack.c.b16 %v807, %v804
    %v1066 = vpack.c.b16 %v808, %v805
    %v1067 = vpack.c.b16 %v812, %v809
    %v1068 = vpack.c.b16 %v813, %v810
    %v1069 = vpack.c.b16 %v814, %v811
    %v1070 = vpack.c.b16 %v818, %v815
    %v1071 = vpack.c.b16 %v819, %v816
    %v1072 = vpack.c.b16 %v820, %v817
    %v1073 = vpack.c.b16 %v824, %v821
    %v1074 = vpack.c.b16 %v825, %v822
    %v1075 = vpack.c.b16 %v826, %v823
    %v1076 = vpack.c.b16 %v830, %v827
    %v1077 = vpack.c.b16 %v831, %v828
    %v1078 = vpack.c.b16 %v832, %v829
    %v1079 = vpack.c.b16 %v836, %v833
    %v1080 = vpack.c.b16 %v837, %v834
    %v1081 = vpack.c.b16 %v838, %v835
    %v1082 = vpack.c.b16 %v842, %v839
    %v1083 = vpack.c.b16 %v843, %v840
    %v1084 = vpack.c.b16 %v844, %v841
    %v1085 = vpack.c.b16 %v848, %v845
    %v1086 = vpack.c.b16 %v849, %v846
    %v1087 = vpack.c.b16 %v850, %v847
    %v1088 = vpack.c.b16 %v854, %v851
    %v1089 = vpack.c.b16 %v855, %v852
    %v1090 = vpack.c.b16 %v856, %v853
    %v1091 = vpack.c.b16 %v860, %v857
    %v1092 = vpack.c.b16 %v861, %v858
    %v1093 = vpack.c.b16 %v862, %v859
    %v1094 = vpack.c.b16 %v866, %v863
    %v1095 = vpack.c.b16 %v867, %v864
    %v1096 = vpack.c.b16 %v868, %v865
    %v1097 = vpack.c.b16 %v872, %v869
    %v1098 = vpack.c.b16 %v873, %v870
    %v1099 = vpack.c.b16 %v874, %v871
    %v1100 = vpack.c.b16 %v878, %v875
    %v1101 = vpack.c.b16 %v879, %v876
    %v1102 = vpack.c.b16 %v880, %v877
    %v1103 = vpack.c.b16 %v884, %v881
    %v1104 = vpack.c.b16 %v885, %v882
    %v1105 = vpack.c.b16 %v886, %v883
    %v1106 = vpack.c.b16 %v890, %v887
    %v1107 = vpack.c.b16 %v891, %v888
    %v1108 = vpack.c.b16 %v892, %v889
    %v1109 = vpack.c.b16 %v896, %v893
    %v1110 = vpack.c.b16 %v897, %v894
    %v1111 = vpack.c.b16 %v898, %v895
    %v1112 = vpack.c.b16 %v902, %v899
    %v1113 = vpack.c.b16 %v903, %v900
    %v1114 = vpack.c.b16 %v904, %v901
    %v1115 = vpack.c.b16 %v908, %v905
    %v1116 = vpack.c.b16 %v909, %v906
    %v1117 = vpack.c.b16 %v910, %v907
    %v1118 = vpack.c.b16 %v914, %v911
    %v1119 = vpack.c.b16 %v915, %v912
    %v1120 = vpack.c.b16 %v916, %v913
    %v1121 = vpack.c.b16 %v920, %v917
    %v1122 = vpack.c.b16 %v921, %v918
    %v1123 = vpack.c.b16 %v922, %v919
    %v1124 = vpack.c.b16 %v926, %v923
    %v1125 = vpack.c.b16 %v927, %v924
    %v1126 = vpack.c.b16 %v928, %v925
    %v1127 = vpack.c.b16 %v932, %v929
    %v1128 = vpack.c.b16 %v933, %v930
    %v1129 = vpack.c.b16 %v934, %v931
    %v1130 = vpack.c.b16 %v938, %v935
    %v1131 = vpack.c.b16 %v939, %v936
    %v1132 = vpack.c.b16 %v940, %v937
    %v1133 = vpack.c.b16 %v944, %v941
    %v1134 = vpack.c.b16 %v945, %v942
    %v1135 = vpack.c.b16 %v946, %v943
    %v1136 = vpack.c.b16 %v950, %v947
    %v1137 = vpack.c.b16 %v951, %v948
    %v1138 = vpack.c.b16 %v952, %v949
    %v1139 = vpack.c.b16 %v956, %v953
    %v1140 = vpack.c.b16 %v957, %v954
    %v1141 = vpack.c.b16 %v958, %v955
    %v1142 = vpack.c.b16 %v962, %v959
    %v1143 = vpack.c.b16 %v963, %v960
    %v1144 = vpack.c.b16 %v964, %v961
    %v1145 = vpack.c.b16 %v968, %v965
    %v1146 = vpack.c.b16 %v969, %v966
    %v1147 = vpack.c.b16 %v970, %v967
    %v1148 = vpack.c.b16 %v974, %v971
    %v1149 = vpack.c.b16 %v975, %v972
    %v1150 = vpack.c.b16 %v976, %v973
    %v1151 = vpack.c.b16 %v980, %v977
    %v1152 = vpack.c.b16 %v981, %v978
    %v1153 = vpack.c.b16 %v982, %v979
    %v1154 = vpack.c.b16 %v986, %v983
    %v1155 = vpack.c.b16 %v987, %v984
    %v1156 = vpack.c.b16 %v988, %v985
    %v1157 = vpack.c.b16 %v992, %v989
    %v1158 = vpack.c.b16 %v993, %v990
    %v1159 = vpack.c.b16 %v994, %v991
    %v1160 = vpack.c.b16 %v998, %v995
    %v1161 = vpack.c.b16 %v999, %v996
    %v1162 = vpack.c.b16 %v1000, %v997
    %v1163 = vpack.c.b16 %v1004, %v1001
    %v1164 = vpack.c.b16 %v1005, %v1002
    %v1165 = vpack.c.b16 %v1006, %v1003
    %v1166 = vpack.c.b16 %v1010, %v1007
    %v1167 = vpack.c.b16 %v1011, %v1008
    %v1168 = vpack.c.b16 %v1012, %v1009
    %v1169 = vpack.c.b16 %v1016, %v1013
    %v1170 = vpack.c.b16 %v1017, %v1014
    %v1171 = vpack.c.b16 %v1018, %v1015
    %v1172 = vpack.c.b16 %v1022, %v1019
    %v1173 = vpack.c.b16 %v1023, %v1020
    %v1174 = vpack.c.b16 %v1024, %v1021
    %v1175 = vpack.c.b16 %v1028, %v1025
    %v1176 = vpack.c.b16 %v1029, %v1026
    %v1177 = vpack.c.b16 %v1030, %v1027
    %v1178 = vpack.c.b16 %v1034, %v1031
    %v1179 = vpack.c.b16 %v1035, %v1032
    %v1180 = vpack.c.b16 %v1036, %v1033
    %1325 = vmatprep.subr.bf16.mxu0 %v1038
    %1326 = vmatpush1.bf16.msra.mxu0 %v1037
    %1327 = vmatprep.subr.bf16.mxu0 %v1041
    %1328 = vmatpush1.bf16.msra.mxu0 %v1040
    %1329 = vmatprep.subr.bf16.mxu0 %v1044
    %1330 = vmatpush1.bf16.msra.mxu0 %v1043
    %1331 = vmatprep.subr.bf16.mxu0 %v1047
    %1332 = vmatpush1.bf16.msra.mxu0 %v1046
    %1333 = vmatprep.subr.bf16.mxu0 %v1050
    %1334 = vmatpush1.bf16.msra.mxu0 %v1049
    %1335 = vmatprep.subr.bf16.mxu0 %v1053
    %1336 = vmatpush1.bf16.msra.mxu0 %v1052
    %1337 = vmatprep.subr.bf16.mxu0 %v1056
    %1338 = vmatpush1.bf16.msra.mxu0 %v1055
    %1339 = vmatprep.subr.bf16.mxu0 %v1059
    %1340 = vmatpush1.bf16.msra.mxu0 %v1058
    %1341 = vmatprep.subr.bf16.mxu0 %v1062
    %1342 = vmatpush1.bf16.msra.mxu0 %v1061
    %1343 = vmatprep.subr.bf16.mxu0 %v1065
    %1344 = vmatpush1.bf16.msra.mxu0 %v1064
    %1345 = vmatprep.subr.bf16.mxu0 %v1068
    %1346 = vmatpush1.bf16.msra.mxu0 %v1067
    %1347 = vmatprep.subr.bf16.mxu0 %v1071
    %1348 = vmatpush1.bf16.msra.mxu0 %v1070
    %1349 = vmatprep.subr.bf16.mxu0 %v1074
    %1350 = vmatpush1.bf16.msra.mxu0 %v1073
    %1351 = vmatprep.subr.bf16.mxu0 %v1077
    %1352 = vmatpush1.bf16.msra.mxu0 %v1076
    %1353 = vmatprep.subr.bf16.mxu0 %v1080
    %1354 = vmatpush1.bf16.msra.mxu0 %v1079
    %1355 = vmatprep.subr.bf16.mxu0 %v1083
    %1356 = vmatpush1.bf16.msra.mxu0 %v1082
    %1357 = vmatprep.mubr.bf16.mxu0 %v343
    %1358 = vmatmul.mubr.bf16.gmra.mrb[0].mxu0 %v342
    %v1359 = vpop.f32.mrb[0].mxu0
    %v1360 = vadd.f32 %v545, %v1359
    %v1361 = vpop.f32.mrb[0].mxu0
    %v1362 = vadd.f32 %v549, %v1361
    %v1363 = vpop.f32.mrb[0].mxu0
    %v1364 = vadd.f32 %v545, %v1363
    %v1365 = vpop.f32.mrb[0].mxu0
    %v1366 = vadd.f32 %v549, %v1365
    %1367 = vdwg.mxu0
    %1368 = vmatprep.subr.bf16.mxu0 %v1086
    %1369 = vmatpush1.bf16.msra.mxu0 %v1085
    %1370 = vmatprep.subr.bf16.mxu0 %v1089
    %1371 = vmatpush1.bf16.msra.mxu0 %v1088
    %1372 = vmatprep.subr.bf16.mxu0 %v1092
    %1373 = vmatpush1.bf16.msra.mxu0 %v1091
    %1374 = vmatprep.subr.bf16.mxu0 %v1095
    %1375 = vmatpush1.bf16.msra.mxu0 %v1094
    %1376 = vmatprep.subr.bf16.mxu0 %v1098
    %1377 = vmatpush1.bf16.msra.mxu0 %v1097
    %1378 = vmatprep.subr.bf16.mxu0 %v1101
    %1379 = vmatpush1.bf16.msra.mxu0 %v1100
    %1380 = vmatprep.subr.bf16.mxu0 %v1104
    %1381 = vmatpush1.bf16.msra.mxu0 %v1103
    %1382 = vmatprep.subr.bf16.mxu0 %v1107
    %1383 = vmatpush1.bf16.msra.mxu0 %v1106
    %1384 = vmatprep.subr.bf16.mxu0 %v1110
    %1385 = vmatpush1.bf16.msra.mxu0 %v1109
    %1386 = vmatprep.subr.bf16.mxu0 %v1113
    %1387 = vmatpush1.bf16.msra.mxu0 %v1112
    %1388 = vmatprep.subr.bf16.mxu0 %v1116
    %1389 = vmatpush1.bf16.msra.mxu0 %v1115
    %1390 = vmatprep.subr.bf16.mxu0 %v1119
    %1391 = vmatpush1.bf16.msra.mxu0 %v1118
    %1392 = vmatprep.subr.bf16.mxu0 %v1122
    %1393 = vmatpush1.bf16.msra.mxu0 %v1121
    %1394 = vmatprep.subr.bf16.mxu0 %v1125
    %1395 = vmatpush1.bf16.msra.mxu0 %v1124
    %1396 = vmatprep.subr.bf16.mxu0 %v1128
    %1397 = vmatpush1.bf16.msra.mxu0 %v1127
    %1398 = vmatprep.subr.bf16.mxu0 %v1131
    %1399 = vmatpush1.bf16.msra.mxu0 %v1130
    %1400 = vmatprep.mubr.bf16.mxu0 %v345
    %1401 = vmatmul.mubr.bf16.gmra.mrb[0].mxu0 %v344
    %v1402 = vpop.f32.mrb[0].mxu0
    %v1403 = vadd.f32 %v1360, %v1402
    %v1404 = vpop.f32.mrb[0].mxu0
    %v1405 = vadd.f32 %v1362, %v1404
    %v1406 = vpop.f32.mrb[0].mxu0
    %v1407 = vadd.f32 %v1364, %v1406
    %v1408 = vpop.f32.mrb[0].mxu0
    %v1409 = vadd.f32 %v1366, %v1408
    %1410 = vdwg.mxu0
    %1411 = vmatprep.subr.bf16.mxu0 %v1134
    %1412 = vmatpush1.bf16.msra.mxu0 %v1133
    %1413 = vmatprep.subr.bf16.mxu0 %v1137
    %1414 = vmatpush1.bf16.msra.mxu0 %v1136
    %1415 = vmatprep.subr.bf16.mxu0 %v1140
    %1416 = vmatpush1.bf16.msra.mxu0 %v1139
    %1417 = vmatprep.subr.bf16.mxu0 %v1143
    %1418 = vmatpush1.bf16.msra.mxu0 %v1142
    %1419 = vmatprep.subr.bf16.mxu0 %v1146
    %1420 = vmatpush1.bf16.msra.mxu0 %v1145
    %1421 = vmatprep.subr.bf16.mxu0 %v1149
    %1422 = vmatpush1.bf16.msra.mxu0 %v1148
    %1423 = vmatprep.subr.bf16.mxu0 %v1152
    %1424 = vmatpush1.bf16.msra.mxu0 %v1151
    %1425 = vmatprep.subr.bf16.mxu0 %v1155
    %1426 = vmatpush1.bf16.msra.mxu0 %v1154
    %1427 = vmatprep.subr.bf16.mxu0 %v1158
    %1428 = vmatpush1.bf16.msra.mxu0 %v1157
    %1429 = vmatprep.subr.bf16.mxu0 %v1161
    %1430 = vmatpush1.bf16.msra.mxu0 %v1160
    %1431 = vmatprep.subr.bf16.mxu0 %v1164
    %1432 = vmatpush1.bf16.msra.mxu0 %v1163
    %1433 = vmatprep.subr.bf16.mxu0 %v1167
    %1434 = vmatpush1.bf16.msra.mxu0 %v1166
    %1435 = vmatprep.subr.bf16.mxu0 %v1170
    %1436 = vmatpush1.bf16.msra.mxu0 %v1169
    %1437 = vmatprep.subr.bf16.mxu0 %v1173
    %1438 = vmatpush1.bf16.msra.mxu0 %v1172
    %1439 = vmatprep.subr.bf16.mxu0 %v1176
    %1440 = vmatpush1.bf16.msra.mxu0 %v1175
    %1441 = vmatprep.subr.bf16.mxu0 %v1179
    %1442 = vmatpush1.bf16.msra.mxu0 %v1178
    %1443 = vmatprep.mubr.bf16.mxu0 %v347
    %1444 = vmatmul.mubr.bf16.gmra.mrb[0].mxu0 %v346
    %v1445 = vpop.f32.mrb[0].mxu0
    %v1446 = vadd.f32 %v1403, %v1445
    %v1447 = vpop.f32.mrb[0].mxu0
    %v1448 = vadd.f32 %v1405, %v1447
    %v1449 = vpop.f32.mrb[0].mxu0
    %v1450 = vadd.f32 %v1407, %v1449
    %v1451 = vpop.f32.mrb[0].mxu0
    %v1452 = vadd.f32 %v1409, %v1451
    %1453 = vdwg.mxu0
    %1454 = vmatprep.subr.bf16.mxu0 0
    %1455 = vmatpush1.bf16.msra.mxu0 %v1039
    %1456 = vmatprep.subr.bf16.mxu0 0
    %1457 = vmatpush1.bf16.msra.mxu0 %v1042
    %1458 = vmatprep.subr.bf16.mxu0 0
    %1459 = vmatpush1.bf16.msra.mxu0 %v1045
    %1460 = vmatprep.subr.bf16.mxu0 0
    %1461 = vmatpush1.bf16.msra.mxu0 %v1048
    %1462 = vmatprep.subr.bf16.mxu0 0
    %1463 = vmatpush1.bf16.msra.mxu0 %v1051
    %1464 = vmatprep.subr.bf16.mxu0 0
    %1465 = vmatpush1.bf16.msra.mxu0 %v1054
    %1466 = vmatprep.subr.bf16.mxu0 0
    %1467 = vmatpush1.bf16.msra.mxu0 %v1057
    %1468 = vmatprep.subr.bf16.mxu0 0
    %1469 = vmatpush1.bf16.msra.mxu0 %v1060
    %1470 = vmatprep.subr.bf16.mxu0 0
    %1471 = vmatpush1.bf16.msra.mxu0 %v1063
    %1472 = vmatprep.subr.bf16.mxu0 0
    %1473 = vmatpush1.bf16.msra.mxu0 %v1066
    %1474 = vmatprep.subr.bf16.mxu0 0
    %1475 = vmatpush1.bf16.msra.mxu0 %v1069
    %1476 = vmatprep.subr.bf16.mxu0 0
    %1477 = vmatpush1.bf16.msra.mxu0 %v1072
    %1478 = vmatprep.subr.bf16.mxu0 0
    %1479 = vmatpush1.bf16.msra.mxu0 %v1075
    %1480 = vmatprep.subr.bf16.mxu0 0
    %1481 = vmatpush1.bf16.msra.mxu0 %v1078
    %1482 = vmatprep.subr.bf16.mxu0 0
    %1483 = vmatpush1.bf16.msra.mxu0 %v1081
    %1484 = vmatprep.subr.bf16.mxu0 0
    %1485 = vmatpush1.bf16.msra.mxu0 %v1084
    %1486 = vmatprep.mubr.bf16.mxu0 %v343
    %1487 = vmatmul.mubr.bf16.gmra.mrb[0].mxu0 %v342
    %v1488 = vpop.f32.mrb[0].mxu0
    %v1489 = vadd.f32 %v553, %v1488
    %v1490 = vpop.f32.mrb[0].mxu0
    %v1491 = vpop.f32.mrb[0].mxu0
    %v1492 = vadd.f32 %v553, %v1491
    %v1493 = vpop.f32.mrb[0].mxu0
    %1494 = vdwg.mxu0
    %1495 = vmatprep.subr.bf16.mxu0 0
    %1496 = vmatpush1.bf16.msra.mxu0 %v1087
    %1497 = vmatprep.subr.bf16.mxu0 0
    %1498 = vmatpush1.bf16.msra.mxu0 %v1090
    %1499 = vmatprep.subr.bf16.mxu0 0
    %1500 = vmatpush1.bf16.msra.mxu0 %v1093
    %1501 = vmatprep.subr.bf16.mxu0 0
    %1502 = vmatpush1.bf16.msra.mxu0 %v1096
    %1503 = vmatprep.subr.bf16.mxu0 0
    %1504 = vmatpush1.bf16.msra.mxu0 %v1099
    %1505 = vmatprep.subr.bf16.mxu0 0
    %1506 = vmatpush1.bf16.msra.mxu0 %v1102
    %1507 = vmatprep.subr.bf16.mxu0 0
    %1508 = vmatpush1.bf16.msra.mxu0 %v1105
    %1509 = vmatprep.subr.bf16.mxu0 0
    %1510 = vmatpush1.bf16.msra.mxu0 %v1108
    %1511 = vmatprep.subr.bf16.mxu0 0
    %1512 = vmatpush1.bf16.msra.mxu0 %v1111
    %1513 = vmatprep.subr.bf16.mxu0 0
    %1514 = vmatpush1.bf16.msra.mxu0 %v1114
    %1515 = vmatprep.subr.bf16.mxu0 0
    %1516 = vmatpush1.bf16.msra.mxu0 %v1117
    %1517 = vmatprep.subr.bf16.mxu0 0
    %1518 = vmatpush1.bf16.msra.mxu0 %v1120
    %1519 = vmatprep.subr.bf16.mxu0 0
    %1520 = vmatpush1.bf16.msra.mxu0 %v1123
    %1521 = vmatprep.subr.bf16.mxu0 0
    %1522 = vmatpush1.bf16.msra.mxu0 %v1126
    %1523 = vmatprep.subr.bf16.mxu0 0
    %1524 = vmatpush1.bf16.msra.mxu0 %v1129
    %1525 = vmatprep.subr.bf16.mxu0 0
    %1526 = vmatpush1.bf16.msra.mxu0 %v1132
    %1527 = vmatprep.mubr.bf16.mxu0 %v345
    %1528 = vmatmul.mubr.bf16.gmra.mrb[0].mxu0 %v344
    %v1529 = vpop.f32.mrb[0].mxu0
    %v1530 = vadd.f32 %v1489, %v1529
    %v1531 = vpop.f32.mrb[0].mxu0
    %v1532 = vpop.f32.mrb[0].mxu0
    %v1533 = vadd.f32 %v1492, %v1532
    %v1534 = vpop.f32.mrb[0].mxu0
    %1535 = vdwg.mxu0
    %1536 = vmatprep.subr.bf16.mxu0 0
    %1537 = vmatpush1.bf16.msra.mxu0 %v1135
    %1538 = vmatprep.subr.bf16.mxu0 0
    %1539 = vmatpush1.bf16.msra.mxu0 %v1138
    %1540 = vmatprep.subr.bf16.mxu0 0
    %1541 = vmatpush1.bf16.msra.mxu0 %v1141
    %1542 = vmatprep.subr.bf16.mxu0 0
    %1543 = vmatpush1.bf16.msra.mxu0 %v1144
    %1544 = vmatprep.subr.bf16.mxu0 0
    %1545 = vmatpush1.bf16.msra.mxu0 %v1147
    %1546 = vmatprep.subr.bf16.mxu0 0
    %1547 = vmatpush1.bf16.msra.mxu0 %v1150
    %1548 = vmatprep.subr.bf16.mxu0 0
    %1549 = vmatpush1.bf16.msra.mxu0 %v1153
    %1550 = vmatprep.subr.bf16.mxu0 0
    %1551 = vmatpush1.bf16.msra.mxu0 %v1156
    %1552 = vmatprep.subr.bf16.mxu0 0
    %1553 = vmatpush1.bf16.msra.mxu0 %v1159
    %1554 = vmatprep.subr.bf16.mxu0 0
    %1555 = vmatpush1.bf16.msra.mxu0 %v1162
    %1556 = vmatprep.subr.bf16.mxu0 0
    %1557 = vmatpush1.bf16.msra.mxu0 %v1165
    %1558 = vmatprep.subr.bf16.mxu0 0
    %1559 = vmatpush1.bf16.msra.mxu0 %v1168
    %1560 = vmatprep.subr.bf16.mxu0 0
    %1561 = vmatpush1.bf16.msra.mxu0 %v1171
    %1562 = vmatprep.subr.bf16.mxu0 0
    %1563 = vmatpush1.bf16.msra.mxu0 %v1174
    %1564 = vmatprep.subr.bf16.mxu0 0
    %1565 = vmatpush1.bf16.msra.mxu0 %v1177
    %1566 = vmatprep.subr.bf16.mxu0 0
    %1567 = vmatpush1.bf16.msra.mxu0 %v1180
    %1568 = vmatprep.mubr.bf16.mxu0 %v347
    %1569 = vmatmul.mubr.bf16.gmra.mrb[0].mxu0 %v346
    %v1570 = vpop.f32.mrb[0].mxu0
    %v1571 = vadd.f32 %v1530, %v1570
    %v1572 = vpop.f32.mrb[0].mxu0
    %v1573 = vpop.f32.mrb[0].mxu0
    %v1574 = vadd.f32 %v1533, %v1573
    %v1575 = vpop.f32.mrb[0].mxu0
    %1576 = vdwg.mxu0
    %v1577 = vmax.f32 %v1446, 0.0
    %v1578 = vmax.f32 %v1448, 0.0
    %v1579 = vmax.f32 %v1571, 0.0
    %v1580 = vmax.f32 %v1450, 0.0
    %v1581 = vmax.f32 %v1452, 0.0
    %v1582 = vmax.f32 %v1574, 0.0
    %v1586 = vrot.slane %v1577, 1
    %v1587 = vrot.slane %v1578, 1
    %v1588 = vrot.slane %v1579, 1
    %v1592 = vmax.f32 %v1577, %v1586
    %v1593 = vmax.f32 %v1578, %v1587
    %v1594 = vmax.f32 %v1579, %v1588
    %1595 = vrot.lane.b32.xlu0 %v1592, 96
    %v1596 = vpop.permute.xlu0 %1595
    %1597 = vrot.lane.b32.xlu0 %v1593, 96
    %v1598 = vpop.permute.xlu0 %1597
    %1599 = vrot.lane.b32.xlu0 %v1594, 96
    %v1600 = vpop.permute.xlu0 %1599
    %v1601 = vlaneseq
    %v1602 = vand.u32 %v1601, 127
    %vm1603 = vcmp.lt.s32.totalorder %v1602, 96
    %v1604 = vsel %vm1603, %v1598, %v1600
    %v1605 = vsel %vm1603, %v1596, %v1598
    %v1606 = vsel %vm1603, %v1600, %v1596
    %v1607 = vmax.f32 %v1592, %v1605
    %v1608 = vmax.f32 %v1593, %v1604
    %v1609 = vmax.f32 %v1594, %v1606
    %v1613 = vcombine.low %v1607, %v1608
    %v1615 = vunpack.c.l.s4 1966171168
    %v1616 = vunpack.c.0.s8 %v1615
    %v1617 = vlaneseq
    %v1618 = vshrl.u32 %v1617, 7
    %v1619 = vsub.s32 %v1616, %v1618
    %v1620 = vrot.slane %v1613, %v1619
    %v1622 = vunpack.c.l.s4 1966171168
    %v1623 = vunpack.c.0.s8 %v1622
    %v1624 = vlaneseq
    %v1625 = vshrl.u32 %v1624, 7
    %v1626 = vsub.s32 %v1623, %v1625
    %v1627 = vrot.slane %v1609, %v1626
    %v1628 = vcombine.low %v1620, %v1627
    %v1630 = vunpack.c.l.s4 1966171168
    %v1631 = vunpack.c.0.s8 %v1630
    %v1632 = vlaneseq
    %v1633 = vshrl.u32 %v1632, 7
    %v1634 = vsub.s32 %v1631, %v1633
    %v1635 = vrot.slane %v1628, %v1634
    %v1637 = vlaneseq
    %vm1638 = vcmp.ge.s32.totalorder %v1637, 0
    %vm1639 = vcmp.lt.s32.totalorder %v1637, 384
    %vm1640 = vmand %vm1638, %vm1639
    %1641 = vst.msk [vmem:[#allocation2] sm:$0x7] %vm1640, %v1635
    %v1645 = vrot.slane %v1592, 2
    %v1646 = vrot.slane %v1593, 2
    %v1647 = vrot.slane %v1594, 2
    %1651 = vrot.lane.b32.xlu0 %v1645, 96
    %v1652 = vpop.permute.xlu0 %1651
    %1653 = vrot.lane.b32.xlu0 %v1646, 96
    %v1654 = vpop.permute.xlu0 %1653
    %1655 = vrot.lane.b32.xlu0 %v1647, 96
    %v1656 = vpop.permute.xlu0 %1655
    %v1657 = vsel %vm1603, %v1654, %v1656
    %v1658 = vsel %vm1603, %v1652, %v1654
    %v1659 = vsel %vm1603, %v1656, %v1652
    %v1663 = vrot.slane %v1658, 6
    %v1664 = vrot.slane %v1657, 6
    %v1665 = vrot.slane %v1659, 6
    %v1669 = vmax.f32 %v1592, %v1663
    %v1670 = vmax.f32 %v1593, %v1664
    %v1671 = vmax.f32 %v1594, %v1665
    %v1675 = vcombine.low %v1669, %v1670
    %v1677 = vunpack.c.l.s4 1966171168
    %v1678 = vunpack.c.0.s8 %v1677
    %v1679 = vlaneseq
    %v1680 = vshrl.u32 %v1679, 7
    %v1681 = vsub.s32 %v1678, %v1680
    %v1682 = vrot.slane %v1675, %v1681
    %v1684 = vunpack.c.l.s4 1966171168
    %v1685 = vunpack.c.0.s8 %v1684
    %v1686 = vlaneseq
    %v1687 = vshrl.u32 %v1686, 7
    %v1688 = vsub.s32 %v1685, %v1687
    %v1689 = vrot.slane %v1671, %v1688
    %v1690 = vcombine.low %v1682, %v1689
    %v1692 = vunpack.c.l.s4 1966171168
    %v1693 = vunpack.c.0.s8 %v1692
    %v1694 = vlaneseq
    %v1695 = vshrl.u32 %v1694, 7
    %v1696 = vsub.s32 %v1693, %v1695
    %v1697 = vrot.slane %v1690, %v1696
    %v1698 = vcombine.high %v1697, %v1697
    %1700 = vst.msk [vmem:[#allocation2 + $0x3] sm:$0x7] %vm1640, %v1698
    %v1701 = vrot.slane %v1592, 4
    %v1702 = vrot.slane %v1593, 4
    %v1703 = vrot.slane %v1594, 4
    %1707 = vrot.lane.b32.xlu0 %v1701, 96
    %v1708 = vpop.permute.xlu0 %1707
    %1709 = vrot.lane.b32.xlu0 %v1702, 96
    %v1710 = vpop.permute.xlu0 %1709
    %1711 = vrot.lane.b32.xlu0 %v1703, 96
    %v1712 = vpop.permute.xlu0 %1711
    %v1713 = vsel %vm1603, %v1710, %v1712
    %v1714 = vsel %vm1603, %v1708, %v1710
    %v1715 = vsel %vm1603, %v1712, %v1708
    %v1719 = vrot.slane %v1714, 4
    %v1720 = vrot.slane %v1713, 4
    %v1721 = vrot.slane %v1715, 4
    %v1725 = vmax.f32 %v1592, %v1719
    %v1726 = vmax.f32 %v1593, %v1720
    %v1727 = vmax.f32 %v1594, %v1721
    %v1731 = vcombine.high %v1725, %v1726
    %v1732 = vcombine.high %v1727, %v1727
    %v1734 = vunpack.c.l.s4 1966171168
    %v1735 = vunpack.c.0.s8 %v1734
    %v1736 = vlaneseq
    %v1737 = vshrl.u32 %v1736, 7
    %v1738 = vsub.s32 %v1735, %v1737
    %v1739 = vrot.slane %v1731, %v1738
    %v1741 = vunpack.c.l.s4 1966171168
    %v1742 = vunpack.c.0.s8 %v1741
    %v1743 = vlaneseq
    %v1744 = vshrl.u32 %v1743, 7
    %v1745 = vsub.s32 %v1742, %v1744
    %v1746 = vrot.slane %v1732, %v1745
    %v1747 = vcombine.low %v1739, %v1746
    %v1749 = vunpack.c.l.s4 1966171168
    %v1750 = vunpack.c.0.s8 %v1749
    %v1751 = vlaneseq
    %v1752 = vshrl.u32 %v1751, 7
    %v1753 = vsub.s32 %v1750, %v1752
    %v1754 = vrot.slane %v1747, %v1753
    %1756 = vst.msk [vmem:[#allocation2 + $0x6] sm:$0x7] %vm1640, %v1754
    %v1757 = vrot.slane %v1592, 6
    %v1758 = vrot.slane %v1593, 6
    %v1759 = vrot.slane %v1594, 6
    %1763 = vrot.lane.b32.xlu0 %v1757, 96
    %v1764 = vpop.permute.xlu0 %1763
    %1765 = vrot.lane.b32.xlu0 %v1758, 96
    %v1766 = vpop.permute.xlu0 %1765
    %1767 = vrot.lane.b32.xlu0 %v1759, 96
    %v1768 = vpop.permute.xlu0 %1767
    %v1769 = vsel %vm1603, %v1766, %v1768
    %v1770 = vsel %vm1603, %v1764, %v1766
    %v1771 = vsel %vm1603, %v1768, %v1764
    %v1775 = vrot.slane %v1770, 2
    %v1776 = vrot.slane %v1769, 2
    %v1777 = vrot.slane %v1771, 2
    %v1781 = vmax.f32 %v1592, %v1775
    %v1782 = vmax.f32 %v1593, %v1776
    %v1783 = vmax.f32 %v1594, %v1777
    %v1787 = vcombine.high %v1781, %v1782
    %v1788 = vcombine.high %v1783, %v1783
    %v1790 = vunpack.c.l.s4 1966171168
    %v1791 = vunpack.c.0.s8 %v1790
    %v1792 = vlaneseq
    %v1793 = vshrl.u32 %v1792, 7
    %v1794 = vsub.s32 %v1791, %v1793
    %v1795 = vrot.slane %v1787, %v1794
    %v1797 = vunpack.c.l.s4 1966171168
    %v1798 = vunpack.c.0.s8 %v1797
    %v1799 = vlaneseq
    %v1800 = vshrl.u32 %v1799, 7
    %v1801 = vsub.s32 %v1798, %v1800
    %v1802 = vrot.slane %v1788, %v1801
    %v1803 = vcombine.low %v1795, %v1802
    %v1805 = vunpack.c.l.s4 1966171168
    %v1806 = vunpack.c.0.s8 %v1805
    %v1807 = vlaneseq
    %v1808 = vshrl.u32 %v1807, 7
    %v1809 = vsub.s32 %v1806, %v1808
    %v1810 = vrot.slane %v1803, %v1809
    %v1811 = vcombine.high %v1810, %v1810
    %1813 = vst.msk [vmem:[#allocation2 + $0x9] sm:$0x7] %vm1640, %v1811
    %v1817 = vrot.slane %v1580, 1
    %v1818 = vrot.slane %v1581, 1
    %v1819 = vrot.slane %v1582, 1
    %v1823 = vmax.f32 %v1580, %v1817
    %v1824 = vmax.f32 %v1581, %v1818
    %v1825 = vmax.f32 %v1582, %v1819
    %1826 = vrot.lane.b32.xlu0 %v1823, 96
    %v1827 = vpop.permute.xlu0 %1826
    %1828 = vrot.lane.b32.xlu0 %v1824, 96
    %v1829 = vpop.permute.xlu0 %1828
    %1830 = vrot.lane.b32.xlu0 %v1825, 96
    %v1831 = vpop.permute.xlu0 %1830
    %v1832 = vsel %vm1603, %v1829, %v1831
    %v1833 = vsel %vm1603, %v1827, %v1829
    %v1834 = vsel %vm1603, %v1831, %v1827
    %v1835 = vmax.f32 %v1823, %v1833
    %v1836 = vmax.f32 %v1824, %v1832
    %v1837 = vmax.f32 %v1825, %v1834
    %v1841 = vcombine.low %v1835, %v1836
    %v1843 = vunpack.c.l.s4 1966171168
    %v1844 = vunpack.c.0.s8 %v1843
    %v1845 = vlaneseq
    %v1846 = vshrl.u32 %v1845, 7
    %v1847 = vsub.s32 %v1844, %v1846
    %v1848 = vrot.slane %v1841, %v1847
    %v1850 = vunpack.c.l.s4 1966171168
    %v1851 = vunpack.c.0.s8 %v1850
    %v1852 = vlaneseq
    %v1853 = vshrl.u32 %v1852, 7
    %v1854 = vsub.s32 %v1851, %v1853
    %v1855 = vrot.slane %v1837, %v1854
    %v1856 = vcombine.low %v1848, %v1855
    %v1858 = vunpack.c.l.s4 1966171168
    %v1859 = vunpack.c.0.s8 %v1858
    %v1860 = vlaneseq
    %v1861 = vshrl.u32 %v1860, 7
    %v1862 = vsub.s32 %v1859, %v1861
    %v1863 = vrot.slane %v1856, %v1862
    %1865 = vst.msk [vmem:[#allocation2 + $0xc] sm:$0x7] %vm1640, %v1863
    %v1869 = vrot.slane %v1823, 2
    %v1870 = vrot.slane %v1824, 2
    %v1871 = vrot.slane %v1825, 2
    %1875 = vrot.lane.b32.xlu0 %v1869, 96
    %v1876 = vpop.permute.xlu0 %1875
    %1877 = vrot.lane.b32.xlu0 %v1870, 96
    %v1878 = vpop.permute.xlu0 %1877
    %1879 = vrot.lane.b32.xlu0 %v1871, 96
    %v1880 = vpop.permute.xlu0 %1879
    %v1881 = vsel %vm1603, %v1878, %v1880
    %v1882 = vsel %vm1603, %v1876, %v1878
    %v1883 = vsel %vm1603, %v1880, %v1876
    %v1887 = vrot.slane %v1882, 6
    %v1888 = vrot.slane %v1881, 6
    %v1889 = vrot.slane %v1883, 6
    %v1893 = vmax.f32 %v1823, %v1887
    %v1894 = vmax.f32 %v1824, %v1888
    %v1895 = vmax.f32 %v1825, %v1889
    %v1899 = vcombine.low %v1893, %v1894
    %v1901 = vunpack.c.l.s4 1966171168
    %v1902 = vunpack.c.0.s8 %v1901
    %v1903 = vlaneseq
    %v1904 = vshrl.u32 %v1903, 7
    %v1905 = vsub.s32 %v1902, %v1904
    %v1906 = vrot.slane %v1899, %v1905
    %v1908 = vunpack.c.l.s4 1966171168
    %v1909 = vunpack.c.0.s8 %v1908
    %v1910 = vlaneseq
    %v1911 = vshrl.u32 %v1910, 7
    %v1912 = vsub.s32 %v1909, %v1911
    %v1913 = vrot.slane %v1895, %v1912
    %v1914 = vcombine.low %v1906, %v1913
    %v1916 = vunpack.c.l.s4 1966171168
    %v1917 = vunpack.c.0.s8 %v1916
    %v1918 = vlaneseq
    %v1919 = vshrl.u32 %v1918, 7
    %v1920 = vsub.s32 %v1917, %v1919
    %v1921 = vrot.slane %v1914, %v1920
    %v1922 = vcombine.high %v1921, %v1921
    %1924 = vst.msk [vmem:[#allocation2 + $0xf] sm:$0x7] %vm1640, %v1922
    %s1925 = scalar_lea.vmem %s0, 16
    %v1926 = vld [vmem:[%s1925] sm:$0xff]
    %v1927 = vld [vmem:[%s1925 + $0x8] sm:$0x77]
    %v1928 = vld [vmem:[#allocation3] sm:$0xff]
    %v1929 = vld [vmem:[#allocation3 + $0x8] sm:$0xff]
    %v1930 = vld [vmem:[#allocation3 + $0x10] sm:$0xff]
    %v1931 = vld [vmem:[#allocation3 + $0x18] sm:$0xff]
    %v1932 = vld [vmem:[#allocation3 + $0x20] sm:$0xff]
    %v1933 = vld [vmem:[#allocation3 + $0x28] sm:$0xff]
    %v1934 = vld [vmem:[#allocation3 + $0x30] sm:$0xff]
    %v1935 = vld [vmem:[#allocation3 + $0x38] sm:$0xff]
    %v1936 = vld [vmem:[#allocation3 + $0x40] sm:$0xff]
    %v1937 = vld [vmem:[#allocation3 + $0x48] sm:$0xff]
    %v1938 = vld [vmem:[#allocation3 + $0x50] sm:$0xff]
    %v1939 = vld [vmem:[#allocation3 + $0x58] sm:$0xff]
    %v1940 = vld [vmem:[#allocation3 + $0x60] sm:$0xff]
    %v1941 = vld [vmem:[#allocation3 + $0x68] sm:$0xff]
    %v1942 = vld [vmem:[#allocation3 + $0x70] sm:$0xff]
    %v1943 = vld [vmem:[#allocation3 + $0x78] sm:$0xff]
    %v1944 = vld [vmem:[#allocation3 + $0x80] sm:$0xff]
    %v1945 = vld [vmem:[#allocation3 + $0x88] sm:$0xff]
    %v1946 = vld [vmem:[#allocation5] sm:$0x3]
    %v1948 = vlaneseq
    %v1949 = vshrl.u32 %v1948, 7
    %v1950 = vsub.s32 0, %v1949
    %v1951 = vrot.slane %v1946, %v1950
    %v1952 = vlaneseq
    %v1953 = vshrl.u32 %v1952, 7
    %v1954 = vsub.s32 1, %v1953
    %v1955 = vrot.slane %v1946, %v1954
    %v1960 = vunpack.c.l.b16 %v1926
    %v1961 = vunpack.c.h.b16 %v1926
    %v1962 = vunpack.c.l.b16 %v1927
    %v1963 = vunpack.c.h.b16 %v1927
    %v1964 = vpack.c.b16 %v1962, %v1960
    %v1965 = vpack.c.b16 %v1963, %v1961
    %v1985 = vunpack.c.l.b16 %v1928
    %v1986 = vunpack.c.h.b16 %v1928
    %v1987 = vunpack.c.l.b16 %v1929
    %v1988 = vunpack.c.h.b16 %v1929
    %v1989 = vunpack.c.l.b16 %v1930
    %v1990 = vunpack.c.h.b16 %v1930
    %v1991 = vunpack.c.l.b16 %v1931
    %v1992 = vunpack.c.h.b16 %v1931
    %v1993 = vunpack.c.l.b16 %v1932
    %v1994 = vunpack.c.h.b16 %v1932
    %v1995 = vunpack.c.l.b16 %v1933
    %v1996 = vunpack.c.h.b16 %v1933
    %v1997 = vunpack.c.l.b16 %v1934
    %v1998 = vunpack.c.h.b16 %v1934
    %v1999 = vunpack.c.l.b16 %v1935
    %v2000 = vunpack.c.h.b16 %v1935
    %v2001 = vunpack.c.l.b16 %v1936
    %v2002 = vunpack.c.h.b16 %v1936
    %v2003 = vunpack.c.l.b16 %v1937
    %v2004 = vunpack.c.h.b16 %v1937
    %v2005 = vunpack.c.l.b16 %v1938
    %v2006 = vunpack.c.h.b16 %v1938
    %v2007 = vunpack.c.l.b16 %v1939
    %v2008 = vunpack.c.h.b16 %v1939
    %v2009 = vunpack.c.l.b16 %v1940
    %v2010 = vunpack.c.h.b16 %v1940
    %v2011 = vunpack.c.l.b16 %v1941
    %v2012 = vunpack.c.h.b16 %v1941
    %v2013 = vunpack.c.l.b16 %v1942
    %v2014 = vunpack.c.h.b16 %v1942
    %v2015 = vunpack.c.l.b16 %v1943
    %v2016 = vunpack.c.h.b16 %v1943
    %v2017 = vunpack.c.l.b16 %v1944
    %v2018 = vunpack.c.h.b16 %v1944
    %v2019 = vunpack.c.l.b16 %v1945
    %v2020 = vunpack.c.h.b16 %v1945
    %v2021 = vpack.c.b16 %v1987, %v1985
    %v2022 = vpack.c.b16 %v1988, %v1986
    %v2023 = vpack.c.b16 %v1991, %v1989
    %v2024 = vpack.c.b16 %v1992, %v1990
    %v2025 = vpack.c.b16 %v1995, %v1993
    %v2026 = vpack.c.b16 %v1996, %v1994
    %v2027 = vpack.c.b16 %v1999, %v1997
    %v2028 = vpack.c.b16 %v2000, %v1998
    %v2029 = vpack.c.b16 %v2003, %v2001
    %v2030 = vpack.c.b16 %v2004, %v2002
    %v2031 = vpack.c.b16 %v2007, %v2005
    %v2032 = vpack.c.b16 %v2008, %v2006
    %v2033 = vpack.c.b16 %v2011, %v2009
    %v2034 = vpack.c.b16 %v2012, %v2010
    %v2035 = vpack.c.b16 %v2015, %v2013
    %v2036 = vpack.c.b16 %v2016, %v2014
    %v2037 = vpack.c.b16 %v2019, %v2017
    %v2038 = vpack.c.b16 %v2020, %v2018
    %v2058 = vsel %vm265, %v1965, 0
    %2060 = vmatprep.subr.bf16.mxu0 %v2022
    %2061 = vmatpush1.bf16.msra.mxu0 %v2021
    %2062 = vmatprep.subr.bf16.mxu0 %v2024
    %2063 = vmatpush1.bf16.msra.mxu0 %v2023
    %2064 = vmatprep.subr.bf16.mxu0 %v2026
    %2065 = vmatpush1.bf16.msra.mxu0 %v2025
    %2066 = vmatprep.subr.bf16.mxu0 %v2028
    %2067 = vmatpush1.bf16.msra.mxu0 %v2027
    %2068 = vmatprep.subr.bf16.mxu0 %v2030
    %2069 = vmatpush1.bf16.msra.mxu0 %v2029
    %2070 = vmatprep.subr.bf16.mxu0 %v2032
    %2071 = vmatpush1.bf16.msra.mxu0 %v2031
    %2072 = vmatprep.subr.bf16.mxu0 %v2034
    %2073 = vmatpush1.bf16.msra.mxu0 %v2033
    %2074 = vmatprep.subr.bf16.mxu0 %v2036
    %2075 = vmatpush1.bf16.msra.mxu0 %v2035
    %2076 = vmatprep.subr.bf16.mxu0 %v2038
    %2077 = vmatpush1.bf16.msra.mxu0 %v2037
    %2078 = vmatprep.subr.bf16.mxu0 0
    %2079 = vmatpush1.bf16.msra.mxu0 0
    %2080 = vmatprep.subr.bf16.mxu0 0
    %2081 = vmatpush1.bf16.msra.mxu0 0
    %2082 = vmatprep.subr.bf16.mxu0 0
    %2083 = vmatpush1.bf16.msra.mxu0 0
    %2084 = vmatprep.subr.bf16.mxu0 0
    %2085 = vmatpush1.bf16.msra.mxu0 0
    %2086 = vmatprep.subr.bf16.mxu0 0
    %2087 = vmatpush1.bf16.msra.mxu0 0
    %2088 = vmatprep.subr.bf16.mxu0 0
    %2089 = vmatpush1.bf16.msra.mxu0 0
    %2090 = vmatprep.subr.bf16.mxu0 0
    %2091 = vmatpush1.bf16.msra.mxu0 0
    %2092 = vmatprep.mubr.bf16.mxu0 %v2058
    %2093 = vmatmul.mubr.bf16.gmra.mrb[0].mxu0 %v1964
    %v2094 = vpop.f32.mrb[0].mxu0
    %v2095 = vadd.f32 %v1951, %v2094
    %v2096 = vpop.f32.mrb[0].mxu0
    %v2097 = vadd.f32 %v1955, %v2096
    %v2098 = vpop.f32.mrb[0].mxu0
    %v2099 = vadd.f32 %v1951, %v2098
    %v2100 = vpop.f32.mrb[0].mxu0
    %v2101 = vadd.f32 %v1955, %v2100
    %2102 = vdwg.mxu0
    %v2103 = vmax.f32 %v2095, 0.0
    %v2104 = vmax.f32 %v2097, 0.0
    %v2105 = vmax.f32 %v2099, 0.0
    %v2106 = vmax.f32 %v2101, 0.0
    %v2111 = vrot.slane %v2103, 1
    %v2112 = vrot.slane %v2105, 1
    %v2113 = vsel %vm320, %v2111, %v2112
    %v2114 = vrot.slane %v2104, 1
    %v2115 = vrot.slane %v2106, 1
    %v2116 = vsel %vm320, %v2114, %v2115
    %v2121 = vrot.slane %v2103, 2
    %v2122 = vrot.slane %v2105, 2
    %v2123 = vsel %vm331, %v2121, %v2122
    %v2124 = vrot.slane %v2104, 2
    %v2125 = vrot.slane %v2106, 2
    %v2126 = vsel %vm331, %v2124, %v2125
    %v2131 = vpack.c.bf16 %v2105, %v2103
    %v2132 = vpack.c.bf16 %v2106, %v2104
    %v2133 = vpack.c.bf16 %v2112, %v2113
    %v2134 = vpack.c.bf16 %v2115, %v2116
    %v2135 = vpack.c.bf16 %v2122, %v2123
    %v2136 = vpack.c.bf16 %v2125, %v2126
    %v2137 = vld [vmem:[#allocation7] sm:$0xff]
    %v2138 = vld [vmem:[#allocation7 + $0x8] sm:$0xf]
    %v2139 = vld [vmem:[#allocation7 + $0xc] sm:$0xff]
    %v2140 = vld [vmem:[#allocation7 + $0x14] sm:$0xf]
    %v2141 = vld [vmem:[#allocation7 + $0x18] sm:$0xff]
    %v2142 = vld [vmem:[#allocation7 + $0x20] sm:$0xf]
    %v2143 = vld [vmem:[#allocation7 + $0x24] sm:$0xff]
    %v2144 = vld [vmem:[#allocation7 + $0x2c] sm:$0xf]
    %v2145 = vld [vmem:[#allocation7 + $0x30] sm:$0xff]
    %v2146 = vld [vmem:[#allocation7 + $0x38] sm:$0xf]
    %v2147 = vld [vmem:[#allocation7 + $0x3c] sm:$0xff]
    %v2148 = vld [vmem:[#allocation7 + $0x44] sm:$0xf]
    %v2149 = vld [vmem:[#allocation7 + $0x48] sm:$0xff]
    %v2150 = vld [vmem:[#allocation7 + $0x50] sm:$0xf]
    %v2151 = vld [vmem:[#allocation7 + $0x54] sm:$0xff]
    %v2152 = vld [vmem:[#allocation7 + $0x5c] sm:$0xf]
    %v2153 = vld [vmem:[#allocation7 + $0x60] sm:$0xff]
    %v2154 = vld [vmem:[#allocation7 + $0x68] sm:$0xf]
    %v2155 = vld [vmem:[#allocation7 + $0x6c] sm:$0xff]
    %v2156 = vld [vmem:[#allocation7 + $0x74] sm:$0xf]
    %v2157 = vld [vmem:[#allocation7 + $0x78] sm:$0xff]
    %v2158 = vld [vmem:[#allocation7 + $0x80] sm:$0xf]
    %v2159 = vld [vmem:[#allocation7 + $0x84] sm:$0xff]
    %v2160 = vld [vmem:[#allocation7 + $0x8c] sm:$0xf]
    %v2161 = vld [vmem:[#allocation7 + $0x90] sm:$0xff]
    %v2162 = vld [vmem:[#allocation7 + $0x98] sm:$0xf]
    %v2163 = vld [vmem:[#allocation7 + $0x9c] sm:$0xff]
    %v2164 = vld [vmem:[#allocation7 + $0xa4] sm:$0xf]
    %v2165 = vld [vmem:[#allocation7 + $0xa8] sm:$0xff]
    %v2166 = vld [vmem:[#allocation7 + $0xb0] sm:$0xf]
    %v2167 = vld [vmem:[#allocation7 + $0xb4] sm:$0xff]
    %v2168 = vld [vmem:[#allocation7 + $0xbc] sm:$0xf]
    %v2169 = vld [vmem:[#allocation7 + $0xc0] sm:$0xff]
    %v2170 = vld [vmem:[#allocation7 + $0xc8] sm:$0xf]
    %v2171 = vld [vmem:[#allocation7 + $0xcc] sm:$0xff]
    %v2172 = vld [vmem:[#allocation7 + $0xd4] sm:$0xf]
    %v2173 = vld [vmem:[#allocation7 + $0xd8] sm:$0xff]
    %v2174 = vld [vmem:[#allocation7 + $0xe0] sm:$0xf]
    %v2175 = vld [vmem:[#allocation7 + $0xe4] sm:$0xff]
    %v2176 = vld [vmem:[#allocation7 + $0xec] sm:$0xf]
    %v2177 = vld [vmem:[#allocation7 + $0xf0] sm:$0xff]
    %v2178 = vld [vmem:[#allocation7 + $0xf8] sm:$0xf]
    %v2179 = vld [vmem:[#allocation7 + $0xfc] sm:$0xff]
    %v2180 = vld [vmem:[#allocation7 + $0x104] sm:$0xf]
    %v2181 = vld [vmem:[#allocation7 + $0x108] sm:$0xff]
    %v2182 = vld [vmem:[#allocation7 + $0x110] sm:$0xf]
    %v2183 = vld [vmem:[#allocation7 + $0x114] sm:$0xff]
    %v2184 = vld [vmem:[#allocation7 + $0x11c] sm:$0xf]
    %v2185 = vld [vmem:[#allocation7 + $0x120] sm:$0xff]
    %v2186 = vld [vmem:[#allocation7 + $0x128] sm:$0xf]
    %v2187 = vld [vmem:[#allocation7 + $0x12c] sm:$0xff]
    %v2188 = vld [vmem:[#allocation7 + $0x134] sm:$0xf]
    %v2189 = vld [vmem:[#allocation7 + $0x138] sm:$0xff]
    %v2190 = vld [vmem:[#allocation7 + $0x140] sm:$0xf]
    %v2191 = vld [vmem:[#allocation7 + $0x144] sm:$0xff]
    %v2192 = vld [vmem:[#allocation7 + $0x14c] sm:$0xf]
    %v2193 = vld [vmem:[#allocation7 + $0x150] sm:$0xff]
    %v2194 = vld [vmem:[#allocation7 + $0x158] sm:$0xf]
    %v2195 = vld [vmem:[#allocation7 + $0x15c] sm:$0xff]
    %v2196 = vld [vmem:[#allocation7 + $0x164] sm:$0xf]
    %v2197 = vld [vmem:[#allocation7 + $0x168] sm:$0xff]
    %v2198 = vld [vmem:[#allocation7 + $0x170] sm:$0xf]
    %v2199 = vld [vmem:[#allocation7 + $0x174] sm:$0xff]
    %v2200 = vld [vmem:[#allocation7 + $0x17c] sm:$0xf]
    %v2201 = vld [vmem:[#allocation7 + $0x180] sm:$0xff]
    %v2202 = vld [vmem:[#allocation7 + $0x188] sm:$0xf]
    %v2203 = vld [vmem:[#allocation7 + $0x18c] sm:$0xff]
    %v2204 = vld [vmem:[#allocation7 + $0x194] sm:$0xf]
    %v2205 = vld [vmem:[#allocation7 + $0x198] sm:$0xff]
    %v2206 = vld [vmem:[#allocation7 + $0x1a0] sm:$0xf]
    %v2207 = vld [vmem:[#allocation7 + $0x1a4] sm:$0xff]
    %v2208 = vld [vmem:[#allocation7 + $0x1ac] sm:$0xf]
    %v2209 = vld [vmem:[#allocation7 + $0x1b0] sm:$0xff]
    %v2210 = vld [vmem:[#allocation7 + $0x1b8] sm:$0xf]
    %v2211 = vld [vmem:[#allocation7 + $0x1bc] sm:$0xff]
    %v2212 = vld [vmem:[#allocation7 + $0x1c4] sm:$0xf]
    %v2213 = vld [vmem:[#allocation7 + $0x1c8] sm:$0xff]
    %v2214 = vld [vmem:[#allocation7 + $0x1d0] sm:$0xf]
    %v2215 = vld [vmem:[#allocation7 + $0x1d4] sm:$0xff]
    %v2216 = vld [vmem:[#allocation7 + $0x1dc] sm:$0xf]
    %v2217 = vld [vmem:[#allocation7 + $0x1e0] sm:$0xff]
    %v2218 = vld [vmem:[#allocation7 + $0x1e8] sm:$0xf]
    %v2219 = vld [vmem:[#allocation7 + $0x1ec] sm:$0xff]
    %v2220 = vld [vmem:[#allocation7 + $0x1f4] sm:$0xf]
    %v2221 = vld [vmem:[#allocation7 + $0x1f8] sm:$0xff]
    %v2222 = vld [vmem:[#allocation7 + $0x200] sm:$0xf]
    %v2223 = vld [vmem:[#allocation7 + $0x204] sm:$0xff]
    %v2224 = vld [vmem:[#allocation7 + $0x20c] sm:$0xf]
    %v2225 = vld [vmem:[#allocation7 + $0x210] sm:$0xff]
    %v2226 = vld [vmem:[#allocation7 + $0x218] sm:$0xf]
    %v2227 = vld [vmem:[#allocation7 + $0x21c] sm:$0xff]
    %v2228 = vld [vmem:[#allocation7 + $0x224] sm:$0xf]
    %v2229 = vld [vmem:[#allocation7 + $0x228] sm:$0xff]
    %v2230 = vld [vmem:[#allocation7 + $0x230] sm:$0xf]
    %v2231 = vld [vmem:[#allocation7 + $0x234] sm:$0xff]
    %v2232 = vld [vmem:[#allocation7 + $0x23c] sm:$0xf]
    %v2233 = vld [vmem:[#allocation7 + $0x240] sm:$0xff]
    %v2234 = vld [vmem:[#allocation7 + $0x248] sm:$0xf]
    %v2235 = vld [vmem:[#allocation7 + $0x24c] sm:$0xff]
    %v2236 = vld [vmem:[#allocation7 + $0x254] sm:$0xf]
    %v2237 = vld [vmem:[#allocation7 + $0x258] sm:$0xff]
    %v2238 = vld [vmem:[#allocation7 + $0x260] sm:$0xf]
    %v2239 = vld [vmem:[#allocation7 + $0x264] sm:$0xff]
    %v2240 = vld [vmem:[#allocation7 + $0x26c] sm:$0xf]
    %v2241 = vld [vmem:[#allocation7 + $0x270] sm:$0xff]
    %v2242 = vld [vmem:[#allocation7 + $0x278] sm:$0xf]
    %v2243 = vld [vmem:[#allocation7 + $0x27c] sm:$0xff]
    %v2244 = vld [vmem:[#allocation7 + $0x284] sm:$0xf]
    %v2245 = vld [vmem:[#allocation7 + $0x288] sm:$0xff]
    %v2246 = vld [vmem:[#allocation7 + $0x290] sm:$0xf]
    %v2247 = vld [vmem:[#allocation7 + $0x294] sm:$0xff]
    %v2248 = vld [vmem:[#allocation7 + $0x29c] sm:$0xf]
    %v2249 = vld [vmem:[#allocation7 + $0x2a0] sm:$0xff]
    %v2250 = vld [vmem:[#allocation7 + $0x2a8] sm:$0xf]
    %v2251 = vld [vmem:[#allocation7 + $0x2ac] sm:$0xff]
    %v2252 = vld [vmem:[#allocation7 + $0x2b4] sm:$0xf]
    %v2253 = vld [vmem:[#allocation7 + $0x2b8] sm:$0xff]
    %v2254 = vld [vmem:[#allocation7 + $0x2c0] sm:$0xf]
    %v2255 = vld [vmem:[#allocation7 + $0x2c4] sm:$0xff]
    %v2256 = vld [vmem:[#allocation7 + $0x2cc] sm:$0xf]
    %v2257 = vld [vmem:[#allocation7 + $0x2d0] sm:$0xff]
    %v2258 = vld [vmem:[#allocation7 + $0x2d8] sm:$0xf]
    %v2259 = vld [vmem:[#allocation7 + $0x2dc] sm:$0xff]
    %v2260 = vld [vmem:[#allocation7 + $0x2e4] sm:$0xf]
    %v2261 = vld [vmem:[#allocation7 + $0x2e8] sm:$0xff]
    %v2262 = vld [vmem:[#allocation7 + $0x2f0] sm:$0xf]
    %v2263 = vld [vmem:[#allocation7 + $0x2f4] sm:$0xff]
    %v2264 = vld [vmem:[#allocation7 + $0x2fc] sm:$0xf]
    %v2265 = vld [vmem:[#allocation7 + $0x300] sm:$0xff]
    %v2266 = vld [vmem:[#allocation7 + $0x308] sm:$0xf]
    %v2267 = vld [vmem:[#allocation7 + $0x30c] sm:$0xff]
    %v2268 = vld [vmem:[#allocation7 + $0x314] sm:$0xf]
    %v2269 = vld [vmem:[#allocation7 + $0x318] sm:$0xff]
    %v2270 = vld [vmem:[#allocation7 + $0x320] sm:$0xf]
    %v2271 = vld [vmem:[#allocation7 + $0x324] sm:$0xff]
    %v2272 = vld [vmem:[#allocation7 + $0x32c] sm:$0xf]
    %v2273 = vld [vmem:[#allocation7 + $0x330] sm:$0xff]
    %v2274 = vld [vmem:[#allocation7 + $0x338] sm:$0xf]
    %v2275 = vld [vmem:[#allocation7 + $0x33c] sm:$0xff]
    %v2276 = vld [vmem:[#allocation7 + $0x344] sm:$0xf]
    %v2277 = vld [vmem:[#allocation7 + $0x348] sm:$0xff]
    %v2278 = vld [vmem:[#allocation7 + $0x350] sm:$0xf]
    %v2279 = vld [vmem:[#allocation7 + $0x354] sm:$0xff]
    %v2280 = vld [vmem:[#allocation7 + $0x35c] sm:$0xf]
    %v2281 = vld [vmem:[#allocation7 + $0x360] sm:$0xff]
    %v2282 = vld [vmem:[#allocation7 + $0x368] sm:$0xf]
    %v2283 = vld [vmem:[#allocation7 + $0x36c] sm:$0xff]
    %v2284 = vld [vmem:[#allocation7 + $0x374] sm:$0xf]
    %v2285 = vld [vmem:[#allocation7 + $0x378] sm:$0xff]
    %v2286 = vld [vmem:[#allocation7 + $0x380] sm:$0xf]
    %v2287 = vld [vmem:[#allocation7 + $0x384] sm:$0xff]
    %v2288 = vld [vmem:[#allocation7 + $0x38c] sm:$0xf]
    %v2289 = vld [vmem:[#allocation7 + $0x390] sm:$0xff]
    %v2290 = vld [vmem:[#allocation7 + $0x398] sm:$0xf]
    %v2291 = vld [vmem:[#allocation7 + $0x39c] sm:$0xff]
    %v2292 = vld [vmem:[#allocation7 + $0x3a4] sm:$0xf]
    %v2293 = vld [vmem:[#allocation7 + $0x3a8] sm:$0xff]
    %v2294 = vld [vmem:[#allocation7 + $0x3b0] sm:$0xf]
    %v2295 = vld [vmem:[#allocation7 + $0x3b4] sm:$0xff]
    %v2296 = vld [vmem:[#allocation7 + $0x3bc] sm:$0xf]
    %v2297 = vld [vmem:[#allocation7 + $0x3c0] sm:$0xff]
    %v2298 = vld [vmem:[#allocation7 + $0x3c8] sm:$0xf]
    %v2299 = vld [vmem:[#allocation7 + $0x3cc] sm:$0xff]
    %v2300 = vld [vmem:[#allocation7 + $0x3d4] sm:$0xf]
    %v2301 = vld [vmem:[#allocation7 + $0x3d8] sm:$0xff]
    %v2302 = vld [vmem:[#allocation7 + $0x3e0] sm:$0xf]
    %v2303 = vld [vmem:[#allocation7 + $0x3e4] sm:$0xff]
    %v2304 = vld [vmem:[#allocation7 + $0x3ec] sm:$0xf]
    %v2305 = vld [vmem:[#allocation7 + $0x3f0] sm:$0xff]
    %v2306 = vld [vmem:[#allocation7 + $0x3f8] sm:$0xf]
    %v2307 = vld [vmem:[#allocation7 + $0x3fc] sm:$0xff]
    %v2308 = vld [vmem:[#allocation7 + $0x404] sm:$0xf]
    %v2309 = vld [vmem:[#allocation7 + $0x408] sm:$0xff]
    %v2310 = vld [vmem:[#allocation7 + $0x410] sm:$0xf]
    %v2311 = vld [vmem:[#allocation7 + $0x414] sm:$0xff]
    %v2312 = vld [vmem:[#allocation7 + $0x41c] sm:$0xf]
    %v2313 = vld [vmem:[#allocation7 + $0x420] sm:$0xff]
    %v2314 = vld [vmem:[#allocation7 + $0x428] sm:$0xf]
    %v2315 = vld [vmem:[#allocation7 + $0x42c] sm:$0xff]
    %v2316 = vld [vmem:[#allocation7 + $0x434] sm:$0xf]
    %v2317 = vld [vmem:[#allocation7 + $0x438] sm:$0xff]
    %v2318 = vld [vmem:[#allocation7 + $0x440] sm:$0xf]
    %v2319 = vld [vmem:[#allocation7 + $0x444] sm:$0xff]
    %v2320 = vld [vmem:[#allocation7 + $0x44c] sm:$0xf]
    %v2321 = vld [vmem:[#allocation7 + $0x450] sm:$0xff]
    %v2322 = vld [vmem:[#allocation7 + $0x458] sm:$0xf]
    %v2323 = vld [vmem:[#allocation7 + $0x45c] sm:$0xff]
    %v2324 = vld [vmem:[#allocation7 + $0x464] sm:$0xf]
    %v2325 = vld [vmem:[#allocation7 + $0x468] sm:$0xff]
    %v2326 = vld [vmem:[#allocation7 + $0x470] sm:$0xf]
    %v2327 = vld [vmem:[#allocation7 + $0x474] sm:$0xff]
    %v2328 = vld [vmem:[#allocation7 + $0x47c] sm:$0xf]
    %v2329 = vld [vmem:[#allocation8] sm:$0x7]
    %v2331 = vlaneseq
    %v2332 = vshrl.u32 %v2331, 7
    %v2333 = vsub.s32 0, %v2332
    %v2334 = vrot.slane %v2329, %v2333
    %v2335 = vlaneseq
    %v2336 = vshrl.u32 %v2335, 7
    %v2337 = vsub.s32 1, %v2336
    %v2338 = vrot.slane %v2329, %v2337
    %v2339 = vlaneseq
    %v2340 = vshrl.u32 %v2339, 7
    %v2341 = vsub.s32 2, %v2340
    %v2342 = vrot.slane %v2329, %v2341
    %v2538 = vunpack.c.l.b16 %v2137
    %v2539 = vunpack.c.h.b16 %v2137
    %v2540 = vunpack.c.l.b16 %v2138
    %v2541 = vunpack.c.l.b16 %v2139
    %v2542 = vunpack.c.h.b16 %v2139
    %v2543 = vunpack.c.l.b16 %v2140
    %v2544 = vunpack.c.l.b16 %v2141
    %v2545 = vunpack.c.h.b16 %v2141
    %v2546 = vunpack.c.l.b16 %v2142
    %v2547 = vunpack.c.l.b16 %v2143
    %v2548 = vunpack.c.h.b16 %v2143
    %v2549 = vunpack.c.l.b16 %v2144
    %v2550 = vunpack.c.l.b16 %v2145
    %v2551 = vunpack.c.h.b16 %v2145
    %v2552 = vunpack.c.l.b16 %v2146
    %v2553 = vunpack.c.l.b16 %v2147
    %v2554 = vunpack.c.h.b16 %v2147
    %v2555 = vunpack.c.l.b16 %v2148
    %v2556 = vunpack.c.l.b16 %v2149
    %v2557 = vunpack.c.h.b16 %v2149
    %v2558 = vunpack.c.l.b16 %v2150
    %v2559 = vunpack.c.l.b16 %v2151
    %v2560 = vunpack.c.h.b16 %v2151
    %v2561 = vunpack.c.l.b16 %v2152
    %v2562 = vunpack.c.l.b16 %v2153
    %v2563 = vunpack.c.h.b16 %v2153
    %v2564 = vunpack.c.l.b16 %v2154
    %v2565 = vunpack.c.l.b16 %v2155
    %v2566 = vunpack.c.h.b16 %v2155
    %v2567 = vunpack.c.l.b16 %v2156
    %v2568 = vunpack.c.l.b16 %v2157
    %v2569 = vunpack.c.h.b16 %v2157
    %v2570 = vunpack.c.l.b16 %v2158
    %v2571 = vunpack.c.l.b16 %v2159
    %v2572 = vunpack.c.h.b16 %v2159
    %v2573 = vunpack.c.l.b16 %v2160
    %v2574 = vunpack.c.l.b16 %v2161
    %v2575 = vunpack.c.h.b16 %v2161
    %v2576 = vunpack.c.l.b16 %v2162
    %v2577 = vunpack.c.l.b16 %v2163
    %v2578 = vunpack.c.h.b16 %v2163
    %v2579 = vunpack.c.l.b16 %v2164
    %v2580 = vunpack.c.l.b16 %v2165
    %v2581 = vunpack.c.h.b16 %v2165
    %v2582 = vunpack.c.l.b16 %v2166
    %v2583 = vunpack.c.l.b16 %v2167
    %v2584 = vunpack.c.h.b16 %v2167
    %v2585 = vunpack.c.l.b16 %v2168
    %v2586 = vunpack.c.l.b16 %v2169
    %v2587 = vunpack.c.h.b16 %v2169
    %v2588 = vunpack.c.l.b16 %v2170
    %v2589 = vunpack.c.l.b16 %v2171
    %v2590 = vunpack.c.h.b16 %v2171
    %v2591 = vunpack.c.l.b16 %v2172
    %v2592 = vunpack.c.l.b16 %v2173
    %v2593 = vunpack.c.h.b16 %v2173
    %v2594 = vunpack.c.l.b16 %v2174
    %v2595 = vunpack.c.l.b16 %v2175
    %v2596 = vunpack.c.h.b16 %v2175
    %v2597 = vunpack.c.l.b16 %v2176
    %v2598 = vunpack.c.l.b16 %v2177
    %v2599 = vunpack.c.h.b16 %v2177
    %v2600 = vunpack.c.l.b16 %v2178
    %v2601 = vunpack.c.l.b16 %v2179
    %v2602 = vunpack.c.h.b16 %v2179
    %v2603 = vunpack.c.l.b16 %v2180
    %v2604 = vunpack.c.l.b16 %v2181
    %v2605 = vunpack.c.h.b16 %v2181
    %v2606 = vunpack.c.l.b16 %v2182
    %v2607 = vunpack.c.l.b16 %v2183
    %v2608 = vunpack.c.h.b16 %v2183
    %v2609 = vunpack.c.l.b16 %v2184
    %v2610 = vunpack.c.l.b16 %v2185
    %v2611 = vunpack.c.h.b16 %v2185
    %v2612 = vunpack.c.l.b16 %v2186
    %v2613 = vunpack.c.l.b16 %v2187
    %v2614 = vunpack.c.h.b16 %v2187
    %v2615 = vunpack.c.l.b16 %v2188
    %v2616 = vunpack.c.l.b16 %v2189
    %v2617 = vunpack.c.h.b16 %v2189
    %v2618 = vunpack.c.l.b16 %v2190
    %v2619 = vunpack.c.l.b16 %v2191
    %v2620 = vunpack.c.h.b16 %v2191
    %v2621 = vunpack.c.l.b16 %v2192
    %v2622 = vunpack.c.l.b16 %v2193
    %v2623 = vunpack.c.h.b16 %v2193
    %v2624 = vunpack.c.l.b16 %v2194
    %v2625 = vunpack.c.l.b16 %v2195
    %v2626 = vunpack.c.h.b16 %v2195
    %v2627 = vunpack.c.l.b16 %v2196
    %v2628 = vunpack.c.l.b16 %v2197
    %v2629 = vunpack.c.h.b16 %v2197
    %v2630 = vunpack.c.l.b16 %v2198
    %v2631 = vunpack.c.l.b16 %v2199
    %v2632 = vunpack.c.h.b16 %v2199
    %v2633 = vunpack.c.l.b16 %v2200
    %v2634 = vunpack.c.l.b16 %v2201
    %v2635 = vunpack.c.h.b16 %v2201
    %v2636 = vunpack.c.l.b16 %v2202
    %v2637 = vunpack.c.l.b16 %v2203
    %v2638 = vunpack.c.h.b16 %v2203
    %v2639 = vunpack.c.l.b16 %v2204
    %v2640 = vunpack.c.l.b16 %v2205
    %v2641 = vunpack.c.h.b16 %v2205
    %v2642 = vunpack.c.l.b16 %v2206
    %v2643 = vunpack.c.l.b16 %v2207
    %v2644 = vunpack.c.h.b16 %v2207
    %v2645 = vunpack.c.l.b16 %v2208
    %v2646 = vunpack.c.l.b16 %v2209
    %v2647 = vunpack.c.h.b16 %v2209
    %v2648 = vunpack.c.l.b16 %v2210
    %v2649 = vunpack.c.l.b16 %v2211
    %v2650 = vunpack.c.h.b16 %v2211
    %v2651 = vunpack.c.l.b16 %v2212
    %v2652 = vunpack.c.l.b16 %v2213
    %v2653 = vunpack.c.h.b16 %v2213
    %v2654 = vunpack.c.l.b16 %v2214
    %v2655 = vunpack.c.l.b16 %v2215
    %v2656 = vunpack.c.h.b16 %v2215
    %v2657 = vunpack.c.l.b16 %v2216
    %v2658 = vunpack.c.l.b16 %v2217
    %v2659 = vunpack.c.h.b16 %v2217
    %v2660 = vunpack.c.l.b16 %v2218
    %v2661 = vunpack.c.l.b16 %v2219
    %v2662 = vunpack.c.h.b16 %v2219
    %v2663 = vunpack.c.l.b16 %v2220
    %v2664 = vunpack.c.l.b16 %v2221
    %v2665 = vunpack.c.h.b16 %v2221
    %v2666 = vunpack.c.l.b16 %v2222
    %v2667 = vunpack.c.l.b16 %v2223
    %v2668 = vunpack.c.h.b16 %v2223
    %v2669 = vunpack.c.l.b16 %v2224
    %v2670 = vunpack.c.l.b16 %v2225
    %v2671 = vunpack.c.h.b16 %v2225
    %v2672 = vunpack.c.l.b16 %v2226
    %v2673 = vunpack.c.l.b16 %v2227
    %v2674 = vunpack.c.h.b16 %v2227
    %v2675 = vunpack.c.l.b16 %v2228
    %v2676 = vunpack.c.l.b16 %v2229
    %v2677 = vunpack.c.h.b16 %v2229
    %v2678 = vunpack.c.l.b16 %v2230
    %v2679 = vunpack.c.l.b16 %v2231
    %v2680 = vunpack.c.h.b16 %v2231
    %v2681 = vunpack.c.l.b16 %v2232
    %v2682 = vunpack.c.l.b16 %v2233
    %v2683 = vunpack.c.h.b16 %v2233
    %v2684 = vunpack.c.l.b16 %v2234
    %v2685 = vunpack.c.l.b16 %v2235
    %v2686 = vunpack.c.h.b16 %v2235
    %v2687 = vunpack.c.l.b16 %v2236
    %v2688 = vunpack.c.l.b16 %v2237
    %v2689 = vunpack.c.h.b16 %v2237
    %v2690 = vunpack.c.l.b16 %v2238
    %v2691 = vunpack.c.l.b16 %v2239
    %v2692 = vunpack.c.h.b16 %v2239
    %v2693 = vunpack.c.l.b16 %v2240
    %v2694 = vunpack.c.l.b16 %v2241
    %v2695 = vunpack.c.h.b16 %v2241
    %v2696 = vunpack.c.l.b16 %v2242
    %v2697 = vunpack.c.l.b16 %v2243
    %v2698 = vunpack.c.h.b16 %v2243
    %v2699 = vunpack.c.l.b16 %v2244
    %v2700 = vunpack.c.l.b16 %v2245
    %v2701 = vunpack.c.h.b16 %v2245
    %v2702 = vunpack.c.l.b16 %v2246
    %v2703 = vunpack.c.l.b16 %v2247
    %v2704 = vunpack.c.h.b16 %v2247
    %v2705 = vunpack.c.l.b16 %v2248
    %v2706 = vunpack.c.l.b16 %v2249
    %v2707 = vunpack.c.h.b16 %v2249
    %v2708 = vunpack.c.l.b16 %v2250
    %v2709 = vunpack.c.l.b16 %v2251
    %v2710 = vunpack.c.h.b16 %v2251
    %v2711 = vunpack.c.l.b16 %v2252
    %v2712 = vunpack.c.l.b16 %v2253
    %v2713 = vunpack.c.h.b16 %v2253
    %v2714 = vunpack.c.l.b16 %v2254
    %v2715 = vunpack.c.l.b16 %v2255
    %v2716 = vunpack.c.h.b16 %v2255
    %v2717 = vunpack.c.l.b16 %v2256
    %v2718 = vunpack.c.l.b16 %v2257
    %v2719 = vunpack.c.h.b16 %v2257
    %v2720 = vunpack.c.l.b16 %v2258
    %v2721 = vunpack.c.l.b16 %v2259
    %v2722 = vunpack.c.h.b16 %v2259
    %v2723 = vunpack.c.l.b16 %v2260
    %v2724 = vunpack.c.l.b16 %v2261
    %v2725 = vunpack.c.h.b16 %v2261
    %v2726 = vunpack.c.l.b16 %v2262
    %v2727 = vunpack.c.l.b16 %v2263
    %v2728 = vunpack.c.h.b16 %v2263
    %v2729 = vunpack.c.l.b16 %v2264
    %v2730 = vunpack.c.l.b16 %v2265
    %v2731 = vunpack.c.h.b16 %v2265
    %v2732 = vunpack.c.l.b16 %v2266
    %v2733 = vunpack.c.l.b16 %v2267
    %v2734 = vunpack.c.h.b16 %v2267
    %v2735 = vunpack.c.l.b16 %v2268
    %v2736 = vunpack.c.l.b16 %v2269
    %v2737 = vunpack.c.h.b16 %v2269
    %v2738 = vunpack.c.l.b16 %v2270
    %v2739 = vunpack.c.l.b16 %v2271
    %v2740 = vunpack.c.h.b16 %v2271
    %v2741 = vunpack.c.l.b16 %v2272
    %v2742 = vunpack.c.l.b16 %v2273
    %v2743 = vunpack.c.h.b16 %v2273
    %v2744 = vunpack.c.l.b16 %v2274
    %v2745 = vunpack.c.l.b16 %v2275
    %v2746 = vunpack.c.h.b16 %v2275
    %v2747 = vunpack.c.l.b16 %v2276
    %v2748 = vunpack.c.l.b16 %v2277
    %v2749 = vunpack.c.h.b16 %v2277
    %v2750 = vunpack.c.l.b16 %v2278
    %v2751 = vunpack.c.l.b16 %v2279
    %v2752 = vunpack.c.h.b16 %v2279
    %v2753 = vunpack.c.l.b16 %v2280
    %v2754 = vunpack.c.l.b16 %v2281
    %v2755 = vunpack.c.h.b16 %v2281
    %v2756 = vunpack.c.l.b16 %v2282
    %v2757 = vunpack.c.l.b16 %v2283
    %v2758 = vunpack.c.h.b16 %v2283
    %v2759 = vunpack.c.l.b16 %v2284
    %v2760 = vunpack.c.l.b16 %v2285
    %v2761 = vunpack.c.h.b16 %v2285
    %v2762 = vunpack.c.l.b16 %v2286
    %v2763 = vunpack.c.l.b16 %v2287
    %v2764 = vunpack.c.h.b16 %v2287
    %v2765 = vunpack.c.l.b16 %v2288
    %v2766 = vunpack.c.l.b16 %v2289
    %v2767 = vunpack.c.h.b16 %v2289
    %v2768 = vunpack.c.l.b16 %v2290
    %v2769 = vunpack.c.l.b16 %v2291
    %v2770 = vunpack.c.h.b16 %v2291
    %v2771 = vunpack.c.l.b16 %v2292
    %v2772 = vunpack.c.l.b16 %v2293
    %v2773 = vunpack.c.h.b16 %v2293
    %v2774 = vunpack.c.l.b16 %v2294
    %v2775 = vunpack.c.l.b16 %v2295
    %v2776 = vunpack.c.h.b16 %v2295
    %v2777 = vunpack.c.l.b16 %v2296
    %v2778 = vunpack.c.l.b16 %v2297
    %v2779 = vunpack.c.h.b16 %v2297
    %v2780 = vunpack.c.l.b16 %v2298
    %v2781 = vunpack.c.l.b16 %v2299
    %v2782 = vunpack.c.h.b16 %v2299
    %v2783 = vunpack.c.l.b16 %v2300
    %v2784 = vunpack.c.l.b16 %v2301
    %v2785 = vunpack.c.h.b16 %v2301
    %v2786 = vunpack.c.l.b16 %v2302
    %v2787 = vunpack.c.l.b16 %v2303
    %v2788 = vunpack.c.h.b16 %v2303
    %v2789 = vunpack.c.l.b16 %v2304
    %v2790 = vunpack.c.l.b16 %v2305
    %v2791 = vunpack.c.h.b16 %v2305
    %v2792 = vunpack.c.l.b16 %v2306
    %v2793 = vunpack.c.l.b16 %v2307
    %v2794 = vunpack.c.h.b16 %v2307
    %v2795 = vunpack.c.l.b16 %v2308
    %v2796 = vunpack.c.l.b16 %v2309
    %v2797 = vunpack.c.h.b16 %v2309
    %v2798 = vunpack.c.l.b16 %v2310
    %v2799 = vunpack.c.l.b16 %v2311
    %v2800 = vunpack.c.h.b16 %v2311
    %v2801 = vunpack.c.l.b16 %v2312
    %v2802 = vunpack.c.l.b16 %v2313
    %v2803 = vunpack.c.h.b16 %v2313
    %v2804 = vunpack.c.l.b16 %v2314
    %v2805 = vunpack.c.l.b16 %v2315
    %v2806 = vunpack.c.h.b16 %v2315
    %v2807 = vunpack.c.l.b16 %v2316
    %v2808 = vunpack.c.l.b16 %v2317
    %v2809 = vunpack.c.h.b16 %v2317
    %v2810 = vunpack.c.l.b16 %v2318
    %v2811 = vunpack.c.l.b16 %v2319
    %v2812 = vunpack.c.h.b16 %v2319
    %v2813 = vunpack.c.l.b16 %v2320
    %v2814 = vunpack.c.l.b16 %v2321
    %v2815 = vunpack.c.h.b16 %v2321
    %v2816 = vunpack.c.l.b16 %v2322
    %v2817 = vunpack.c.l.b16 %v2323
    %v2818 = vunpack.c.h.b16 %v2323
    %v2819 = vunpack.c.l.b16 %v2324
    %v2820 = vunpack.c.l.b16 %v2325
    %v2821 = vunpack.c.h.b16 %v2325
    %v2822 = vunpack.c.l.b16 %v2326
    %v2823 = vunpack.c.l.b16 %v2327
    %v2824 = vunpack.c.h.b16 %v2327
    %v2825 = vunpack.c.l.b16 %v2328
    %v2826 = vpack.c.b16 %v2541, %v2538
    %v2827 = vpack.c.b16 %v2542, %v2539
    %v2828 = vpack.c.b16 %v2543, %v2540
    %v2829 = vpack.c.b16 %v2547, %v2544
    %v2830 = vpack.c.b16 %v2548, %v2545
    %v2831 = vpack.c.b16 %v2549, %v2546
    %v2832 = vpack.c.b16 %v2553, %v2550
    %v2833 = vpack.c.b16 %v2554, %v2551
    %v2834 = vpack.c.b16 %v2555, %v2552
    %v2835 = vpack.c.b16 %v2559, %v2556
    %v2836 = vpack.c.b16 %v2560, %v2557
    %v2837 = vpack.c.b16 %v2561, %v2558
    %v2838 = vpack.c.b16 %v2565, %v2562
    %v2839 = vpack.c.b16 %v2566, %v2563
    %v2840 = vpack.c.b16 %v2567, %v2564
    %v2841 = vpack.c.b16 %v2571, %v2568
    %v2842 = vpack.c.b16 %v2572, %v2569
    %v2843 = vpack.c.b16 %v2573, %v2570
    %v2844 = vpack.c.b16 %v2577, %v2574
    %v2845 = vpack.c.b16 %v2578, %v2575
    %v2846 = vpack.c.b16 %v2579, %v2576
    %v2847 = vpack.c.b16 %v2583, %v2580
    %v2848 = vpack.c.b16 %v2584, %v2581
    %v2849 = vpack.c.b16 %v2585, %v2582
    %v2850 = vpack.c.b16 %v2589, %v2586
    %v2851 = vpack.c.b16 %v2590, %v2587
    %v2852 = vpack.c.b16 %v2591, %v2588
    %v2853 = vpack.c.b16 %v2595, %v2592
    %v2854 = vpack.c.b16 %v2596, %v2593
    %v2855 = vpack.c.b16 %v2597, %v2594
    %v2856 = vpack.c.b16 %v2601, %v2598
    %v2857 = vpack.c.b16 %v2602, %v2599
    %v2858 = vpack.c.b16 %v2603, %v2600
    %v2859 = vpack.c.b16 %v2607, %v2604
    %v2860 = vpack.c.b16 %v2608, %v2605
    %v2861 = vpack.c.b16 %v2609, %v2606
    %v2862 = vpack.c.b16 %v2613, %v2610
    %v2863 = vpack.c.b16 %v2614, %v2611
    %v2864 = vpack.c.b16 %v2615, %v2612
    %v2865 = vpack.c.b16 %v2619, %v2616
    %v2866 = vpack.c.b16 %v2620, %v2617
    %v2867 = vpack.c.b16 %v2621, %v2618
    %v2868 = vpack.c.b16 %v2625, %v2622
    %v2869 = vpack.c.b16 %v2626, %v2623
    %v2870 = vpack.c.b16 %v2627, %v2624
    %v2871 = vpack.c.b16 %v2631, %v2628
    %v2872 = vpack.c.b16 %v2632, %v2629
    %v2873 = vpack.c.b16 %v2633, %v2630
    %v2874 = vpack.c.b16 %v2637, %v2634
    %v2875 = vpack.c.b16 %v2638, %v2635
    %v2876 = vpack.c.b16 %v2639, %v2636
    %v2877 = vpack.c.b16 %v2643, %v2640
    %v2878 = vpack.c.b16 %v2644, %v2641
    %v2879 = vpack.c.b16 %v2645, %v2642
    %v2880 = vpack.c.b16 %v2649, %v2646
    %v2881 = vpack.c.b16 %v2650, %v2647
    %v2882 = vpack.c.b16 %v2651, %v2648
    %v2883 = vpack.c.b16 %v2655, %v2652
    %v2884 = vpack.c.b16 %v2656, %v2653
    %v2885 = vpack.c.b16 %v2657, %v2654
    %v2886 = vpack.c.b16 %v2661, %v2658
    %v2887 = vpack.c.b16 %v2662, %v2659
    %v2888 = vpack.c.b16 %v2663, %v2660
    %v2889 = vpack.c.b16 %v2667, %v2664
    %v2890 = vpack.c.b16 %v2668, %v2665
    %v2891 = vpack.c.b16 %v2669, %v2666
    %v2892 = vpack.c.b16 %v2673, %v2670
    %v2893 = vpack.c.b16 %v2674, %v2671
    %v2894 = vpack.c.b16 %v2675, %v2672
    %v2895 = vpack.c.b16 %v2679, %v2676
    %v2896 = vpack.c.b16 %v2680, %v2677
    %v2897 = vpack.c.b16 %v2681, %v2678
    %v2898 = vpack.c.b16 %v2685, %v2682
    %v2899 = vpack.c.b16 %v2686, %v2683
    %v2900 = vpack.c.b16 %v2687, %v2684
    %v2901 = vpack.c.b16 %v2691, %v2688
    %v2902 = vpack.c.b16 %v2692, %v2689
    %v2903 = vpack.c.b16 %v2693, %v2690
    %v2904 = vpack.c.b16 %v2697, %v2694
    %v2905 = vpack.c.b16 %v2698, %v2695
    %v2906 = vpack.c.b16 %v2699, %v2696
    %v2907 = vpack.c.b16 %v2703, %v2700
    %v2908 = vpack.c.b16 %v2704, %v2701
    %v2909 = vpack.c.b16 %v2705, %v2702
    %v2910 = vpack.c.b16 %v2709, %v2706
    %v2911 = vpack.c.b16 %v2710, %v2707
    %v2912 = vpack.c.b16 %v2711, %v2708
    %v2913 = vpack.c.b16 %v2715, %v2712
    %v2914 = vpack.c.b16 %v2716, %v2713
    %v2915 = vpack.c.b16 %v2717, %v2714
    %v2916 = vpack.c.b16 %v2721, %v2718
    %v2917 = vpack.c.b16 %v2722, %v2719
    %v2918 = vpack.c.b16 %v2723, %v2720
    %v2919 = vpack.c.b16 %v2727, %v2724
    %v2920 = vpack.c.b16 %v2728, %v2725
    %v2921 = vpack.c.b16 %v2729, %v2726
    %v2922 = vpack.c.b16 %v2733, %v2730
    %v2923 = vpack.c.b16 %v2734, %v2731
    %v2924 = vpack.c.b16 %v2735, %v2732
    %v2925 = vpack.c.b16 %v2739, %v2736
    %v2926 = vpack.c.b16 %v2740, %v2737
    %v2927 = vpack.c.b16 %v2741, %v2738
    %v2928 = vpack.c.b16 %v2745, %v2742
    %v2929 = vpack.c.b16 %v2746, %v2743
    %v2930 = vpack.c.b16 %v2747, %v2744
    %v2931 = vpack.c.b16 %v2751, %v2748
    %v2932 = vpack.c.b16 %v2752, %v2749
    %v2933 = vpack.c.b16 %v2753, %v2750
    %v2934 = vpack.c.b16 %v2757, %v2754
    %v2935 = vpack.c.b16 %v2758, %v2755
    %v2936 = vpack.c.b16 %v2759, %v2756
    %v2937 = vpack.c.b16 %v2763, %v2760
    %v2938 = vpack.c.b16 %v2764, %v2761
    %v2939 = vpack.c.b16 %v2765, %v2762
    %v2940 = vpack.c.b16 %v2769, %v2766
    %v2941 = vpack.c.b16 %v2770, %v2767
    %v2942 = vpack.c.b16 %v2771, %v2768
    %v2943 = vpack.c.b16 %v2775, %v2772
    %v2944 = vpack.c.b16 %v2776, %v2773
    %v2945 = vpack.c.b16 %v2777, %v2774
    %v2946 = vpack.c.b16 %v2781, %v2778
    %v2947 = vpack.c.b16 %v2782, %v2779
    %v2948 = vpack.c.b16 %v2783, %v2780
    %v2949 = vpack.c.b16 %v2787, %v2784
    %v2950 = vpack.c.b16 %v2788, %v2785
    %v2951 = vpack.c.b16 %v2789, %v2786
    %v2952 = vpack.c.b16 %v2793, %v2790
    %v2953 = vpack.c.b16 %v2794, %v2791
    %v2954 = vpack.c.b16 %v2795, %v2792
    %v2955 = vpack.c.b16 %v2799, %v2796
    %v2956 = vpack.c.b16 %v2800, %v2797
    %v2957 = vpack.c.b16 %v2801, %v2798
    %v2958 = vpack.c.b16 %v2805, %v2802
    %v2959 = vpack.c.b16 %v2806, %v2803
    %v2960 = vpack.c.b16 %v2807, %v2804
    %v2961 = vpack.c.b16 %v2811, %v2808
    %v2962 = vpack.c.b16 %v2812, %v2809
    %v2963 = vpack.c.b16 %v2813, %v2810
    %v2964 = vpack.c.b16 %v2817, %v2814
    %v2965 = vpack.c.b16 %v2818, %v2815
    %v2966 = vpack.c.b16 %v2819, %v2816
    %v2967 = vpack.c.b16 %v2823, %v2820
    %v2968 = vpack.c.b16 %v2824, %v2821
    %v2969 = vpack.c.b16 %v2825, %v2822
    %3114 = vmatprep.subr.bf16.mxu0 %v2827
    %3115 = vmatpush1.bf16.msra.mxu0 %v2826
    %3116 = vmatprep.subr.bf16.mxu0 %v2830
    %3117 = vmatpush1.bf16.msra.mxu0 %v2829
    %3118 = vmatprep.subr.bf16.mxu0 %v2833
    %3119 = vmatpush1.bf16.msra.mxu0 %v2832
    %3120 = vmatprep.subr.bf16.mxu0 %v2836
    %3121 = vmatpush1.bf16.msra.mxu0 %v2835
    %3122 = vmatprep.subr.bf16.mxu0 %v2839
    %3123 = vmatpush1.bf16.msra.mxu0 %v2838
    %3124 = vmatprep.subr.bf16.mxu0 %v2842
    %3125 = vmatpush1.bf16.msra.mxu0 %v2841
    %3126 = vmatprep.subr.bf16.mxu0 %v2845
    %3127 = vmatpush1.bf16.msra.mxu0 %v2844
    %3128 = vmatprep.subr.bf16.mxu0 %v2848
    %3129 = vmatpush1.bf16.msra.mxu0 %v2847
    %3130 = vmatprep.subr.bf16.mxu0 %v2851
    %3131 = vmatpush1.bf16.msra.mxu0 %v2850
    %3132 = vmatprep.subr.bf16.mxu0 %v2854
    %3133 = vmatpush1.bf16.msra.mxu0 %v2853
    %3134 = vmatprep.subr.bf16.mxu0 %v2857
    %3135 = vmatpush1.bf16.msra.mxu0 %v2856
    %3136 = vmatprep.subr.bf16.mxu0 %v2860
    %3137 = vmatpush1.bf16.msra.mxu0 %v2859
    %3138 = vmatprep.subr.bf16.mxu0 %v2863
    %3139 = vmatpush1.bf16.msra.mxu0 %v2862
    %3140 = vmatprep.subr.bf16.mxu0 %v2866
    %3141 = vmatpush1.bf16.msra.mxu0 %v2865
    %3142 = vmatprep.subr.bf16.mxu0 %v2869
    %3143 = vmatpush1.bf16.msra.mxu0 %v2868
    %3144 = vmatprep.subr.bf16.mxu0 %v2872
    %3145 = vmatpush1.bf16.msra.mxu0 %v2871
    %3146 = vmatprep.mubr.bf16.mxu0 %v2132
    %3147 = vmatmul.mubr.bf16.gmra.mrb[0].mxu0 %v2131
    %v3148 = vpop.f32.mrb[0].mxu0
    %v3149 = vadd.f32 %v2334, %v3148
    %v3150 = vpop.f32.mrb[0].mxu0
    %v3151 = vadd.f32 %v2338, %v3150
    %v3152 = vpop.f32.mrb[0].mxu0
    %v3153 = vadd.f32 %v2334, %v3152
    %v3154 = vpop.f32.mrb[0].mxu0
    %v3155 = vadd.f32 %v2338, %v3154
    %3156 = vdwg.mxu0
    %3157 = vmatprep.subr.bf16.mxu0 %v2875
    %3158 = vmatpush1.bf16.msra.mxu0 %v2874
    %3159 = vmatprep.subr.bf16.mxu0 %v2878
    %3160 = vmatpush1.bf16.msra.mxu0 %v2877
    %3161 = vmatprep.subr.bf16.mxu0 %v2881
    %3162 = vmatpush1.bf16.msra.mxu0 %v2880
    %3163 = vmatprep.subr.bf16.mxu0 %v2884
    %3164 = vmatpush1.bf16.msra.mxu0 %v2883
    %3165 = vmatprep.subr.bf16.mxu0 %v2887
    %3166 = vmatpush1.bf16.msra.mxu0 %v2886
    %3167 = vmatprep.subr.bf16.mxu0 %v2890
    %3168 = vmatpush1.bf16.msra.mxu0 %v2889
    %3169 = vmatprep.subr.bf16.mxu0 %v2893
    %3170 = vmatpush1.bf16.msra.mxu0 %v2892
    %3171 = vmatprep.subr.bf16.mxu0 %v2896
    %3172 = vmatpush1.bf16.msra.mxu0 %v2895
    %3173 = vmatprep.subr.bf16.mxu0 %v2899
    %3174 = vmatpush1.bf16.msra.mxu0 %v2898
    %3175 = vmatprep.subr.bf16.mxu0 %v2902
    %3176 = vmatpush1.bf16.msra.mxu0 %v2901
    %3177 = vmatprep.subr.bf16.mxu0 %v2905
    %3178 = vmatpush1.bf16.msra.mxu0 %v2904
    %3179 = vmatprep.subr.bf16.mxu0 %v2908
    %3180 = vmatpush1.bf16.msra.mxu0 %v2907
    %3181 = vmatprep.subr.bf16.mxu0 %v2911
    %3182 = vmatpush1.bf16.msra.mxu0 %v2910
    %3183 = vmatprep.subr.bf16.mxu0 %v2914
    %3184 = vmatpush1.bf16.msra.mxu0 %v2913
    %3185 = vmatprep.subr.bf16.mxu0 %v2917
    %3186 = vmatpush1.bf16.msra.mxu0 %v2916
    %3187 = vmatprep.subr.bf16.mxu0 %v2920
    %3188 = vmatpush1.bf16.msra.mxu0 %v2919
    %3189 = vmatprep.mubr.bf16.mxu0 %v2134
    %3190 = vmatmul.mubr.bf16.gmra.mrb[0].mxu0 %v2133
    %v3191 = vpop.f32.mrb[0].mxu0
    %v3192 = vadd.f32 %v3149, %v3191
    %v3193 = vpop.f32.mrb[0].mxu0
    %v3194 = vadd.f32 %v3151, %v3193
    %v3195 = vpop.f32.mrb[0].mxu0
    %v3196 = vadd.f32 %v3153, %v3195
    %v3197 = vpop.f32.mrb[0].mxu0
    %v3198 = vadd.f32 %v3155, %v3197
    %3199 = vdwg.mxu0
    %3200 = vmatprep.subr.bf16.mxu0 %v2923
    %3201 = vmatpush1.bf16.msra.mxu0 %v2922
    %3202 = vmatprep.subr.bf16.mxu0 %v2926
    %3203 = vmatpush1.bf16.msra.mxu0 %v2925
    %3204 = vmatprep.subr.bf16.mxu0 %v2929
    %3205 = vmatpush1.bf16.msra.mxu0 %v2928
    %3206 = vmatprep.subr.bf16.mxu0 %v2932
    %3207 = vmatpush1.bf16.msra.mxu0 %v2931
    %3208 = vmatprep.subr.bf16.mxu0 %v2935
    %3209 = vmatpush1.bf16.msra.mxu0 %v2934
    %3210 = vmatprep.subr.bf16.mxu0 %v2938
    %3211 = vmatpush1.bf16.msra.mxu0 %v2937
    %3212 = vmatprep.subr.bf16.mxu0 %v2941
    %3213 = vmatpush1.bf16.msra.mxu0 %v2940
    %3214 = vmatprep.subr.bf16.mxu0 %v2944
    %3215 = vmatpush1.bf16.msra.mxu0 %v2943
    %3216 = vmatprep.subr.bf16.mxu0 %v2947
    %3217 = vmatpush1.bf16.msra.mxu0 %v2946
    %3218 = vmatprep.subr.bf16.mxu0 %v2950
    %3219 = vmatpush1.bf16.msra.mxu0 %v2949
    %3220 = vmatprep.subr.bf16.mxu0 %v2953
    %3221 = vmatpush1.bf16.msra.mxu0 %v2952
    %3222 = vmatprep.subr.bf16.mxu0 %v2956
    %3223 = vmatpush1.bf16.msra.mxu0 %v2955
    %3224 = vmatprep.subr.bf16.mxu0 %v2959
    %3225 = vmatpush1.bf16.msra.mxu0 %v2958
    %3226 = vmatprep.subr.bf16.mxu0 %v2962
    %3227 = vmatpush1.bf16.msra.mxu0 %v2961
    %3228 = vmatprep.subr.bf16.mxu0 %v2965
    %3229 = vmatpush1.bf16.msra.mxu0 %v2964
    %3230 = vmatprep.subr.bf16.mxu0 %v2968
    %3231 = vmatpush1.bf16.msra.mxu0 %v2967
    %3232 = vmatprep.mubr.bf16.mxu0 %v2136
    %3233 = vmatmul.mubr.bf16.gmra.mrb[0].mxu0 %v2135
    %v3234 = vpop.f32.mrb[0].mxu0
    %v3235 = vadd.f32 %v3192, %v3234
    %v3236 = vpop.f32.mrb[0].mxu0
    %v3237 = vadd.f32 %v3194, %v3236
    %v3238 = vpop.f32.mrb[0].mxu0
    %v3239 = vadd.f32 %v3196, %v3238
    %v3240 = vpop.f32.mrb[0].mxu0
    %v3241 = vadd.f32 %v3198, %v3240
    %3242 = vdwg.mxu0
    %3243 = vmatprep.subr.bf16.mxu0 0
    %3244 = vmatpush1.bf16.msra.mxu0 %v2828
    %3245 = vmatprep.subr.bf16.mxu0 0
    %3246 = vmatpush1.bf16.msra.mxu0 %v2831
    %3247 = vmatprep.subr.bf16.mxu0 0
    %3248 = vmatpush1.bf16.msra.mxu0 %v2834
    %3249 = vmatprep.subr.bf16.mxu0 0
    %3250 = vmatpush1.bf16.msra.mxu0 %v2837
    %3251 = vmatprep.subr.bf16.mxu0 0
    %3252 = vmatpush1.bf16.msra.mxu0 %v2840
    %3253 = vmatprep.subr.bf16.mxu0 0
    %3254 = vmatpush1.bf16.msra.mxu0 %v2843
    %3255 = vmatprep.subr.bf16.mxu0 0
    %3256 = vmatpush1.bf16.msra.mxu0 %v2846
    %3257 = vmatprep.subr.bf16.mxu0 0
    %3258 = vmatpush1.bf16.msra.mxu0 %v2849
    %3259 = vmatprep.subr.bf16.mxu0 0
    %3260 = vmatpush1.bf16.msra.mxu0 %v2852
    %3261 = vmatprep.subr.bf16.mxu0 0
    %3262 = vmatpush1.bf16.msra.mxu0 %v2855
    %3263 = vmatprep.subr.bf16.mxu0 0
    %3264 = vmatpush1.bf16.msra.mxu0 %v2858
    %3265 = vmatprep.subr.bf16.mxu0 0
    %3266 = vmatpush1.bf16.msra.mxu0 %v2861
    %3267 = vmatprep.subr.bf16.mxu0 0
    %3268 = vmatpush1.bf16.msra.mxu0 %v2864
    %3269 = vmatprep.subr.bf16.mxu0 0
    %3270 = vmatpush1.bf16.msra.mxu0 %v2867
    %3271 = vmatprep.subr.bf16.mxu0 0
    %3272 = vmatpush1.bf16.msra.mxu0 %v2870
    %3273 = vmatprep.subr.bf16.mxu0 0
    %3274 = vmatpush1.bf16.msra.mxu0 %v2873
    %3275 = vmatprep.mubr.bf16.mxu0 %v2132
    %3276 = vmatmul.mubr.bf16.gmra.mrb[0].mxu0 %v2131
    %v3277 = vpop.f32.mrb[0].mxu0
    %v3278 = vadd.f32 %v2342, %v3277
    %v3279 = vpop.f32.mrb[0].mxu0
    %v3280 = vpop.f32.mrb[0].mxu0
    %v3281 = vadd.f32 %v2342, %v3280
    %v3282 = vpop.f32.mrb[0].mxu0
    %3283 = vdwg.mxu0
    %3284 = vmatprep.subr.bf16.mxu0 0
    %3285 = vmatpush1.bf16.msra.mxu0 %v2876
    %3286 = vmatprep.subr.bf16.mxu0 0
    %3287 = vmatpush1.bf16.msra.mxu0 %v2879
    %3288 = vmatprep.subr.bf16.mxu0 0
    %3289 = vmatpush1.bf16.msra.mxu0 %v2882
    %3290 = vmatprep.subr.bf16.mxu0 0
    %3291 = vmatpush1.bf16.msra.mxu0 %v2885
    %3292 = vmatprep.subr.bf16.mxu0 0
    %3293 = vmatpush1.bf16.msra.mxu0 %v2888
    %3294 = vmatprep.subr.bf16.mxu0 0
    %3295 = vmatpush1.bf16.msra.mxu0 %v2891
    %3296 = vmatprep.subr.bf16.mxu0 0
    %3297 = vmatpush1.bf16.msra.mxu0 %v2894
    %3298 = vmatprep.subr.bf16.mxu0 0
    %3299 = vmatpush1.bf16.msra.mxu0 %v2897
    %3300 = vmatprep.subr.bf16.mxu0 0
    %3301 = vmatpush1.bf16.msra.mxu0 %v2900
    %3302 = vmatprep.subr.bf16.mxu0 0
    %3303 = vmatpush1.bf16.msra.mxu0 %v2903
    %3304 = vmatprep.subr.bf16.mxu0 0
    %3305 = vmatpush1.bf16.msra.mxu0 %v2906
    %3306 = vmatprep.subr.bf16.mxu0 0
    %3307 = vmatpush1.bf16.msra.mxu0 %v2909
    %3308 = vmatprep.subr.bf16.mxu0 0
    %3309 = vmatpush1.bf16.msra.mxu0 %v2912
    %3310 = vmatprep.subr.bf16.mxu0 0
    %3311 = vmatpush1.bf16.msra.mxu0 %v2915
    %3312 = vmatprep.subr.bf16.mxu0 0
    %3313 = vmatpush1.bf16.msra.mxu0 %v2918
    %3314 = vmatprep.subr.bf16.mxu0 0
    %3315 = vmatpush1.bf16.msra.mxu0 %v2921
    %3316 = vmatprep.mubr.bf16.mxu0 %v2134
    %3317 = vmatmul.mubr.bf16.gmra.mrb[0].mxu0 %v2133
    %v3318 = vpop.f32.mrb[0].mxu0
    %v3319 = vadd.f32 %v3278, %v3318
    %v3320 = vpop.f32.mrb[0].mxu0
    %v3321 = vpop.f32.mrb[0].mxu0
    %v3322 = vadd.f32 %v3281, %v3321
    %v3323 = vpop.f32.mrb[0].mxu0
    %3324 = vdwg.mxu0
    %3325 = vmatprep.subr.bf16.mxu0 0
    %3326 = vmatpush1.bf16.msra.mxu0 %v2924
    %3327 = vmatprep.subr.bf16.mxu0 0
    %3328 = vmatpush1.bf16.msra.mxu0 %v2927
    %3329 = vmatprep.subr.bf16.mxu0 0
    %3330 = vmatpush1.bf16.msra.mxu0 %v2930
    %3331 = vmatprep.subr.bf16.mxu0 0
    %3332 = vmatpush1.bf16.msra.mxu0 %v2933
    %3333 = vmatprep.subr.bf16.mxu0 0
    %3334 = vmatpush1.bf16.msra.mxu0 %v2936
    %3335 = vmatprep.subr.bf16.mxu0 0
    %3336 = vmatpush1.bf16.msra.mxu0 %v2939
    %3337 = vmatprep.subr.bf16.mxu0 0
    %3338 = vmatpush1.bf16.msra.mxu0 %v2942
    %3339 = vmatprep.subr.bf16.mxu0 0
    %3340 = vmatpush1.bf16.msra.mxu0 %v2945
    %3341 = vmatprep.subr.bf16.mxu0 0
    %3342 = vmatpush1.bf16.msra.mxu0 %v2948
    %3343 = vmatprep.subr.bf16.mxu0 0
    %3344 = vmatpush1.bf16.msra.mxu0 %v2951
    %3345 = vmatprep.subr.bf16.mxu0 0
    %3346 = vmatpush1.bf16.msra.mxu0 %v2954
    %3347 = vmatprep.subr.bf16.mxu0 0
    %3348 = vmatpush1.bf16.msra.mxu0 %v2957
    %3349 = vmatprep.subr.bf16.mxu0 0
    %3350 = vmatpush1.bf16.msra.mxu0 %v2960
    %3351 = vmatprep.subr.bf16.mxu0 0
    %3352 = vmatpush1.bf16.msra.mxu0 %v2963
    %3353 = vmatprep.subr.bf16.mxu0 0
    %3354 = vmatpush1.bf16.msra.mxu0 %v2966
    %3355 = vmatprep.subr.bf16.mxu0 0
    %3356 = vmatpush1.bf16.msra.mxu0 %v2969
    %3357 = vmatprep.mubr.bf16.mxu0 %v2136
    %3358 = vmatmul.mubr.bf16.gmra.mrb[0].mxu0 %v2135
    %v3359 = vpop.f32.mrb[0].mxu0
    %v3360 = vadd.f32 %v3319, %v3359
    %v3361 = vpop.f32.mrb[0].mxu0
    %v3362 = vpop.f32.mrb[0].mxu0
    %v3363 = vadd.f32 %v3322, %v3362
    %v3364 = vpop.f32.mrb[0].mxu0
    %3365 = vdwg.mxu0
    %v3366 = vmax.f32 %v3235, 0.0
    %v3367 = vmax.f32 %v3237, 0.0
    %v3368 = vmax.f32 %v3360, 0.0
    %v3369 = vmax.f32 %v3239, 0.0
    %v3370 = vmax.f32 %v3241, 0.0
    %v3371 = vmax.f32 %v3363, 0.0
    %v3375 = vrot.slane %v3366, 1
    %v3376 = vrot.slane %v3367, 1
    %v3377 = vrot.slane %v3368, 1
    %v3381 = vmax.f32 %v3366, %v3375
    %v3382 = vmax.f32 %v3367, %v3376
    %v3383 = vmax.f32 %v3368, %v3377
    %3384 = vrot.lane.b32.xlu0 %v3381, 96
    %v3385 = vpop.permute.xlu0 %3384
    %3386 = vrot.lane.b32.xlu0 %v3382, 96
    %v3387 = vpop.permute.xlu0 %3386
    %3388 = vrot.lane.b32.xlu0 %v3383, 96
    %v3389 = vpop.permute.xlu0 %3388
    %v3390 = vsel %vm1603, %v3387, %v3389
    %v3391 = vsel %vm1603, %v3385, %v3387
    %v3392 = vsel %vm1603, %v3389, %v3385
    %v3393 = vmax.f32 %v3381, %v3391
    %v3394 = vmax.f32 %v3382, %v3390
    %v3395 = vmax.f32 %v3383, %v3392
    %v3399 = vcombine.low %v3393, %v3394
    %v3401 = vunpack.c.l.s4 1966171168
    %v3402 = vunpack.c.0.s8 %v3401
    %v3403 = vlaneseq
    %v3404 = vshrl.u32 %v3403, 7
    %v3405 = vsub.s32 %v3402, %v3404
    %v3406 = vrot.slane %v3399, %v3405
    %v3408 = vunpack.c.l.s4 1966171168
    %v3409 = vunpack.c.0.s8 %v3408
    %v3410 = vlaneseq
    %v3411 = vshrl.u32 %v3410, 7
    %v3412 = vsub.s32 %v3409, %v3411
    %v3413 = vrot.slane %v3395, %v3412
    %v3414 = vcombine.low %v3406, %v3413
    %v3416 = vunpack.c.l.s4 1966171168
    %v3417 = vunpack.c.0.s8 %v3416
    %v3418 = vlaneseq
    %v3419 = vshrl.u32 %v3418, 7
    %v3420 = vsub.s32 %v3417, %v3419
    %v3421 = vrot.slane %v3414, %v3420
    %3423 = vst.msk [vmem:[#allocation2 + $0x12] sm:$0x7] %vm1640, %v3421
    %v3427 = vrot.slane %v3381, 2
    %v3428 = vrot.slane %v3382, 2
    %v3429 = vrot.slane %v3383, 2
    %3433 = vrot.lane.b32.xlu0 %v3427, 96
    %v3434 = vpop.permute.xlu0 %3433
    %3435 = vrot.lane.b32.xlu0 %v3428, 96
    %v3436 = vpop.permute.xlu0 %3435
    %3437 = vrot.lane.b32.xlu0 %v3429, 96
    %v3438 = vpop.permute.xlu0 %3437
    %v3439 = vsel %vm1603, %v3436, %v3438
    %v3440 = vsel %vm1603, %v3434, %v3436
    %v3441 = vsel %vm1603, %v3438, %v3434
    %v3445 = vrot.slane %v3440, 6
    %v3446 = vrot.slane %v3439, 6
    %v3447 = vrot.slane %v3441, 6
    %v3451 = vmax.f32 %v3381, %v3445
    %v3452 = vmax.f32 %v3382, %v3446
    %v3453 = vmax.f32 %v3383, %v3447
    %v3457 = vcombine.low %v3451, %v3452
    %v3459 = vunpack.c.l.s4 1966171168
    %v3460 = vunpack.c.0.s8 %v3459
    %v3461 = vlaneseq
    %v3462 = vshrl.u32 %v3461, 7
    %v3463 = vsub.s32 %v3460, %v3462
    %v3464 = vrot.slane %v3457, %v3463
    %v3466 = vunpack.c.l.s4 1966171168
    %v3467 = vunpack.c.0.s8 %v3466
    %v3468 = vlaneseq
    %v3469 = vshrl.u32 %v3468, 7
    %v3470 = vsub.s32 %v3467, %v3469
    %v3471 = vrot.slane %v3453, %v3470
    %v3472 = vcombine.low %v3464, %v3471
    %v3474 = vunpack.c.l.s4 1966171168
    %v3475 = vunpack.c.0.s8 %v3474
    %v3476 = vlaneseq
    %v3477 = vshrl.u32 %v3476, 7
    %v3478 = vsub.s32 %v3475, %v3477
    %v3479 = vrot.slane %v3472, %v3478
    %v3480 = vcombine.high %v3479, %v3479
    %3482 = vst.msk [vmem:[#allocation2 + $0x15] sm:$0x7] %vm1640, %v3480
    %v3483 = vrot.slane %v3381, 4
    %v3484 = vrot.slane %v3382, 4
    %v3485 = vrot.slane %v3383, 4
    %3489 = vrot.lane.b32.xlu0 %v3483, 96
    %v3490 = vpop.permute.xlu0 %3489
    %3491 = vrot.lane.b32.xlu0 %v3484, 96
    %v3492 = vpop.permute.xlu0 %3491
    %3493 = vrot.lane.b32.xlu0 %v3485, 96
    %v3494 = vpop.permute.xlu0 %3493
    %v3495 = vsel %vm1603, %v3492, %v3494
    %v3496 = vsel %vm1603, %v3490, %v3492
    %v3497 = vsel %vm1603, %v3494, %v3490
    %v3501 = vrot.slane %v3496, 4
    %v3502 = vrot.slane %v3495, 4
    %v3503 = vrot.slane %v3497, 4
    %v3507 = vmax.f32 %v3381, %v3501
    %v3508 = vmax.f32 %v3382, %v3502
    %v3509 = vmax.f32 %v3383, %v3503
    %v3513 = vcombine.high %v3507, %v3508
    %v3514 = vcombine.high %v3509, %v3509
    %v3516 = vunpack.c.l.s4 1966171168
    %v3517 = vunpack.c.0.s8 %v3516
    %v3518 = vlaneseq
    %v3519 = vshrl.u32 %v3518, 7
    %v3520 = vsub.s32 %v3517, %v3519
    %v3521 = vrot.slane %v3513, %v3520
    %v3523 = vunpack.c.l.s4 1966171168
    %v3524 = vunpack.c.0.s8 %v3523
    %v3525 = vlaneseq
    %v3526 = vshrl.u32 %v3525, 7
    %v3527 = vsub.s32 %v3524, %v3526
    %v3528 = vrot.slane %v3514, %v3527
    %v3529 = vcombine.low %v3521, %v3528
    %v3531 = vunpack.c.l.s4 1966171168
    %v3532 = vunpack.c.0.s8 %v3531
    %v3533 = vlaneseq
    %v3534 = vshrl.u32 %v3533, 7
    %v3535 = vsub.s32 %v3532, %v3534
    %v3536 = vrot.slane %v3529, %v3535
    %3538 = vst.msk [vmem:[#allocation2 + $0x18] sm:$0x7] %vm1640, %v3536
    %v3539 = vrot.slane %v3381, 6
    %v3540 = vrot.slane %v3382, 6
    %v3541 = vrot.slane %v3383, 6
    %3545 = vrot.lane.b32.xlu0 %v3539, 96
    %v3546 = vpop.permute.xlu0 %3545
    %3547 = vrot.lane.b32.xlu0 %v3540, 96
    %v3548 = vpop.permute.xlu0 %3547
    %3549 = vrot.lane.b32.xlu0 %v3541, 96
    %v3550 = vpop.permute.xlu0 %3549
    %v3551 = vsel %vm1603, %v3548, %v3550
    %v3552 = vsel %vm1603, %v3546, %v3548
    %v3553 = vsel %vm1603, %v3550, %v3546
    %v3557 = vrot.slane %v3552, 2
    %v3558 = vrot.slane %v3551, 2
    %v3559 = vrot.slane %v3553, 2
    %v3563 = vmax.f32 %v3381, %v3557
    %v3564 = vmax.f32 %v3382, %v3558
    %v3565 = vmax.f32 %v3383, %v3559
    %v3569 = vcombine.high %v3563, %v3564
    %v3570 = vcombine.high %v3565, %v3565
    %v3572 = vunpack.c.l.s4 1966171168
    %v3573 = vunpack.c.0.s8 %v3572
    %v3574 = vlaneseq
    %v3575 = vshrl.u32 %v3574, 7
    %v3576 = vsub.s32 %v3573, %v3575
    %v3577 = vrot.slane %v3569, %v3576
    %v3579 = vunpack.c.l.s4 1966171168
    %v3580 = vunpack.c.0.s8 %v3579
    %v3581 = vlaneseq
    %v3582 = vshrl.u32 %v3581, 7
    %v3583 = vsub.s32 %v3580, %v3582
    %v3584 = vrot.slane %v3570, %v3583
    %v3585 = vcombine.low %v3577, %v3584
    %v3587 = vunpack.c.l.s4 1966171168
    %v3588 = vunpack.c.0.s8 %v3587
    %v3589 = vlaneseq
    %v3590 = vshrl.u32 %v3589, 7
    %v3591 = vsub.s32 %v3588, %v3590
    %v3592 = vrot.slane %v3585, %v3591
    %v3593 = vcombine.high %v3592, %v3592
    %3595 = vst.msk [vmem:[#allocation2 + $0x1b] sm:$0x7] %vm1640, %v3593
    %v3599 = vrot.slane %v3369, 1
    %v3600 = vrot.slane %v3370, 1
    %v3601 = vrot.slane %v3371, 1
    %v3605 = vmax.f32 %v3369, %v3599
    %v3606 = vmax.f32 %v3370, %v3600
    %v3607 = vmax.f32 %v3371, %v3601
    %3608 = vrot.lane.b32.xlu0 %v3605, 96
    %v3609 = vpop.permute.xlu0 %3608
    %3610 = vrot.lane.b32.xlu0 %v3606, 96
    %v3611 = vpop.permute.xlu0 %3610
    %3612 = vrot.lane.b32.xlu0 %v3607, 96
    %v3613 = vpop.permute.xlu0 %3612
    %v3614 = vsel %vm1603, %v3611, %v3613
    %v3615 = vsel %vm1603, %v3609, %v3611
    %v3616 = vsel %vm1603, %v3613, %v3609
    %v3617 = vmax.f32 %v3605, %v3615
    %v3618 = vmax.f32 %v3606, %v3614
    %v3619 = vmax.f32 %v3607, %v3616
    %v3623 = vcombine.low %v3617, %v3618
    %v3625 = vunpack.c.l.s4 1966171168
    %v3626 = vunpack.c.0.s8 %v3625
    %v3627 = vlaneseq
    %v3628 = vshrl.u32 %v3627, 7
    %v3629 = vsub.s32 %v3626, %v3628
    %v3630 = vrot.slane %v3623, %v3629
    %v3632 = vunpack.c.l.s4 1966171168
    %v3633 = vunpack.c.0.s8 %v3632
    %v3634 = vlaneseq
    %v3635 = vshrl.u32 %v3634, 7
    %v3636 = vsub.s32 %v3633, %v3635
    %v3637 = vrot.slane %v3619, %v3636
    %v3638 = vcombine.low %v3630, %v3637
    %v3640 = vunpack.c.l.s4 1966171168
    %v3641 = vunpack.c.0.s8 %v3640
    %v3642 = vlaneseq
    %v3643 = vshrl.u32 %v3642, 7
    %v3644 = vsub.s32 %v3641, %v3643
    %v3645 = vrot.slane %v3638, %v3644
    %3647 = vst.msk [vmem:[#allocation2 + $0x1e] sm:$0x7] %vm1640, %v3645
    %v3651 = vrot.slane %v3605, 2
    %v3652 = vrot.slane %v3606, 2
    %v3653 = vrot.slane %v3607, 2
    %3657 = vrot.lane.b32.xlu0 %v3651, 96
    %v3658 = vpop.permute.xlu0 %3657
    %3659 = vrot.lane.b32.xlu0 %v3652, 96
    %v3660 = vpop.permute.xlu0 %3659
    %3661 = vrot.lane.b32.xlu0 %v3653, 96
    %v3662 = vpop.permute.xlu0 %3661
    %v3663 = vsel %vm1603, %v3660, %v3662
    %v3664 = vsel %vm1603, %v3658, %v3660
    %v3665 = vsel %vm1603, %v3662, %v3658
    %v3669 = vrot.slane %v3664, 6
    %v3670 = vrot.slane %v3663, 6
    %v3671 = vrot.slane %v3665, 6
    %v3675 = vmax.f32 %v3605, %v3669
    %v3676 = vmax.f32 %v3606, %v3670
    %v3677 = vmax.f32 %v3607, %v3671
    %v3681 = vcombine.low %v3675, %v3676
    %v3683 = vunpack.c.l.s4 1966171168
    %v3684 = vunpack.c.0.s8 %v3683
    %v3685 = vlaneseq
    %v3686 = vshrl.u32 %v3685, 7
    %v3687 = vsub.s32 %v3684, %v3686
    %v3688 = vrot.slane %v3681, %v3687
    %v3690 = vunpack.c.l.s4 1966171168
    %v3691 = vunpack.c.0.s8 %v3690
    %v3692 = vlaneseq
    %v3693 = vshrl.u32 %v3692, 7
    %v3694 = vsub.s32 %v3691, %v3693
    %v3695 = vrot.slane %v3677, %v3694
    %v3696 = vcombine.low %v3688, %v3695
    %v3698 = vunpack.c.l.s4 1966171168
    %v3699 = vunpack.c.0.s8 %v3698
    %v3700 = vlaneseq
    %v3701 = vshrl.u32 %v3700, 7
    %v3702 = vsub.s32 %v3699, %v3701
    %v3703 = vrot.slane %v3696, %v3702
    %v3704 = vcombine.high %v3703, %v3703
    %3706 = vst.msk [vmem:[#allocation2 + $0x21] sm:$0x7] %vm1640, %v3704
    %v3707 = vld [vmem:[#allocation2] sm:$0xff]
    %v3708 = vld [vmem:[#allocation2 + $0x8] sm:$0xff]
    %v3709 = vld [vmem:[#allocation2 + $0x10] sm:$0xff]
    %v3710 = vld [vmem:[#allocation2 + $0x18] sm:$0xff]
    %v3711 = vld [vmem:[#allocation2 + $0x20] sm:$0xf]
    %v3717 = vlaneseq
    %v3718 = vshrl.u32 %v3717, 7
    %v3719 = vsub.s32 0, %v3718
    %v3720 = vrot.slane %v3707, %v3719
    %v3721 = vlaneseq
    %v3722 = vshrl.u32 %v3721, 7
    %v3723 = vsub.s32 1, %v3722
    %v3724 = vrot.slane %v3707, %v3723
    %v3725 = vlaneseq
    %v3726 = vshrl.u32 %v3725, 7
    %v3727 = vsub.s32 2, %v3726
    %v3728 = vrot.slane %v3707, %v3727
    %v3729 = vlaneseq
    %v3730 = vshrl.u32 %v3729, 7
    %v3731 = vsub.s32 3, %v3730
    %v3732 = vrot.slane %v3707, %v3731
    %v3733 = vlaneseq
    %v3734 = vshrl.u32 %v3733, 7
    %v3735 = vsub.s32 4, %v3734
    %v3736 = vrot.slane %v3707, %v3735
    %v3737 = vlaneseq
    %v3738 = vshrl.u32 %v3737, 7
    %v3739 = vsub.s32 5, %v3738
    %v3740 = vrot.slane %v3707, %v3739
    %v3741 = vlaneseq
    %v3742 = vshrl.u32 %v3741, 7
    %v3743 = vsub.s32 6, %v3742
    %v3744 = vrot.slane %v3707, %v3743
    %v3745 = vlaneseq
    %v3746 = vshrl.u32 %v3745, 7
    %v3747 = vsub.s32 7, %v3746
    %v3748 = vrot.slane %v3707, %v3747
    %v3749 = vlaneseq
    %v3750 = vshrl.u32 %v3749, 7
    %v3751 = vsub.s32 0, %v3750
    %v3752 = vrot.slane %v3708, %v3751
    %v3753 = vlaneseq
    %v3754 = vshrl.u32 %v3753, 7
    %v3755 = vsub.s32 1, %v3754
    %v3756 = vrot.slane %v3708, %v3755
    %v3757 = vlaneseq
    %v3758 = vshrl.u32 %v3757, 7
    %v3759 = vsub.s32 2, %v3758
    %v3760 = vrot.slane %v3708, %v3759
    %v3761 = vlaneseq
    %v3762 = vshrl.u32 %v3761, 7
    %v3763 = vsub.s32 3, %v3762
    %v3764 = vrot.slane %v3708, %v3763
    %v3765 = vlaneseq
    %v3766 = vshrl.u32 %v3765, 7
    %v3767 = vsub.s32 4, %v3766
    %v3768 = vrot.slane %v3708, %v3767
    %v3769 = vlaneseq
    %v3770 = vshrl.u32 %v3769, 7
    %v3771 = vsub.s32 5, %v3770
    %v3772 = vrot.slane %v3708, %v3771
    %v3773 = vlaneseq
    %v3774 = vshrl.u32 %v3773, 7
    %v3775 = vsub.s32 6, %v3774
    %v3776 = vrot.slane %v3708, %v3775
    %v3777 = vlaneseq
    %v3778 = vshrl.u32 %v3777, 7
    %v3779 = vsub.s32 7, %v3778
    %v3780 = vrot.slane %v3708, %v3779
    %v3781 = vlaneseq
    %v3782 = vshrl.u32 %v3781, 7
    %v3783 = vsub.s32 0, %v3782
    %v3784 = vrot.slane %v3709, %v3783
    %v3785 = vlaneseq
    %v3786 = vshrl.u32 %v3785, 7
    %v3787 = vsub.s32 1, %v3786
    %v3788 = vrot.slane %v3709, %v3787
    %v3789 = vlaneseq
    %v3790 = vshrl.u32 %v3789, 7
    %v3791 = vsub.s32 2, %v3790
    %v3792 = vrot.slane %v3709, %v3791
    %v3793 = vlaneseq
    %v3794 = vshrl.u32 %v3793, 7
    %v3795 = vsub.s32 3, %v3794
    %v3796 = vrot.slane %v3709, %v3795
    %v3797 = vlaneseq
    %v3798 = vshrl.u32 %v3797, 7
    %v3799 = vsub.s32 4, %v3798
    %v3800 = vrot.slane %v3709, %v3799
    %v3801 = vlaneseq
    %v3802 = vshrl.u32 %v3801, 7
    %v3803 = vsub.s32 5, %v3802
    %v3804 = vrot.slane %v3709, %v3803
    %v3805 = vlaneseq
    %v3806 = vshrl.u32 %v3805, 7
    %v3807 = vsub.s32 6, %v3806
    %v3808 = vrot.slane %v3709, %v3807
    %v3809 = vlaneseq
    %v3810 = vshrl.u32 %v3809, 7
    %v3811 = vsub.s32 7, %v3810
    %v3812 = vrot.slane %v3709, %v3811
    %v3813 = vlaneseq
    %v3814 = vshrl.u32 %v3813, 7
    %v3815 = vsub.s32 0, %v3814
    %v3816 = vrot.slane %v3710, %v3815
    %v3817 = vlaneseq
    %v3818 = vshrl.u32 %v3817, 7
    %v3819 = vsub.s32 1, %v3818
    %v3820 = vrot.slane %v3710, %v3819
    %v3821 = vlaneseq
    %v3822 = vshrl.u32 %v3821, 7
    %v3823 = vsub.s32 2, %v3822
    %v3824 = vrot.slane %v3710, %v3823
    %v3825 = vlaneseq
    %v3826 = vshrl.u32 %v3825, 7
    %v3827 = vsub.s32 3, %v3826
    %v3828 = vrot.slane %v3710, %v3827
    %v3829 = vlaneseq
    %v3830 = vshrl.u32 %v3829, 7
    %v3831 = vsub.s32 4, %v3830
    %v3832 = vrot.slane %v3710, %v3831
    %v3833 = vlaneseq
    %v3834 = vshrl.u32 %v3833, 7
    %v3835 = vsub.s32 5, %v3834
    %v3836 = vrot.slane %v3710, %v3835
    %v3837 = vlaneseq
    %v3838 = vshrl.u32 %v3837, 7
    %v3839 = vsub.s32 6, %v3838
    %v3840 = vrot.slane %v3710, %v3839
    %v3841 = vlaneseq
    %v3842 = vshrl.u32 %v3841, 7
    %v3843 = vsub.s32 7, %v3842
    %v3844 = vrot.slane %v3710, %v3843
    %v3845 = vlaneseq
    %v3846 = vshrl.u32 %v3845, 7
    %v3847 = vsub.s32 0, %v3846
    %v3848 = vrot.slane %v3711, %v3847
    %v3849 = vlaneseq
    %v3850 = vshrl.u32 %v3849, 7
    %v3851 = vsub.s32 1, %v3850
    %v3852 = vrot.slane %v3711, %v3851
    %v3853 = vlaneseq
    %v3854 = vshrl.u32 %v3853, 7
    %v3855 = vsub.s32 2, %v3854
    %v3856 = vrot.slane %v3711, %v3855
    %v3857 = vlaneseq
    %v3858 = vshrl.u32 %v3857, 7
    %v3859 = vsub.s32 3, %v3858
    %v3860 = vrot.slane %v3711, %v3859
    %v3897 = vpack.c.bf16 %v3720, %v3720
    %v3898 = vpack.c.bf16 %v3724, %v3724
    %v3899 = vpack.c.bf16 %v3728, %v3728
    %v3900 = vpack.c.bf16 %v3732, %v3732
    %v3901 = vpack.c.bf16 %v3736, %v3736
    %v3902 = vpack.c.bf16 %v3740, %v3740
    %v3903 = vpack.c.bf16 %v3744, %v3744
    %v3904 = vpack.c.bf16 %v3748, %v3748
    %v3905 = vpack.c.bf16 %v3752, %v3752
    %v3906 = vpack.c.bf16 %v3756, %v3756
    %v3907 = vpack.c.bf16 %v3760, %v3760
    %v3908 = vpack.c.bf16 %v3764, %v3764
    %v3909 = vpack.c.bf16 %v3768, %v3768
    %v3910 = vpack.c.bf16 %v3772, %v3772
    %v3911 = vpack.c.bf16 %v3776, %v3776
    %v3912 = vpack.c.bf16 %v3780, %v3780
    %v3913 = vpack.c.bf16 %v3784, %v3784
    %v3914 = vpack.c.bf16 %v3788, %v3788
    %v3915 = vpack.c.bf16 %v3792, %v3792
    %v3916 = vpack.c.bf16 %v3796, %v3796
    %v3917 = vpack.c.bf16 %v3800, %v3800
    %v3918 = vpack.c.bf16 %v3804, %v3804
    %v3919 = vpack.c.bf16 %v3808, %v3808
    %v3920 = vpack.c.bf16 %v3812, %v3812
    %v3921 = vpack.c.bf16 %v3816, %v3816
    %v3922 = vpack.c.bf16 %v3820, %v3820
    %v3923 = vpack.c.bf16 %v3824, %v3824
    %v3924 = vpack.c.bf16 %v3828, %v3828
    %v3925 = vpack.c.bf16 %v3832, %v3832
    %v3926 = vpack.c.bf16 %v3836, %v3836
    %v3927 = vpack.c.bf16 %v3840, %v3840
    %v3928 = vpack.c.bf16 %v3844, %v3844
    %v3929 = vpack.c.bf16 %v3848, %v3848
    %v3930 = vpack.c.bf16 %v3852, %v3852
    %v3931 = vpack.c.bf16 %v3856, %v3856
    %v3932 = vpack.c.bf16 %v3860, %v3860
    %v3933 = vld [vmem:[#allocation10] sm:$0xf]
    %v3934 = vld [vmem:[#allocation10 + $0x4] sm:$0xf]
    %v3935 = vld [vmem:[#allocation10 + $0x8] sm:$0xf]
    %v3936 = vld [vmem:[#allocation10 + $0xc] sm:$0xf]
    %v3937 = vld [vmem:[#allocation10 + $0x10] sm:$0xf]
    %v3938 = vld [vmem:[#allocation10 + $0x14] sm:$0xf]
    %v3939 = vld [vmem:[#allocation10 + $0x18] sm:$0xf]
    %v3940 = vld [vmem:[#allocation10 + $0x1c] sm:$0xf]
    %v3941 = vld [vmem:[#allocation10 + $0x20] sm:$0xf]
    %v3942 = vld [vmem:[#allocation10 + $0x24] sm:$0xf]
    %v3943 = vld [vmem:[#allocation10 + $0x28] sm:$0xf]
    %v3944 = vld [vmem:[#allocation10 + $0x2c] sm:$0xf]
    %v3945 = vld [vmem:[#allocation10 + $0x30] sm:$0xf]
    %v3946 = vld [vmem:[#allocation10 + $0x34] sm:$0xf]
    %v3947 = vld [vmem:[#allocation10 + $0x38] sm:$0xf]
    %v3948 = vld [vmem:[#allocation10 + $0x3c] sm:$0xf]
    %v3949 = vld [vmem:[#allocation10 + $0x40] sm:$0xf]
    %v3950 = vld [vmem:[#allocation10 + $0x44] sm:$0xf]
    %v3951 = vld [vmem:[#allocation10 + $0x48] sm:$0xf]
    %v3952 = vld [vmem:[#allocation10 + $0x4c] sm:$0xf]
    %v3953 = vld [vmem:[#allocation10 + $0x50] sm:$0xf]
    %v3954 = vld [vmem:[#allocation10 + $0x54] sm:$0xf]
    %v3955 = vld [vmem:[#allocation10 + $0x58] sm:$0xf]
    %v3956 = vld [vmem:[#allocation10 + $0x5c] sm:$0xf]
    %v3957 = vld [vmem:[#allocation10 + $0x60] sm:$0xf]
    %v3958 = vld [vmem:[#allocation10 + $0x64] sm:$0xf]
    %v3959 = vld [vmem:[#allocation10 + $0x68] sm:$0xf]
    %v3960 = vld [vmem:[#allocation10 + $0x6c] sm:$0xf]
    %v3961 = vld [vmem:[#allocation10 + $0x70] sm:$0xf]
    %v3962 = vld [vmem:[#allocation10 + $0x74] sm:$0xf]
    %v3963 = vld [vmem:[#allocation10 + $0x78] sm:$0xf]
    %v3964 = vld [vmem:[#allocation10 + $0x7c] sm:$0xf]
    %v3965 = vld [vmem:[#allocation10 + $0x80] sm:$0xf]
    %v3966 = vld [vmem:[#allocation10 + $0x84] sm:$0xf]
    %v3967 = vld [vmem:[#allocation10 + $0x88] sm:$0xf]
    %v3968 = vld [vmem:[#allocation10 + $0x8c] sm:$0xf]
    %v3969 = vld [vmem:[#allocation10 + $0x90] sm:$0xf]
    %v3970 = vld [vmem:[#allocation10 + $0x94] sm:$0xf]
    %v3971 = vld [vmem:[#allocation10 + $0x98] sm:$0xf]
    %v3972 = vld [vmem:[#allocation10 + $0x9c] sm:$0xf]
    %v3973 = vld [vmem:[#allocation10 + $0xa0] sm:$0xf]
    %v3974 = vld [vmem:[#allocation10 + $0xa4] sm:$0xf]
    %v3975 = vld [vmem:[#allocation10 + $0xa8] sm:$0xf]
    %v3976 = vld [vmem:[#allocation10 + $0xac] sm:$0xf]
    %v3977 = vld [vmem:[#allocation10 + $0xb0] sm:$0xf]
    %v3978 = vld [vmem:[#allocation10 + $0xb4] sm:$0xf]
    %v3979 = vld [vmem:[#allocation10 + $0xb8] sm:$0xf]
    %v3980 = vld [vmem:[#allocation10 + $0xbc] sm:$0xf]
    %v3981 = vld [vmem:[#allocation10 + $0xc0] sm:$0xf]
    %v3982 = vld [vmem:[#allocation10 + $0xc4] sm:$0xf]
    %v3983 = vld [vmem:[#allocation10 + $0xc8] sm:$0xf]
    %v3984 = vld [vmem:[#allocation10 + $0xcc] sm:$0xf]
    %v3985 = vld [vmem:[#allocation10 + $0xd0] sm:$0xf]
    %v3986 = vld [vmem:[#allocation10 + $0xd4] sm:$0xf]
    %v3987 = vld [vmem:[#allocation10 + $0xd8] sm:$0xf]
    %v3988 = vld [vmem:[#allocation10 + $0xdc] sm:$0xf]
    %v3989 = vld [vmem:[#allocation10 + $0xe0] sm:$0xf]
    %v3990 = vld [vmem:[#allocation10 + $0xe4] sm:$0xf]
    %v3991 = vld [vmem:[#allocation10 + $0xe8] sm:$0xf]
    %v3992 = vld [vmem:[#allocation10 + $0xec] sm:$0xf]
    %v3993 = vld [vmem:[#allocation10 + $0xf0] sm:$0xf]
    %v3994 = vld [vmem:[#allocation10 + $0xf4] sm:$0xf]
    %v3995 = vld [vmem:[#allocation10 + $0xf8] sm:$0xf]
    %v3996 = vld [vmem:[#allocation10 + $0xfc] sm:$0xf]
    %v3997 = vld [vmem:[#allocation10 + $0x100] sm:$0xf]
    %v3998 = vld [vmem:[#allocation10 + $0x104] sm:$0xf]
    %v3999 = vld [vmem:[#allocation10 + $0x108] sm:$0xf]
    %v4000 = vld [vmem:[#allocation10 + $0x10c] sm:$0xf]
    %v4001 = vld [vmem:[#allocation10 + $0x110] sm:$0xf]
    %v4002 = vld [vmem:[#allocation10 + $0x114] sm:$0xf]
    %v4003 = vld [vmem:[#allocation10 + $0x118] sm:$0xf]
    %v4004 = vld [vmem:[#allocation10 + $0x11c] sm:$0xf]
    %v4005 = vld [vmem:[#allocation10 + $0x120] sm:$0xf]
    %v4006 = vld [vmem:[#allocation10 + $0x124] sm:$0xf]
    %v4007 = vld [vmem:[#allocation10 + $0x128] sm:$0xf]
    %v4008 = vld [vmem:[#allocation10 + $0x12c] sm:$0xf]
    %v4009 = vld [vmem:[#allocation10 + $0x130] sm:$0xf]
    %v4010 = vld [vmem:[#allocation10 + $0x134] sm:$0xf]
    %v4011 = vld [vmem:[#allocation10 + $0x138] sm:$0xf]
    %v4012 = vld [vmem:[#allocation10 + $0x13c] sm:$0xf]
    %v4013 = vld [vmem:[#allocation10 + $0x140] sm:$0xf]
    %v4014 = vld [vmem:[#allocation10 + $0x144] sm:$0xf]
    %v4015 = vld [vmem:[#allocation10 + $0x148] sm:$0xf]
    %v4016 = vld [vmem:[#allocation10 + $0x14c] sm:$0xf]
    %v4017 = vld [vmem:[#allocation10 + $0x150] sm:$0xf]
    %v4018 = vld [vmem:[#allocation10 + $0x154] sm:$0xf]
    %v4019 = vld [vmem:[#allocation10 + $0x158] sm:$0xf]
    %v4020 = vld [vmem:[#allocation10 + $0x15c] sm:$0xf]
    %v4021 = vld [vmem:[#allocation10 + $0x160] sm:$0xf]
    %v4022 = vld [vmem:[#allocation10 + $0x164] sm:$0xf]
    %v4023 = vld [vmem:[#allocation10 + $0x168] sm:$0xf]
    %v4024 = vld [vmem:[#allocation10 + $0x16c] sm:$0xf]
    %v4025 = vld [vmem:[#allocation10 + $0x170] sm:$0xf]
    %v4026 = vld [vmem:[#allocation10 + $0x174] sm:$0xf]
    %v4027 = vld [vmem:[#allocation10 + $0x178] sm:$0xf]
    %v4028 = vld [vmem:[#allocation10 + $0x17c] sm:$0xf]
    %v4029 = vld [vmem:[#allocation10 + $0x180] sm:$0xf]
    %v4030 = vld [vmem:[#allocation10 + $0x184] sm:$0xf]
    %v4031 = vld [vmem:[#allocation10 + $0x188] sm:$0xf]
    %v4032 = vld [vmem:[#allocation10 + $0x18c] sm:$0xf]
    %v4033 = vld [vmem:[#allocation10 + $0x190] sm:$0xf]
    %v4034 = vld [vmem:[#allocation10 + $0x194] sm:$0xf]
    %v4035 = vld [vmem:[#allocation10 + $0x198] sm:$0xf]
    %v4036 = vld [vmem:[#allocation10 + $0x19c] sm:$0xf]
    %v4037 = vld [vmem:[#allocation10 + $0x1a0] sm:$0xf]
    %v4038 = vld [vmem:[#allocation10 + $0x1a4] sm:$0xf]
    %v4039 = vld [vmem:[#allocation10 + $0x1a8] sm:$0xf]
    %v4040 = vld [vmem:[#allocation10 + $0x1ac] sm:$0xf]
    %v4041 = vld [vmem:[#allocation10 + $0x1b0] sm:$0xf]
    %v4042 = vld [vmem:[#allocation10 + $0x1b4] sm:$0xf]
    %v4043 = vld [vmem:[#allocation10 + $0x1b8] sm:$0xf]
    %v4044 = vld [vmem:[#allocation10 + $0x1bc] sm:$0xf]
    %v4045 = vld [vmem:[#allocation10 + $0x1c0] sm:$0xf]
    %v4046 = vld [vmem:[#allocation10 + $0x1c4] sm:$0xf]
    %v4047 = vld [vmem:[#allocation10 + $0x1c8] sm:$0xf]
    %v4048 = vld [vmem:[#allocation10 + $0x1cc] sm:$0xf]
    %v4049 = vld [vmem:[#allocation10 + $0x1d0] sm:$0xf]
    %v4050 = vld [vmem:[#allocation10 + $0x1d4] sm:$0xf]
    %v4051 = vld [vmem:[#allocation10 + $0x1d8] sm:$0xf]
    %v4052 = vld [vmem:[#allocation10 + $0x1dc] sm:$0xf]
    %v4053 = vld [vmem:[#allocation10 + $0x1e0] sm:$0xf]
    %v4054 = vld [vmem:[#allocation10 + $0x1e4] sm:$0xf]
    %v4055 = vld [vmem:[#allocation10 + $0x1e8] sm:$0xf]
    %v4056 = vld [vmem:[#allocation10 + $0x1ec] sm:$0xf]
    %v4057 = vld [vmem:[#allocation10 + $0x1f0] sm:$0xf]
    %v4058 = vld [vmem:[#allocation10 + $0x1f4] sm:$0xf]
    %v4059 = vld [vmem:[#allocation10 + $0x1f8] sm:$0xf]
    %v4060 = vld [vmem:[#allocation10 + $0x1fc] sm:$0xf]
    %v4061 = vld [vmem:[#allocation10 + $0x200] sm:$0xf]
    %v4062 = vld [vmem:[#allocation10 + $0x204] sm:$0xf]
    %v4063 = vld [vmem:[#allocation10 + $0x208] sm:$0xf]
    %v4064 = vld [vmem:[#allocation10 + $0x20c] sm:$0xf]
    %v4065 = vld [vmem:[#allocation10 + $0x210] sm:$0xf]
    %v4066 = vld [vmem:[#allocation10 + $0x214] sm:$0xf]
    %v4067 = vld [vmem:[#allocation10 + $0x218] sm:$0xf]
    %v4068 = vld [vmem:[#allocation10 + $0x21c] sm:$0xf]
    %v4069 = vld [vmem:[#allocation10 + $0x220] sm:$0xf]
    %v4070 = vld [vmem:[#allocation10 + $0x224] sm:$0xf]
    %v4071 = vld [vmem:[#allocation10 + $0x228] sm:$0xf]
    %v4072 = vld [vmem:[#allocation10 + $0x22c] sm:$0xf]
    %v4073 = vld [vmem:[#allocation10 + $0x230] sm:$0xf]
    %v4074 = vld [vmem:[#allocation10 + $0x234] sm:$0xf]
    %v4075 = vld [vmem:[#allocation10 + $0x238] sm:$0xf]
    %v4076 = vld [vmem:[#allocation10 + $0x23c] sm:$0xf]
    %v4077 = vld [vmem:[#allocation10 + $0x240] sm:$0xf]
    %v4078 = vld [vmem:[#allocation10 + $0x244] sm:$0xf]
    %v4079 = vld [vmem:[#allocation10 + $0x248] sm:$0xf]
    %v4080 = vld [vmem:[#allocation10 + $0x24c] sm:$0xf]
    %v4081 = vld [vmem:[#allocation10 + $0x250] sm:$0xf]
    %v4082 = vld [vmem:[#allocation10 + $0x254] sm:$0xf]
    %v4083 = vld [vmem:[#allocation10 + $0x258] sm:$0xf]
    %v4084 = vld [vmem:[#allocation10 + $0x25c] sm:$0xf]
    %v4085 = vld [vmem:[#allocation10 + $0x260] sm:$0xf]
    %v4086 = vld [vmem:[#allocation10 + $0x264] sm:$0xf]
    %v4087 = vld [vmem:[#allocation10 + $0x268] sm:$0xf]
    %v4088 = vld [vmem:[#allocation10 + $0x26c] sm:$0xf]
    %v4089 = vld [vmem:[#allocation10 + $0x270] sm:$0xf]
    %v4090 = vld [vmem:[#allocation10 + $0x274] sm:$0xf]
    %v4091 = vld [vmem:[#allocation10 + $0x278] sm:$0xf]
    %v4092 = vld [vmem:[#allocation10 + $0x27c] sm:$0xf]
    %v4093 = vld [vmem:[#allocation10 + $0x280] sm:$0xf]
    %v4094 = vld [vmem:[#allocation10 + $0x284] sm:$0xf]
    %v4095 = vld [vmem:[#allocation10 + $0x288] sm:$0xf]
    %v4096 = vld [vmem:[#allocation10 + $0x28c] sm:$0xf]
    %v4097 = vld [vmem:[#allocation10 + $0x290] sm:$0xf]
    %v4098 = vld [vmem:[#allocation10 + $0x294] sm:$0xf]
    %v4099 = vld [vmem:[#allocation10 + $0x298] sm:$0xf]
    %v4100 = vld [vmem:[#allocation10 + $0x29c] sm:$0xf]
    %v4101 = vld [vmem:[#allocation10 + $0x2a0] sm:$0xf]
    %v4102 = vld [vmem:[#allocation10 + $0x2a4] sm:$0xf]
    %v4103 = vld [vmem:[#allocation10 + $0x2a8] sm:$0xf]
    %v4104 = vld [vmem:[#allocation10 + $0x2ac] sm:$0xf]
    %v4105 = vld [vmem:[#allocation10 + $0x2b0] sm:$0xf]
    %v4106 = vld [vmem:[#allocation10 + $0x2b4] sm:$0xf]
    %v4107 = vld [vmem:[#allocation10 + $0x2b8] sm:$0xf]
    %v4108 = vld [vmem:[#allocation10 + $0x2bc] sm:$0xf]
    %v4109 = vld [vmem:[#allocation10 + $0x2c0] sm:$0xf]
    %v4110 = vld [vmem:[#allocation10 + $0x2c4] sm:$0xf]
    %v4111 = vld [vmem:[#allocation10 + $0x2c8] sm:$0xf]
    %v4112 = vld [vmem:[#allocation10 + $0x2cc] sm:$0xf]
    %v4113 = vld [vmem:[#allocation10 + $0x2d0] sm:$0xf]
    %v4114 = vld [vmem:[#allocation10 + $0x2d4] sm:$0xf]
    %v4115 = vld [vmem:[#allocation10 + $0x2d8] sm:$0xf]
    %v4116 = vld [vmem:[#allocation10 + $0x2dc] sm:$0xf]
    %v4117 = vld [vmem:[#allocation10 + $0x2e0] sm:$0xf]
    %v4118 = vld [vmem:[#allocation10 + $0x2e4] sm:$0xf]
    %v4119 = vld [vmem:[#allocation10 + $0x2e8] sm:$0xf]
    %v4120 = vld [vmem:[#allocation10 + $0x2ec] sm:$0xf]
    %v4121 = vld [vmem:[#allocation10 + $0x2f0] sm:$0xf]
    %v4122 = vld [vmem:[#allocation10 + $0x2f4] sm:$0xf]
    %v4123 = vld [vmem:[#allocation10 + $0x2f8] sm:$0xf]
    %v4124 = vld [vmem:[#allocation10 + $0x2fc] sm:$0xf]
    %v4125 = vld [vmem:[#allocation10 + $0x300] sm:$0xf]
    %v4126 = vld [vmem:[#allocation10 + $0x304] sm:$0xf]
    %v4127 = vld [vmem:[#allocation10 + $0x308] sm:$0xf]
    %v4128 = vld [vmem:[#allocation10 + $0x30c] sm:$0xf]
    %v4129 = vld [vmem:[#allocation10 + $0x310] sm:$0xf]
    %v4130 = vld [vmem:[#allocation10 + $0x314] sm:$0xf]
    %v4131 = vld [vmem:[#allocation10 + $0x318] sm:$0xf]
    %v4132 = vld [vmem:[#allocation10 + $0x31c] sm:$0xf]
    %v4133 = vld [vmem:[#allocation10 + $0x320] sm:$0xf]
    %v4134 = vld [vmem:[#allocation10 + $0x324] sm:$0xf]
    %v4135 = vld [vmem:[#allocation10 + $0x328] sm:$0xf]
    %v4136 = vld [vmem:[#allocation10 + $0x32c] sm:$0xf]
    %v4137 = vld [vmem:[#allocation10 + $0x330] sm:$0xf]
    %v4138 = vld [vmem:[#allocation10 + $0x334] sm:$0xf]
    %v4139 = vld [vmem:[#allocation10 + $0x338] sm:$0xf]
    %v4140 = vld [vmem:[#allocation10 + $0x33c] sm:$0xf]
    %v4141 = vld [vmem:[#allocation10 + $0x340] sm:$0xf]
    %v4142 = vld [vmem:[#allocation10 + $0x344] sm:$0xf]
    %v4143 = vld [vmem:[#allocation10 + $0x348] sm:$0xf]
    %v4144 = vld [vmem:[#allocation10 + $0x34c] sm:$0xf]
    %v4145 = vld [vmem:[#allocation10 + $0x350] sm:$0xf]
    %v4146 = vld [vmem:[#allocation10 + $0x354] sm:$0xf]
    %v4147 = vld [vmem:[#allocation10 + $0x358] sm:$0xf]
    %v4148 = vld [vmem:[#allocation10 + $0x35c] sm:$0xf]
    %v4149 = vld [vmem:[#allocation10 + $0x360] sm:$0xf]
    %v4150 = vld [vmem:[#allocation10 + $0x364] sm:$0xf]
    %v4151 = vld [vmem:[#allocation10 + $0x368] sm:$0xf]
    %v4152 = vld [vmem:[#allocation10 + $0x36c] sm:$0xf]
    %v4153 = vld [vmem:[#allocation10 + $0x370] sm:$0xf]
    %v4154 = vld [vmem:[#allocation10 + $0x374] sm:$0xf]
    %v4155 = vld [vmem:[#allocation10 + $0x378] sm:$0xf]
    %v4156 = vld [vmem:[#allocation10 + $0x37c] sm:$0xf]
    %v4157 = vld [vmem:[#allocation10 + $0x380] sm:$0xf]
    %v4158 = vld [vmem:[#allocation10 + $0x384] sm:$0xf]
    %v4159 = vld [vmem:[#allocation10 + $0x388] sm:$0xf]
    %v4160 = vld [vmem:[#allocation10 + $0x38c] sm:$0xf]
    %v4161 = vld [vmem:[#allocation10 + $0x390] sm:$0xf]
    %v4162 = vld [vmem:[#allocation10 + $0x394] sm:$0xf]
    %v4163 = vld [vmem:[#allocation10 + $0x398] sm:$0xf]
    %v4164 = vld [vmem:[#allocation10 + $0x39c] sm:$0xf]
    %v4165 = vld [vmem:[#allocation10 + $0x3a0] sm:$0xf]
    %v4166 = vld [vmem:[#allocation10 + $0x3a4] sm:$0xf]
    %v4167 = vld [vmem:[#allocation10 + $0x3a8] sm:$0xf]
    %v4168 = vld [vmem:[#allocation10 + $0x3ac] sm:$0xf]
    %v4169 = vld [vmem:[#allocation10 + $0x3b0] sm:$0xf]
    %v4170 = vld [vmem:[#allocation10 + $0x3b4] sm:$0xf]
    %v4171 = vld [vmem:[#allocation10 + $0x3b8] sm:$0xf]
    %v4172 = vld [vmem:[#allocation10 + $0x3bc] sm:$0xf]
    %v4173 = vld [vmem:[#allocation10 + $0x3c0] sm:$0xf]
    %v4174 = vld [vmem:[#allocation10 + $0x3c4] sm:$0xf]
    %v4175 = vld [vmem:[#allocation10 + $0x3c8] sm:$0xf]
    %v4176 = vld [vmem:[#allocation10 + $0x3cc] sm:$0xf]
    %v4177 = vld [vmem:[#allocation10 + $0x3d0] sm:$0xf]
    %v4178 = vld [vmem:[#allocation10 + $0x3d4] sm:$0xf]
    %v4179 = vld [vmem:[#allocation10 + $0x3d8] sm:$0xf]
    %v4180 = vld [vmem:[#allocation10 + $0x3dc] sm:$0xf]
    %v4181 = vld [vmem:[#allocation10 + $0x3e0] sm:$0xf]
    %v4182 = vld [vmem:[#allocation10 + $0x3e4] sm:$0xf]
    %v4183 = vld [vmem:[#allocation10 + $0x3e8] sm:$0xf]
    %v4184 = vld [vmem:[#allocation10 + $0x3ec] sm:$0xf]
    %v4185 = vld [vmem:[#allocation10 + $0x3f0] sm:$0xf]
    %v4186 = vld [vmem:[#allocation10 + $0x3f4] sm:$0xf]
    %v4187 = vld [vmem:[#allocation10 + $0x3f8] sm:$0xf]
    %v4188 = vld [vmem:[#allocation10 + $0x3fc] sm:$0xf]
    %v4189 = vld [vmem:[#allocation10 + $0x400] sm:$0xf]
    %v4190 = vld [vmem:[#allocation10 + $0x404] sm:$0xf]
    %v4191 = vld [vmem:[#allocation10 + $0x408] sm:$0xf]
    %v4192 = vld [vmem:[#allocation10 + $0x40c] sm:$0xf]
    %v4193 = vld [vmem:[#allocation10 + $0x410] sm:$0xf]
    %v4194 = vld [vmem:[#allocation10 + $0x414] sm:$0xf]
    %v4195 = vld [vmem:[#allocation10 + $0x418] sm:$0xf]
    %v4196 = vld [vmem:[#allocation10 + $0x41c] sm:$0xf]
    %v4197 = vld [vmem:[#allocation10 + $0x420] sm:$0xf]
    %v4198 = vld [vmem:[#allocation10 + $0x424] sm:$0xf]
    %v4199 = vld [vmem:[#allocation10 + $0x428] sm:$0xf]
    %v4200 = vld [vmem:[#allocation10 + $0x42c] sm:$0xf]
    %v4201 = vld [vmem:[#allocation10 + $0x430] sm:$0xf]
    %v4202 = vld [vmem:[#allocation10 + $0x434] sm:$0xf]
    %v4203 = vld [vmem:[#allocation10 + $0x438] sm:$0xf]
    %v4204 = vld [vmem:[#allocation10 + $0x43c] sm:$0xf]
    %v4205 = vld [vmem:[#allocation10 + $0x440] sm:$0xf]
    %v4206 = vld [vmem:[#allocation10 + $0x444] sm:$0xf]
    %v4207 = vld [vmem:[#allocation10 + $0x448] sm:$0xf]
    %v4208 = vld [vmem:[#allocation10 + $0x44c] sm:$0xf]
    %v4209 = vld [vmem:[#allocation10 + $0x450] sm:$0xf]
    %v4210 = vld [vmem:[#allocation10 + $0x454] sm:$0xf]
    %v4211 = vld [vmem:[#allocation10 + $0x458] sm:$0xf]
    %v4212 = vld [vmem:[#allocation10 + $0x45c] sm:$0xf]
    %v4213 = vld [vmem:[#allocation10 + $0x460] sm:$0xf]
    %v4214 = vld [vmem:[#allocation10 + $0x464] sm:$0xf]
    %v4215 = vld [vmem:[#allocation10 + $0x468] sm:$0xf]
    %v4216 = vld [vmem:[#allocation10 + $0x46c] sm:$0xf]
    %v4217 = vld [vmem:[#allocation10 + $0x470] sm:$0xf]
    %v4218 = vld [vmem:[#allocation10 + $0x474] sm:$0xf]
    %v4219 = vld [vmem:[#allocation10 + $0x478] sm:$0xf]
    %v4220 = vld [vmem:[#allocation10 + $0x47c] sm:$0xf]
    %v4221 = vld [vmem:[#allocation10 + $0x480] sm:$0xf]
    %v4222 = vld [vmem:[#allocation10 + $0x484] sm:$0xf]
    %v4223 = vld [vmem:[#allocation10 + $0x488] sm:$0xf]
    %v4224 = vld [vmem:[#allocation10 + $0x48c] sm:$0xf]
    %v4225 = vld [vmem:[#allocation10 + $0x490] sm:$0xf]
    %v4226 = vld [vmem:[#allocation10 + $0x494] sm:$0xf]
    %v4227 = vld [vmem:[#allocation10 + $0x498] sm:$0xf]
    %v4228 = vld [vmem:[#allocation10 + $0x49c] sm:$0xf]
    %v4229 = vld [vmem:[#allocation10 + $0x4a0] sm:$0xf]
    %v4230 = vld [vmem:[#allocation10 + $0x4a4] sm:$0xf]
    %v4231 = vld [vmem:[#allocation10 + $0x4a8] sm:$0xf]
    %v4232 = vld [vmem:[#allocation10 + $0x4ac] sm:$0xf]
    %v4233 = vld [vmem:[#allocation10 + $0x4b0] sm:$0xf]
    %v4234 = vld [vmem:[#allocation10 + $0x4b4] sm:$0xf]
    %v4235 = vld [vmem:[#allocation10 + $0x4b8] sm:$0xf]
    %v4236 = vld [vmem:[#allocation10 + $0x4bc] sm:$0xf]
    %v4237 = vld [vmem:[#allocation10 + $0x4c0] sm:$0xf]
    %v4238 = vld [vmem:[#allocation10 + $0x4c4] sm:$0xf]
    %v4239 = vld [vmem:[#allocation10 + $0x4c8] sm:$0xf]
    %v4240 = vld [vmem:[#allocation10 + $0x4cc] sm:$0xf]
    %v4241 = vld [vmem:[#allocation10 + $0x4d0] sm:$0xf]
    %v4242 = vld [vmem:[#allocation10 + $0x4d4] sm:$0xf]
    %v4243 = vld [vmem:[#allocation10 + $0x4d8] sm:$0xf]
    %v4244 = vld [vmem:[#allocation10 + $0x4dc] sm:$0xf]
    %v4245 = vld [vmem:[#allocation10 + $0x4e0] sm:$0xf]
    %v4246 = vld [vmem:[#allocation10 + $0x4e4] sm:$0xf]
    %v4247 = vld [vmem:[#allocation10 + $0x4e8] sm:$0xf]
    %v4248 = vld [vmem:[#allocation10 + $0x4ec] sm:$0xf]
    %v4249 = vld [vmem:[#allocation10 + $0x4f0] sm:$0xf]
    %v4250 = vld [vmem:[#allocation10 + $0x4f4] sm:$0xf]
    %v4251 = vld [vmem:[#allocation10 + $0x4f8] sm:$0xf]
    %v4252 = vld [vmem:[#allocation10 + $0x4fc] sm:$0xf]
    %v4253 = vld [vmem:[#allocation10 + $0x500] sm:$0xf]
    %v4254 = vld [vmem:[#allocation10 + $0x504] sm:$0xf]
    %v4255 = vld [vmem:[#allocation10 + $0x508] sm:$0xf]
    %v4256 = vld [vmem:[#allocation10 + $0x50c] sm:$0xf]
    %v4257 = vld [vmem:[#allocation10 + $0x510] sm:$0xf]
    %v4258 = vld [vmem:[#allocation10 + $0x514] sm:$0xf]
    %v4259 = vld [vmem:[#allocation10 + $0x518] sm:$0xf]
    %v4260 = vld [vmem:[#allocation10 + $0x51c] sm:$0xf]
    %v4261 = vld [vmem:[#allocation10 + $0x520] sm:$0xf]
    %v4262 = vld [vmem:[#allocation10 + $0x524] sm:$0xf]
    %v4263 = vld [vmem:[#allocation10 + $0x528] sm:$0xf]
    %v4264 = vld [vmem:[#allocation10 + $0x52c] sm:$0xf]
    %v4265 = vld [vmem:[#allocation10 + $0x530] sm:$0xf]
    %v4266 = vld [vmem:[#allocation10 + $0x534] sm:$0xf]
    %v4267 = vld [vmem:[#allocation10 + $0x538] sm:$0xf]
    %v4268 = vld [vmem:[#allocation10 + $0x53c] sm:$0xf]
    %v4269 = vld [vmem:[#allocation10 + $0x540] sm:$0xf]
    %v4270 = vld [vmem:[#allocation10 + $0x544] sm:$0xf]
    %v4271 = vld [vmem:[#allocation10 + $0x548] sm:$0xf]
    %v4272 = vld [vmem:[#allocation10 + $0x54c] sm:$0xf]
    %v4273 = vld [vmem:[#allocation10 + $0x550] sm:$0xf]
    %v4274 = vld [vmem:[#allocation10 + $0x554] sm:$0xf]
    %v4275 = vld [vmem:[#allocation10 + $0x558] sm:$0xf]
    %v4276 = vld [vmem:[#allocation10 + $0x55c] sm:$0xf]
    %v4277 = vld [vmem:[#allocation10 + $0x560] sm:$0xf]
    %v4278 = vld [vmem:[#allocation10 + $0x564] sm:$0xf]
    %v4279 = vld [vmem:[#allocation10 + $0x568] sm:$0xf]
    %v4280 = vld [vmem:[#allocation10 + $0x56c] sm:$0xf]
    %v4281 = vld [vmem:[#allocation10 + $0x570] sm:$0xf]
    %v4282 = vld [vmem:[#allocation10 + $0x574] sm:$0xf]
    %v4283 = vld [vmem:[#allocation10 + $0x578] sm:$0xf]
    %v4284 = vld [vmem:[#allocation10 + $0x57c] sm:$0xf]
    %v4285 = vld [vmem:[#allocation10 + $0x580] sm:$0xf]
    %v4286 = vld [vmem:[#allocation10 + $0x584] sm:$0xf]
    %v4287 = vld [vmem:[#allocation10 + $0x588] sm:$0xf]
    %v4288 = vld [vmem:[#allocation10 + $0x58c] sm:$0xf]
    %v4289 = vld [vmem:[#allocation10 + $0x590] sm:$0xf]
    %v4290 = vld [vmem:[#allocation10 + $0x594] sm:$0xf]
    %v4291 = vld [vmem:[#allocation10 + $0x598] sm:$0xf]
    %v4292 = vld [vmem:[#allocation10 + $0x59c] sm:$0xf]
    %v4293 = vld [vmem:[#allocation10 + $0x5a0] sm:$0xf]
    %v4294 = vld [vmem:[#allocation10 + $0x5a4] sm:$0xf]
    %v4295 = vld [vmem:[#allocation10 + $0x5a8] sm:$0xf]
    %v4296 = vld [vmem:[#allocation10 + $0x5ac] sm:$0xf]
    %v4297 = vld [vmem:[#allocation10 + $0x5b0] sm:$0xf]
    %v4298 = vld [vmem:[#allocation10 + $0x5b4] sm:$0xf]
    %v4299 = vld [vmem:[#allocation10 + $0x5b8] sm:$0xf]
    %v4300 = vld [vmem:[#allocation10 + $0x5bc] sm:$0xf]
    %v4301 = vld [vmem:[#allocation10 + $0x5c0] sm:$0xf]
    %v4302 = vld [vmem:[#allocation10 + $0x5c4] sm:$0xf]
    %v4303 = vld [vmem:[#allocation10 + $0x5c8] sm:$0xf]
    %v4304 = vld [vmem:[#allocation10 + $0x5cc] sm:$0xf]
    %v4305 = vld [vmem:[#allocation10 + $0x5d0] sm:$0xf]
    %v4306 = vld [vmem:[#allocation10 + $0x5d4] sm:$0xf]
    %v4307 = vld [vmem:[#allocation10 + $0x5d8] sm:$0xf]
    %v4308 = vld [vmem:[#allocation10 + $0x5dc] sm:$0xf]
    %v4309 = vld [vmem:[#allocation10 + $0x5e0] sm:$0xf]
    %v4310 = vld [vmem:[#allocation10 + $0x5e4] sm:$0xf]
    %v4311 = vld [vmem:[#allocation10 + $0x5e8] sm:$0xf]
    %v4312 = vld [vmem:[#allocation10 + $0x5ec] sm:$0xf]
    %v4313 = vld [vmem:[#allocation10 + $0x5f0] sm:$0xf]
    %v4314 = vld [vmem:[#allocation10 + $0x5f4] sm:$0xf]
    %v4315 = vld [vmem:[#allocation10 + $0x5f8] sm:$0xf]
    %v4316 = vld [vmem:[#allocation10 + $0x5fc] sm:$0xf]
    %v4317 = vld [vmem:[#allocation10 + $0x600] sm:$0xf]
    %v4318 = vld [vmem:[#allocation10 + $0x604] sm:$0xf]
    %v4319 = vld [vmem:[#allocation10 + $0x608] sm:$0xf]
    %v4320 = vld [vmem:[#allocation10 + $0x60c] sm:$0xf]
    %v4321 = vld [vmem:[#allocation10 + $0x610] sm:$0xf]
    %v4322 = vld [vmem:[#allocation10 + $0x614] sm:$0xf]
    %v4323 = vld [vmem:[#allocation10 + $0x618] sm:$0xf]
    %v4324 = vld [vmem:[#allocation10 + $0x61c] sm:$0xf]
    %v4325 = vld [vmem:[#allocation10 + $0x620] sm:$0xf]
    %v4326 = vld [vmem:[#allocation10 + $0x624] sm:$0xf]
    %v4327 = vld [vmem:[#allocation10 + $0x628] sm:$0xf]
    %v4328 = vld [vmem:[#allocation10 + $0x62c] sm:$0xf]
    %v4329 = vld [vmem:[#allocation10 + $0x630] sm:$0xf]
    %v4330 = vld [vmem:[#allocation10 + $0x634] sm:$0xf]
    %v4331 = vld [vmem:[#allocation10 + $0x638] sm:$0xf]
    %v4332 = vld [vmem:[#allocation10 + $0x63c] sm:$0xf]
    %v4333 = vld [vmem:[#allocation10 + $0x640] sm:$0xf]
    %v4334 = vld [vmem:[#allocation10 + $0x644] sm:$0xf]
    %v4335 = vld [vmem:[#allocation10 + $0x648] sm:$0xf]
    %v4336 = vld [vmem:[#allocation10 + $0x64c] sm:$0xf]
    %v4337 = vld [vmem:[#allocation10 + $0x650] sm:$0xf]
    %v4338 = vld [vmem:[#allocation10 + $0x654] sm:$0xf]
    %v4339 = vld [vmem:[#allocation10 + $0x658] sm:$0xf]
    %v4340 = vld [vmem:[#allocation10 + $0x65c] sm:$0xf]
    %v4341 = vld [vmem:[#allocation10 + $0x660] sm:$0xf]
    %v4342 = vld [vmem:[#allocation10 + $0x664] sm:$0xf]
    %v4343 = vld [vmem:[#allocation10 + $0x668] sm:$0xf]
    %v4344 = vld [vmem:[#allocation10 + $0x66c] sm:$0xf]
    %v4345 = vld [vmem:[#allocation10 + $0x670] sm:$0xf]
    %v4346 = vld [vmem:[#allocation10 + $0x674] sm:$0xf]
    %v4347 = vld [vmem:[#allocation10 + $0x678] sm:$0xf]
    %v4348 = vld [vmem:[#allocation10 + $0x67c] sm:$0xf]
    %v4349 = vld [vmem:[#allocation10 + $0x680] sm:$0xf]
    %v4350 = vld [vmem:[#allocation10 + $0x684] sm:$0xf]
    %v4351 = vld [vmem:[#allocation10 + $0x688] sm:$0xf]
    %v4352 = vld [vmem:[#allocation10 + $0x68c] sm:$0xf]
    %v4353 = vld [vmem:[#allocation10 + $0x690] sm:$0xf]
    %v4354 = vld [vmem:[#allocation10 + $0x694] sm:$0xf]
    %v4355 = vld [vmem:[#allocation10 + $0x698] sm:$0xf]
    %v4356 = vld [vmem:[#allocation10 + $0x69c] sm:$0xf]
    %v4357 = vld [vmem:[#allocation10 + $0x6a0] sm:$0xf]
    %v4358 = vld [vmem:[#allocation10 + $0x6a4] sm:$0xf]
    %v4359 = vld [vmem:[#allocation10 + $0x6a8] sm:$0xf]
    %v4360 = vld [vmem:[#allocation10 + $0x6ac] sm:$0xf]
    %v4361 = vld [vmem:[#allocation10 + $0x6b0] sm:$0xf]
    %v4362 = vld [vmem:[#allocation10 + $0x6b4] sm:$0xf]
    %v4363 = vld [vmem:[#allocation10 + $0x6b8] sm:$0xf]
    %v4364 = vld [vmem:[#allocation10 + $0x6bc] sm:$0xf]
    %v4365 = vld [vmem:[#allocation10 + $0x6c0] sm:$0xf]
    %v4366 = vld [vmem:[#allocation10 + $0x6c4] sm:$0xf]
    %v4367 = vld [vmem:[#allocation10 + $0x6c8] sm:$0xf]
    %v4368 = vld [vmem:[#allocation10 + $0x6cc] sm:$0xf]
    %v4369 = vld [vmem:[#allocation10 + $0x6d0] sm:$0xf]
    %v4370 = vld [vmem:[#allocation10 + $0x6d4] sm:$0xf]
    %v4371 = vld [vmem:[#allocation10 + $0x6d8] sm:$0xf]
    %v4372 = vld [vmem:[#allocation10 + $0x6dc] sm:$0xf]
    %v4373 = vld [vmem:[#allocation10 + $0x6e0] sm:$0xf]
    %v4374 = vld [vmem:[#allocation10 + $0x6e4] sm:$0xf]
    %v4375 = vld [vmem:[#allocation10 + $0x6e8] sm:$0xf]
    %v4376 = vld [vmem:[#allocation10 + $0x6ec] sm:$0xf]
    %v4377 = vld [vmem:[#allocation10 + $0x6f0] sm:$0xf]
    %v4378 = vld [vmem:[#allocation10 + $0x6f4] sm:$0xf]
    %v4379 = vld [vmem:[#allocation10 + $0x6f8] sm:$0xf]
    %v4380 = vld [vmem:[#allocation10 + $0x6fc] sm:$0xf]
    %v4381 = vld [vmem:[#allocation10 + $0x700] sm:$0xf]
    %v4382 = vld [vmem:[#allocation10 + $0x704] sm:$0xf]
    %v4383 = vld [vmem:[#allocation10 + $0x708] sm:$0xf]
    %v4384 = vld [vmem:[#allocation10 + $0x70c] sm:$0xf]
    %v4385 = vld [vmem:[#allocation10 + $0x710] sm:$0xf]
    %v4386 = vld [vmem:[#allocation10 + $0x714] sm:$0xf]
    %v4387 = vld [vmem:[#allocation10 + $0x718] sm:$0xf]
    %v4388 = vld [vmem:[#allocation10 + $0x71c] sm:$0xf]
    %v4389 = vld [vmem:[#allocation10 + $0x720] sm:$0xf]
    %v4390 = vld [vmem:[#allocation10 + $0x724] sm:$0xf]
    %v4391 = vld [vmem:[#allocation10 + $0x728] sm:$0xf]
    %v4392 = vld [vmem:[#allocation10 + $0x72c] sm:$0xf]
    %v4393 = vld [vmem:[#allocation10 + $0x730] sm:$0xf]
    %v4394 = vld [vmem:[#allocation10 + $0x734] sm:$0xf]
    %v4395 = vld [vmem:[#allocation10 + $0x738] sm:$0xf]
    %v4396 = vld [vmem:[#allocation10 + $0x73c] sm:$0xf]
    %v4397 = vld [vmem:[#allocation10 + $0x740] sm:$0xf]
    %v4398 = vld [vmem:[#allocation10 + $0x744] sm:$0xf]
    %v4399 = vld [vmem:[#allocation10 + $0x748] sm:$0xf]
    %v4400 = vld [vmem:[#allocation10 + $0x74c] sm:$0xf]
    %v4401 = vld [vmem:[#allocation10 + $0x750] sm:$0xf]
    %v4402 = vld [vmem:[#allocation10 + $0x754] sm:$0xf]
    %v4403 = vld [vmem:[#allocation10 + $0x758] sm:$0xf]
    %v4404 = vld [vmem:[#allocation10 + $0x75c] sm:$0xf]
    %v4405 = vld [vmem:[#allocation10 + $0x760] sm:$0xf]
    %v4406 = vld [vmem:[#allocation10 + $0x764] sm:$0xf]
    %v4407 = vld [vmem:[#allocation10 + $0x768] sm:$0xf]
    %v4408 = vld [vmem:[#allocation10 + $0x76c] sm:$0xf]
    %v4409 = vld [vmem:[#allocation10 + $0x770] sm:$0xf]
    %v4410 = vld [vmem:[#allocation10 + $0x774] sm:$0xf]
    %v4411 = vld [vmem:[#allocation10 + $0x778] sm:$0xf]
    %v4412 = vld [vmem:[#allocation10 + $0x77c] sm:$0xf]
    %v4413 = vld [vmem:[#allocation10 + $0x780] sm:$0xf]
    %v4414 = vld [vmem:[#allocation10 + $0x784] sm:$0xf]
    %v4415 = vld [vmem:[#allocation10 + $0x788] sm:$0xf]
    %v4416 = vld [vmem:[#allocation10 + $0x78c] sm:$0xf]
    %v4417 = vld [vmem:[#allocation10 + $0x790] sm:$0xf]
    %v4418 = vld [vmem:[#allocation10 + $0x794] sm:$0xf]
    %v4419 = vld [vmem:[#allocation10 + $0x798] sm:$0xf]
    %v4420 = vld [vmem:[#allocation10 + $0x79c] sm:$0xf]
    %v4421 = vld [vmem:[#allocation10 + $0x7a0] sm:$0xf]
    %v4422 = vld [vmem:[#allocation10 + $0x7a4] sm:$0xf]
    %v4423 = vld [vmem:[#allocation10 + $0x7a8] sm:$0xf]
    %v4424 = vld [vmem:[#allocation10 + $0x7ac] sm:$0xf]
    %v4425 = vld [vmem:[#allocation10 + $0x7b0] sm:$0xf]
    %v4426 = vld [vmem:[#allocation10 + $0x7b4] sm:$0xf]
    %v4427 = vld [vmem:[#allocation10 + $0x7b8] sm:$0xf]
    %v4428 = vld [vmem:[#allocation10 + $0x7bc] sm:$0xf]
    %v4429 = vld [vmem:[#allocation10 + $0x7c0] sm:$0xf]
    %v4430 = vld [vmem:[#allocation10 + $0x7c4] sm:$0xf]
    %v4431 = vld [vmem:[#allocation10 + $0x7c8] sm:$0xf]
    %v4432 = vld [vmem:[#allocation10 + $0x7cc] sm:$0xf]
    %v4433 = vld [vmem:[#allocation10 + $0x7d0] sm:$0xf]
    %v4434 = vld [vmem:[#allocation10 + $0x7d4] sm:$0xf]
    %v4435 = vld [vmem:[#allocation10 + $0x7d8] sm:$0xf]
    %v4436 = vld [vmem:[#allocation10 + $0x7dc] sm:$0xf]
    %v4437 = vld [vmem:[#allocation10 + $0x7e0] sm:$0xf]
    %v4438 = vld [vmem:[#allocation10 + $0x7e4] sm:$0xf]
    %v4439 = vld [vmem:[#allocation10 + $0x7e8] sm:$0xf]
    %v4440 = vld [vmem:[#allocation10 + $0x7ec] sm:$0xf]
    %v4441 = vld [vmem:[#allocation10 + $0x7f0] sm:$0xf]
    %v4442 = vld [vmem:[#allocation10 + $0x7f4] sm:$0xf]
    %v4443 = vld [vmem:[#allocation10 + $0x7f8] sm:$0xf]
    %v4444 = vld [vmem:[#allocation10 + $0x7fc] sm:$0xf]
    %v4445 = vld [vmem:[#allocation10 + $0x800] sm:$0xf]
    %v4446 = vld [vmem:[#allocation10 + $0x804] sm:$0xf]
    %v4447 = vld [vmem:[#allocation10 + $0x808] sm:$0xf]
    %v4448 = vld [vmem:[#allocation10 + $0x80c] sm:$0xf]
    %v4449 = vld [vmem:[#allocation10 + $0x810] sm:$0xf]
    %v4450 = vld [vmem:[#allocation10 + $0x814] sm:$0xf]
    %v4451 = vld [vmem:[#allocation10 + $0x818] sm:$0xf]
    %v4452 = vld [vmem:[#allocation10 + $0x81c] sm:$0xf]
    %v4453 = vld [vmem:[#allocation10 + $0x820] sm:$0xf]
    %v4454 = vld [vmem:[#allocation10 + $0x824] sm:$0xf]
    %v4455 = vld [vmem:[#allocation10 + $0x828] sm:$0xf]
    %v4456 = vld [vmem:[#allocation10 + $0x82c] sm:$0xf]
    %v4457 = vld [vmem:[#allocation10 + $0x830] sm:$0xf]
    %v4458 = vld [vmem:[#allocation10 + $0x834] sm:$0xf]
    %v4459 = vld [vmem:[#allocation10 + $0x838] sm:$0xf]
    %v4460 = vld [vmem:[#allocation10 + $0x83c] sm:$0xf]
    %v4461 = vld [vmem:[#allocation10 + $0x840] sm:$0xf]
    %v4462 = vld [vmem:[#allocation10 + $0x844] sm:$0xf]
    %v4463 = vld [vmem:[#allocation10 + $0x848] sm:$0xf]
    %v4464 = vld [vmem:[#allocation10 + $0x84c] sm:$0xf]
    %v4465 = vld [vmem:[#allocation10 + $0x850] sm:$0xf]
    %v4466 = vld [vmem:[#allocation10 + $0x854] sm:$0xf]
    %v4467 = vld [vmem:[#allocation10 + $0x858] sm:$0xf]
    %v4468 = vld [vmem:[#allocation10 + $0x85c] sm:$0xf]
    %v4469 = vld [vmem:[#allocation10 + $0x860] sm:$0xf]
    %v4470 = vld [vmem:[#allocation10 + $0x864] sm:$0xf]
    %v4471 = vld [vmem:[#allocation10 + $0x868] sm:$0xf]
    %v4472 = vld [vmem:[#allocation10 + $0x86c] sm:$0xf]
    %v4473 = vld [vmem:[#allocation10 + $0x870] sm:$0xf]
    %v4474 = vld [vmem:[#allocation10 + $0x874] sm:$0xf]
    %v4475 = vld [vmem:[#allocation10 + $0x878] sm:$0xf]
    %v4476 = vld [vmem:[#allocation10 + $0x87c] sm:$0xf]
    %v4477 = vld [vmem:[#allocation10 + $0x880] sm:$0xf]
    %v4478 = vld [vmem:[#allocation10 + $0x884] sm:$0xf]
    %v4479 = vld [vmem:[#allocation10 + $0x888] sm:$0xf]
    %v4480 = vld [vmem:[#allocation10 + $0x88c] sm:$0xf]
    %v4481 = vld [vmem:[#allocation10 + $0x890] sm:$0xf]
    %v4482 = vld [vmem:[#allocation10 + $0x894] sm:$0xf]
    %v4483 = vld [vmem:[#allocation10 + $0x898] sm:$0xf]
    %v4484 = vld [vmem:[#allocation10 + $0x89c] sm:$0xf]
    %v4485 = vld [vmem:[#allocation10 + $0x8a0] sm:$0xf]
    %v4486 = vld [vmem:[#allocation10 + $0x8a4] sm:$0xf]
    %v4487 = vld [vmem:[#allocation10 + $0x8a8] sm:$0xf]
    %v4488 = vld [vmem:[#allocation10 + $0x8ac] sm:$0xf]
    %v4489 = vld [vmem:[#allocation10 + $0x8b0] sm:$0xf]
    %v4490 = vld [vmem:[#allocation10 + $0x8b4] sm:$0xf]
    %v4491 = vld [vmem:[#allocation10 + $0x8b8] sm:$0xf]
    %v4492 = vld [vmem:[#allocation10 + $0x8bc] sm:$0xf]
    %v4493 = vld [vmem:[#allocation10 + $0x8c0] sm:$0xf]
    %v4494 = vld [vmem:[#allocation10 + $0x8c4] sm:$0xf]
    %v4495 = vld [vmem:[#allocation10 + $0x8c8] sm:$0xf]
    %v4496 = vld [vmem:[#allocation10 + $0x8cc] sm:$0xf]
    %v4497 = vld [vmem:[#allocation10 + $0x8d0] sm:$0xf]
    %v4498 = vld [vmem:[#allocation10 + $0x8d4] sm:$0xf]
    %v4499 = vld [vmem:[#allocation10 + $0x8d8] sm:$0xf]
    %v4500 = vld [vmem:[#allocation10 + $0x8dc] sm:$0xf]
    %v4501 = vld [vmem:[#allocation10 + $0x8e0] sm:$0xf]
    %v4502 = vld [vmem:[#allocation10 + $0x8e4] sm:$0xf]
    %v4503 = vld [vmem:[#allocation10 + $0x8e8] sm:$0xf]
    %v4504 = vld [vmem:[#allocation10 + $0x8ec] sm:$0xf]
    %v4505 = vld [vmem:[#allocation10 + $0x8f0] sm:$0xf]
    %v4506 = vld [vmem:[#allocation10 + $0x8f4] sm:$0xf]
    %v4507 = vld [vmem:[#allocation10 + $0x8f8] sm:$0xf]
    %v4508 = vld [vmem:[#allocation10 + $0x8fc] sm:$0xf]
    %v4509 = vld [vmem:[#allocation11] sm:$0x1]
    %v5086 = vunpack.c.l.b16 %v3933
    %v5087 = vunpack.c.l.b16 %v3934
    %v5088 = vunpack.c.l.b16 %v3935
    %v5089 = vunpack.c.l.b16 %v3936
    %v5090 = vunpack.c.l.b16 %v3937
    %v5091 = vunpack.c.l.b16 %v3938
    %v5092 = vunpack.c.l.b16 %v3939
    %v5093 = vunpack.c.l.b16 %v3940
    %v5094 = vunpack.c.l.b16 %v3941
    %v5095 = vunpack.c.l.b16 %v3942
    %v5096 = vunpack.c.l.b16 %v3943
    %v5097 = vunpack.c.l.b16 %v3944
    %v5098 = vunpack.c.l.b16 %v3945
    %v5099 = vunpack.c.l.b16 %v3946
    %v5100 = vunpack.c.l.b16 %v3947
    %v5101 = vunpack.c.l.b16 %v3948
    %v5102 = vunpack.c.l.b16 %v3949
    %v5103 = vunpack.c.l.b16 %v3950
    %v5104 = vunpack.c.l.b16 %v3951
    %v5105 = vunpack.c.l.b16 %v3952
    %v5106 = vunpack.c.l.b16 %v3953
    %v5107 = vunpack.c.l.b16 %v3954
    %v5108 = vunpack.c.l.b16 %v3955
    %v5109 = vunpack.c.l.b16 %v3956
    %v5110 = vunpack.c.l.b16 %v3957
    %v5111 = vunpack.c.l.b16 %v3958
    %v5112 = vunpack.c.l.b16 %v3959
    %v5113 = vunpack.c.l.b16 %v3960
    %v5114 = vunpack.c.l.b16 %v3961
    %v5115 = vunpack.c.l.b16 %v3962
    %v5116 = vunpack.c.l.b16 %v3963
    %v5117 = vunpack.c.l.b16 %v3964
    %v5118 = vunpack.c.l.b16 %v3965
    %v5119 = vunpack.c.l.b16 %v3966
    %v5120 = vunpack.c.l.b16 %v3967
    %v5121 = vunpack.c.l.b16 %v3968
    %v5122 = vunpack.c.l.b16 %v3969
    %v5123 = vunpack.c.l.b16 %v3970
    %v5124 = vunpack.c.l.b16 %v3971
    %v5125 = vunpack.c.l.b16 %v3972
    %v5126 = vunpack.c.l.b16 %v3973
    %v5127 = vunpack.c.l.b16 %v3974
    %v5128 = vunpack.c.l.b16 %v3975
    %v5129 = vunpack.c.l.b16 %v3976
    %v5130 = vunpack.c.l.b16 %v3977
    %v5131 = vunpack.c.l.b16 %v3978
    %v5132 = vunpack.c.l.b16 %v3979
    %v5133 = vunpack.c.l.b16 %v3980
    %v5134 = vunpack.c.l.b16 %v3981
    %v5135 = vunpack.c.l.b16 %v3982
    %v5136 = vunpack.c.l.b16 %v3983
    %v5137 = vunpack.c.l.b16 %v3984
    %v5138 = vunpack.c.l.b16 %v3985
    %v5139 = vunpack.c.l.b16 %v3986
    %v5140 = vunpack.c.l.b16 %v3987
    %v5141 = vunpack.c.l.b16 %v3988
    %v5142 = vunpack.c.l.b16 %v3989
    %v5143 = vunpack.c.l.b16 %v3990
    %v5144 = vunpack.c.l.b16 %v3991
    %v5145 = vunpack.c.l.b16 %v3992
    %v5146 = vunpack.c.l.b16 %v3993
    %v5147 = vunpack.c.l.b16 %v3994
    %v5148 = vunpack.c.l.b16 %v3995
    %v5149 = vunpack.c.l.b16 %v3996
    %v5150 = vunpack.c.l.b16 %v3997
    %v5151 = vunpack.c.l.b16 %v3998
    %v5152 = vunpack.c.l.b16 %v3999
    %v5153 = vunpack.c.l.b16 %v4000
    %v5154 = vunpack.c.l.b16 %v4001
    %v5155 = vunpack.c.l.b16 %v4002
    %v5156 = vunpack.c.l.b16 %v4003
    %v5157 = vunpack.c.l.b16 %v4004
    %v5158 = vunpack.c.l.b16 %v4005
    %v5159 = vunpack.c.l.b16 %v4006
    %v5160 = vunpack.c.l.b16 %v4007
    %v5161 = vunpack.c.l.b16 %v4008
    %v5162 = vunpack.c.l.b16 %v4009
    %v5163 = vunpack.c.l.b16 %v4010
    %v5164 = vunpack.c.l.b16 %v4011
    %v5165 = vunpack.c.l.b16 %v4012
    %v5166 = vunpack.c.l.b16 %v4013
    %v5167 = vunpack.c.l.b16 %v4014
    %v5168 = vunpack.c.l.b16 %v4015
    %v5169 = vunpack.c.l.b16 %v4016
    %v5170 = vunpack.c.l.b16 %v4017
    %v5171 = vunpack.c.l.b16 %v4018
    %v5172 = vunpack.c.l.b16 %v4019
    %v5173 = vunpack.c.l.b16 %v4020
    %v5174 = vunpack.c.l.b16 %v4021
    %v5175 = vunpack.c.l.b16 %v4022
    %v5176 = vunpack.c.l.b16 %v4023
    %v5177 = vunpack.c.l.b16 %v4024
    %v5178 = vunpack.c.l.b16 %v4025
    %v5179 = vunpack.c.l.b16 %v4026
    %v5180 = vunpack.c.l.b16 %v4027
    %v5181 = vunpack.c.l.b16 %v4028
    %v5182 = vunpack.c.l.b16 %v4029
    %v5183 = vunpack.c.l.b16 %v4030
    %v5184 = vunpack.c.l.b16 %v4031
    %v5185 = vunpack.c.l.b16 %v4032
    %v5186 = vunpack.c.l.b16 %v4033
    %v5187 = vunpack.c.l.b16 %v4034
    %v5188 = vunpack.c.l.b16 %v4035
    %v5189 = vunpack.c.l.b16 %v4036
    %v5190 = vunpack.c.l.b16 %v4037
    %v5191 = vunpack.c.l.b16 %v4038
    %v5192 = vunpack.c.l.b16 %v4039
    %v5193 = vunpack.c.l.b16 %v4040
    %v5194 = vunpack.c.l.b16 %v4041
    %v5195 = vunpack.c.l.b16 %v4042
    %v5196 = vunpack.c.l.b16 %v4043
    %v5197 = vunpack.c.l.b16 %v4044
    %v5198 = vunpack.c.l.b16 %v4045
    %v5199 = vunpack.c.l.b16 %v4046
    %v5200 = vunpack.c.l.b16 %v4047
    %v5201 = vunpack.c.l.b16 %v4048
    %v5202 = vunpack.c.l.b16 %v4049
    %v5203 = vunpack.c.l.b16 %v4050
    %v5204 = vunpack.c.l.b16 %v4051
    %v5205 = vunpack.c.l.b16 %v4052
    %v5206 = vunpack.c.l.b16 %v4053
    %v5207 = vunpack.c.l.b16 %v4054
    %v5208 = vunpack.c.l.b16 %v4055
    %v5209 = vunpack.c.l.b16 %v4056
    %v5210 = vunpack.c.l.b16 %v4057
    %v5211 = vunpack.c.l.b16 %v4058
    %v5212 = vunpack.c.l.b16 %v4059
    %v5213 = vunpack.c.l.b16 %v4060
    %v5214 = vunpack.c.l.b16 %v4061
    %v5215 = vunpack.c.l.b16 %v4062
    %v5216 = vunpack.c.l.b16 %v4063
    %v5217 = vunpack.c.l.b16 %v4064
    %v5218 = vunpack.c.l.b16 %v4065
    %v5219 = vunpack.c.l.b16 %v4066
    %v5220 = vunpack.c.l.b16 %v4067
    %v5221 = vunpack.c.l.b16 %v4068
    %v5222 = vunpack.c.l.b16 %v4069
    %v5223 = vunpack.c.l.b16 %v4070
    %v5224 = vunpack.c.l.b16 %v4071
    %v5225 = vunpack.c.l.b16 %v4072
    %v5226 = vunpack.c.l.b16 %v4073
    %v5227 = vunpack.c.l.b16 %v4074
    %v5228 = vunpack.c.l.b16 %v4075
    %v5229 = vunpack.c.l.b16 %v4076
    %v5230 = vunpack.c.l.b16 %v4077
    %v5231 = vunpack.c.l.b16 %v4078
    %v5232 = vunpack.c.l.b16 %v4079
    %v5233 = vunpack.c.l.b16 %v4080
    %v5234 = vunpack.c.l.b16 %v4081
    %v5235 = vunpack.c.l.b16 %v4082
    %v5236 = vunpack.c.l.b16 %v4083
    %v5237 = vunpack.c.l.b16 %v4084
    %v5238 = vunpack.c.l.b16 %v4085
    %v5239 = vunpack.c.l.b16 %v4086
    %v5240 = vunpack.c.l.b16 %v4087
    %v5241 = vunpack.c.l.b16 %v4088
    %v5242 = vunpack.c.l.b16 %v4089
    %v5243 = vunpack.c.l.b16 %v4090
    %v5244 = vunpack.c.l.b16 %v4091
    %v5245 = vunpack.c.l.b16 %v4092
    %v5246 = vunpack.c.l.b16 %v4093
    %v5247 = vunpack.c.l.b16 %v4094
    %v5248 = vunpack.c.l.b16 %v4095
    %v5249 = vunpack.c.l.b16 %v4096
    %v5250 = vunpack.c.l.b16 %v4097
    %v5251 = vunpack.c.l.b16 %v4098
    %v5252 = vunpack.c.l.b16 %v4099
    %v5253 = vunpack.c.l.b16 %v4100
    %v5254 = vunpack.c.l.b16 %v4101
    %v5255 = vunpack.c.l.b16 %v4102
    %v5256 = vunpack.c.l.b16 %v4103
    %v5257 = vunpack.c.l.b16 %v4104
    %v5258 = vunpack.c.l.b16 %v4105
    %v5259 = vunpack.c.l.b16 %v4106
    %v5260 = vunpack.c.l.b16 %v4107
    %v5261 = vunpack.c.l.b16 %v4108
    %v5262 = vunpack.c.l.b16 %v4109
    %v5263 = vunpack.c.l.b16 %v4110
    %v5264 = vunpack.c.l.b16 %v4111
    %v5265 = vunpack.c.l.b16 %v4112
    %v5266 = vunpack.c.l.b16 %v4113
    %v5267 = vunpack.c.l.b16 %v4114
    %v5268 = vunpack.c.l.b16 %v4115
    %v5269 = vunpack.c.l.b16 %v4116
    %v5270 = vunpack.c.l.b16 %v4117
    %v5271 = vunpack.c.l.b16 %v4118
    %v5272 = vunpack.c.l.b16 %v4119
    %v5273 = vunpack.c.l.b16 %v4120
    %v5274 = vunpack.c.l.b16 %v4121
    %v5275 = vunpack.c.l.b16 %v4122
    %v5276 = vunpack.c.l.b16 %v4123
    %v5277 = vunpack.c.l.b16 %v4124
    %v5278 = vunpack.c.l.b16 %v4125
    %v5279 = vunpack.c.l.b16 %v4126
    %v5280 = vunpack.c.l.b16 %v4127
    %v5281 = vunpack.c.l.b16 %v4128
    %v5282 = vunpack.c.l.b16 %v4129
    %v5283 = vunpack.c.l.b16 %v4130
    %v5284 = vunpack.c.l.b16 %v4131
    %v5285 = vunpack.c.l.b16 %v4132
    %v5286 = vunpack.c.l.b16 %v4133
    %v5287 = vunpack.c.l.b16 %v4134
    %v5288 = vunpack.c.l.b16 %v4135
    %v5289 = vunpack.c.l.b16 %v4136
    %v5290 = vunpack.c.l.b16 %v4137
    %v5291 = vunpack.c.l.b16 %v4138
    %v5292 = vunpack.c.l.b16 %v4139
    %v5293 = vunpack.c.l.b16 %v4140
    %v5294 = vunpack.c.l.b16 %v4141
    %v5295 = vunpack.c.l.b16 %v4142
    %v5296 = vunpack.c.l.b16 %v4143
    %v5297 = vunpack.c.l.b16 %v4144
    %v5298 = vunpack.c.l.b16 %v4145
    %v5299 = vunpack.c.l.b16 %v4146
    %v5300 = vunpack.c.l.b16 %v4147
    %v5301 = vunpack.c.l.b16 %v4148
    %v5302 = vunpack.c.l.b16 %v4149
    %v5303 = vunpack.c.l.b16 %v4150
    %v5304 = vunpack.c.l.b16 %v4151
    %v5305 = vunpack.c.l.b16 %v4152
    %v5306 = vunpack.c.l.b16 %v4153
    %v5307 = vunpack.c.l.b16 %v4154
    %v5308 = vunpack.c.l.b16 %v4155
    %v5309 = vunpack.c.l.b16 %v4156
    %v5310 = vunpack.c.l.b16 %v4157
    %v5311 = vunpack.c.l.b16 %v4158
    %v5312 = vunpack.c.l.b16 %v4159
    %v5313 = vunpack.c.l.b16 %v4160
    %v5314 = vunpack.c.l.b16 %v4161
    %v5315 = vunpack.c.l.b16 %v4162
    %v5316 = vunpack.c.l.b16 %v4163
    %v5317 = vunpack.c.l.b16 %v4164
    %v5318 = vunpack.c.l.b16 %v4165
    %v5319 = vunpack.c.l.b16 %v4166
    %v5320 = vunpack.c.l.b16 %v4167
    %v5321 = vunpack.c.l.b16 %v4168
    %v5322 = vunpack.c.l.b16 %v4169
    %v5323 = vunpack.c.l.b16 %v4170
    %v5324 = vunpack.c.l.b16 %v4171
    %v5325 = vunpack.c.l.b16 %v4172
    %v5326 = vunpack.c.l.b16 %v4173
    %v5327 = vunpack.c.l.b16 %v4174
    %v5328 = vunpack.c.l.b16 %v4175
    %v5329 = vunpack.c.l.b16 %v4176
    %v5330 = vunpack.c.l.b16 %v4177
    %v5331 = vunpack.c.l.b16 %v4178
    %v5332 = vunpack.c.l.b16 %v4179
    %v5333 = vunpack.c.l.b16 %v4180
    %v5334 = vunpack.c.l.b16 %v4181
    %v5335 = vunpack.c.l.b16 %v4182
    %v5336 = vunpack.c.l.b16 %v4183
    %v5337 = vunpack.c.l.b16 %v4184
    %v5338 = vunpack.c.l.b16 %v4185
    %v5339 = vunpack.c.l.b16 %v4186
    %v5340 = vunpack.c.l.b16 %v4187
    %v5341 = vunpack.c.l.b16 %v4188
    %v5342 = vunpack.c.l.b16 %v4189
    %v5343 = vunpack.c.l.b16 %v4190
    %v5344 = vunpack.c.l.b16 %v4191
    %v5345 = vunpack.c.l.b16 %v4192
    %v5346 = vunpack.c.l.b16 %v4193
    %v5347 = vunpack.c.l.b16 %v4194
    %v5348 = vunpack.c.l.b16 %v4195
    %v5349 = vunpack.c.l.b16 %v4196
    %v5350 = vunpack.c.l.b16 %v4197
    %v5351 = vunpack.c.l.b16 %v4198
    %v5352 = vunpack.c.l.b16 %v4199
    %v5353 = vunpack.c.l.b16 %v4200
    %v5354 = vunpack.c.l.b16 %v4201
    %v5355 = vunpack.c.l.b16 %v4202
    %v5356 = vunpack.c.l.b16 %v4203
    %v5357 = vunpack.c.l.b16 %v4204
    %v5358 = vunpack.c.l.b16 %v4205
    %v5359 = vunpack.c.l.b16 %v4206
    %v5360 = vunpack.c.l.b16 %v4207
    %v5361 = vunpack.c.l.b16 %v4208
    %v5362 = vunpack.c.l.b16 %v4209
    %v5363 = vunpack.c.l.b16 %v4210
    %v5364 = vunpack.c.l.b16 %v4211
    %v5365 = vunpack.c.l.b16 %v4212
    %v5366 = vunpack.c.l.b16 %v4213
    %v5367 = vunpack.c.l.b16 %v4214
    %v5368 = vunpack.c.l.b16 %v4215
    %v5369 = vunpack.c.l.b16 %v4216
    %v5370 = vunpack.c.l.b16 %v4217
    %v5371 = vunpack.c.l.b16 %v4218
    %v5372 = vunpack.c.l.b16 %v4219
    %v5373 = vunpack.c.l.b16 %v4220
    %v5374 = vunpack.c.l.b16 %v4221
    %v5375 = vunpack.c.l.b16 %v4222
    %v5376 = vunpack.c.l.b16 %v4223
    %v5377 = vunpack.c.l.b16 %v4224
    %v5378 = vunpack.c.l.b16 %v4225
    %v5379 = vunpack.c.l.b16 %v4226
    %v5380 = vunpack.c.l.b16 %v4227
    %v5381 = vunpack.c.l.b16 %v4228
    %v5382 = vunpack.c.l.b16 %v4229
    %v5383 = vunpack.c.l.b16 %v4230
    %v5384 = vunpack.c.l.b16 %v4231
    %v5385 = vunpack.c.l.b16 %v4232
    %v5386 = vunpack.c.l.b16 %v4233
    %v5387 = vunpack.c.l.b16 %v4234
    %v5388 = vunpack.c.l.b16 %v4235
    %v5389 = vunpack.c.l.b16 %v4236
    %v5390 = vunpack.c.l.b16 %v4237
    %v5391 = vunpack.c.l.b16 %v4238
    %v5392 = vunpack.c.l.b16 %v4239
    %v5393 = vunpack.c.l.b16 %v4240
    %v5394 = vunpack.c.l.b16 %v4241
    %v5395 = vunpack.c.l.b16 %v4242
    %v5396 = vunpack.c.l.b16 %v4243
    %v5397 = vunpack.c.l.b16 %v4244
    %v5398 = vunpack.c.l.b16 %v4245
    %v5399 = vunpack.c.l.b16 %v4246
    %v5400 = vunpack.c.l.b16 %v4247
    %v5401 = vunpack.c.l.b16 %v4248
    %v5402 = vunpack.c.l.b16 %v4249
    %v5403 = vunpack.c.l.b16 %v4250
    %v5404 = vunpack.c.l.b16 %v4251
    %v5405 = vunpack.c.l.b16 %v4252
    %v5406 = vunpack.c.l.b16 %v4253
    %v5407 = vunpack.c.l.b16 %v4254
    %v5408 = vunpack.c.l.b16 %v4255
    %v5409 = vunpack.c.l.b16 %v4256
    %v5410 = vunpack.c.l.b16 %v4257
    %v5411 = vunpack.c.l.b16 %v4258
    %v5412 = vunpack.c.l.b16 %v4259
    %v5413 = vunpack.c.l.b16 %v4260
    %v5414 = vunpack.c.l.b16 %v4261
    %v5415 = vunpack.c.l.b16 %v4262
    %v5416 = vunpack.c.l.b16 %v4263
    %v5417 = vunpack.c.l.b16 %v4264
    %v5418 = vunpack.c.l.b16 %v4265
    %v5419 = vunpack.c.l.b16 %v4266
    %v5420 = vunpack.c.l.b16 %v4267
    %v5421 = vunpack.c.l.b16 %v4268
    %v5422 = vunpack.c.l.b16 %v4269
    %v5423 = vunpack.c.l.b16 %v4270
    %v5424 = vunpack.c.l.b16 %v4271
    %v5425 = vunpack.c.l.b16 %v4272
    %v5426 = vunpack.c.l.b16 %v4273
    %v5427 = vunpack.c.l.b16 %v4274
    %v5428 = vunpack.c.l.b16 %v4275
    %v5429 = vunpack.c.l.b16 %v4276
    %v5430 = vunpack.c.l.b16 %v4277
    %v5431 = vunpack.c.l.b16 %v4278
    %v5432 = vunpack.c.l.b16 %v4279
    %v5433 = vunpack.c.l.b16 %v4280
    %v5434 = vunpack.c.l.b16 %v4281
    %v5435 = vunpack.c.l.b16 %v4282
    %v5436 = vunpack.c.l.b16 %v4283
    %v5437 = vunpack.c.l.b16 %v4284
    %v5438 = vunpack.c.l.b16 %v4285
    %v5439 = vunpack.c.l.b16 %v4286
    %v5440 = vunpack.c.l.b16 %v4287
    %v5441 = vunpack.c.l.b16 %v4288
    %v5442 = vunpack.c.l.b16 %v4289
    %v5443 = vunpack.c.l.b16 %v4290
    %v5444 = vunpack.c.l.b16 %v4291
    %v5445 = vunpack.c.l.b16 %v4292
    %v5446 = vunpack.c.l.b16 %v4293
    %v5447 = vunpack.c.l.b16 %v4294
    %v5448 = vunpack.c.l.b16 %v4295
    %v5449 = vunpack.c.l.b16 %v4296
    %v5450 = vunpack.c.l.b16 %v4297
    %v5451 = vunpack.c.l.b16 %v4298
    %v5452 = vunpack.c.l.b16 %v4299
    %v5453 = vunpack.c.l.b16 %v4300
    %v5454 = vunpack.c.l.b16 %v4301
    %v5455 = vunpack.c.l.b16 %v4302
    %v5456 = vunpack.c.l.b16 %v4303
    %v5457 = vunpack.c.l.b16 %v4304
    %v5458 = vunpack.c.l.b16 %v4305
    %v5459 = vunpack.c.l.b16 %v4306
    %v5460 = vunpack.c.l.b16 %v4307
    %v5461 = vunpack.c.l.b16 %v4308
    %v5462 = vunpack.c.l.b16 %v4309
    %v5463 = vunpack.c.l.b16 %v4310
    %v5464 = vunpack.c.l.b16 %v4311
    %v5465 = vunpack.c.l.b16 %v4312
    %v5466 = vunpack.c.l.b16 %v4313
    %v5467 = vunpack.c.l.b16 %v4314
    %v5468 = vunpack.c.l.b16 %v4315
    %v5469 = vunpack.c.l.b16 %v4316
    %v5470 = vunpack.c.l.b16 %v4317
    %v5471 = vunpack.c.l.b16 %v4318
    %v5472 = vunpack.c.l.b16 %v4319
    %v5473 = vunpack.c.l.b16 %v4320
    %v5474 = vunpack.c.l.b16 %v4321
    %v5475 = vunpack.c.l.b16 %v4322
    %v5476 = vunpack.c.l.b16 %v4323
    %v5477 = vunpack.c.l.b16 %v4324
    %v5478 = vunpack.c.l.b16 %v4325
    %v5479 = vunpack.c.l.b16 %v4326
    %v5480 = vunpack.c.l.b16 %v4327
    %v5481 = vunpack.c.l.b16 %v4328
    %v5482 = vunpack.c.l.b16 %v4329
    %v5483 = vunpack.c.l.b16 %v4330
    %v5484 = vunpack.c.l.b16 %v4331
    %v5485 = vunpack.c.l.b16 %v4332
    %v5486 = vunpack.c.l.b16 %v4333
    %v5487 = vunpack.c.l.b16 %v4334
    %v5488 = vunpack.c.l.b16 %v4335
    %v5489 = vunpack.c.l.b16 %v4336
    %v5490 = vunpack.c.l.b16 %v4337
    %v5491 = vunpack.c.l.b16 %v4338
    %v5492 = vunpack.c.l.b16 %v4339
    %v5493 = vunpack.c.l.b16 %v4340
    %v5494 = vunpack.c.l.b16 %v4341
    %v5495 = vunpack.c.l.b16 %v4342
    %v5496 = vunpack.c.l.b16 %v4343
    %v5497 = vunpack.c.l.b16 %v4344
    %v5498 = vunpack.c.l.b16 %v4345
    %v5499 = vunpack.c.l.b16 %v4346
    %v5500 = vunpack.c.l.b16 %v4347
    %v5501 = vunpack.c.l.b16 %v4348
    %v5502 = vunpack.c.l.b16 %v4349
    %v5503 = vunpack.c.l.b16 %v4350
    %v5504 = vunpack.c.l.b16 %v4351
    %v5505 = vunpack.c.l.b16 %v4352
    %v5506 = vunpack.c.l.b16 %v4353
    %v5507 = vunpack.c.l.b16 %v4354
    %v5508 = vunpack.c.l.b16 %v4355
    %v5509 = vunpack.c.l.b16 %v4356
    %v5510 = vunpack.c.l.b16 %v4357
    %v5511 = vunpack.c.l.b16 %v4358
    %v5512 = vunpack.c.l.b16 %v4359
    %v5513 = vunpack.c.l.b16 %v4360
    %v5514 = vunpack.c.l.b16 %v4361
    %v5515 = vunpack.c.l.b16 %v4362
    %v5516 = vunpack.c.l.b16 %v4363
    %v5517 = vunpack.c.l.b16 %v4364
    %v5518 = vunpack.c.l.b16 %v4365
    %v5519 = vunpack.c.l.b16 %v4366
    %v5520 = vunpack.c.l.b16 %v4367
    %v5521 = vunpack.c.l.b16 %v4368
    %v5522 = vunpack.c.l.b16 %v4369
    %v5523 = vunpack.c.l.b16 %v4370
    %v5524 = vunpack.c.l.b16 %v4371
    %v5525 = vunpack.c.l.b16 %v4372
    %v5526 = vunpack.c.l.b16 %v4373
    %v5527 = vunpack.c.l.b16 %v4374
    %v5528 = vunpack.c.l.b16 %v4375
    %v5529 = vunpack.c.l.b16 %v4376
    %v5530 = vunpack.c.l.b16 %v4377
    %v5531 = vunpack.c.l.b16 %v4378
    %v5532 = vunpack.c.l.b16 %v4379
    %v5533 = vunpack.c.l.b16 %v4380
    %v5534 = vunpack.c.l.b16 %v4381
    %v5535 = vunpack.c.l.b16 %v4382
    %v5536 = vunpack.c.l.b16 %v4383
    %v5537 = vunpack.c.l.b16 %v4384
    %v5538 = vunpack.c.l.b16 %v4385
    %v5539 = vunpack.c.l.b16 %v4386
    %v5540 = vunpack.c.l.b16 %v4387
    %v5541 = vunpack.c.l.b16 %v4388
    %v5542 = vunpack.c.l.b16 %v4389
    %v5543 = vunpack.c.l.b16 %v4390
    %v5544 = vunpack.c.l.b16 %v4391
    %v5545 = vunpack.c.l.b16 %v4392
    %v5546 = vunpack.c.l.b16 %v4393
    %v5547 = vunpack.c.l.b16 %v4394
    %v5548 = vunpack.c.l.b16 %v4395
    %v5549 = vunpack.c.l.b16 %v4396
    %v5550 = vunpack.c.l.b16 %v4397
    %v5551 = vunpack.c.l.b16 %v4398
    %v5552 = vunpack.c.l.b16 %v4399
    %v5553 = vunpack.c.l.b16 %v4400
    %v5554 = vunpack.c.l.b16 %v4401
    %v5555 = vunpack.c.l.b16 %v4402
    %v5556 = vunpack.c.l.b16 %v4403
    %v5557 = vunpack.c.l.b16 %v4404
    %v5558 = vunpack.c.l.b16 %v4405
    %v5559 = vunpack.c.l.b16 %v4406
    %v5560 = vunpack.c.l.b16 %v4407
    %v5561 = vunpack.c.l.b16 %v4408
    %v5562 = vunpack.c.l.b16 %v4409
    %v5563 = vunpack.c.l.b16 %v4410
    %v5564 = vunpack.c.l.b16 %v4411
    %v5565 = vunpack.c.l.b16 %v4412
    %v5566 = vunpack.c.l.b16 %v4413
    %v5567 = vunpack.c.l.b16 %v4414
    %v5568 = vunpack.c.l.b16 %v4415
    %v5569 = vunpack.c.l.b16 %v4416
    %v5570 = vunpack.c.l.b16 %v4417
    %v5571 = vunpack.c.l.b16 %v4418
    %v5572 = vunpack.c.l.b16 %v4419
    %v5573 = vunpack.c.l.b16 %v4420
    %v5574 = vunpack.c.l.b16 %v4421
    %v5575 = vunpack.c.l.b16 %v4422
    %v5576 = vunpack.c.l.b16 %v4423
    %v5577 = vunpack.c.l.b16 %v4424
    %v5578 = vunpack.c.l.b16 %v4425
    %v5579 = vunpack.c.l.b16 %v4426
    %v5580 = vunpack.c.l.b16 %v4427
    %v5581 = vunpack.c.l.b16 %v4428
    %v5582 = vunpack.c.l.b16 %v4429
    %v5583 = vunpack.c.l.b16 %v4430
    %v5584 = vunpack.c.l.b16 %v4431
    %v5585 = vunpack.c.l.b16 %v4432
    %v5586 = vunpack.c.l.b16 %v4433
    %v5587 = vunpack.c.l.b16 %v4434
    %v5588 = vunpack.c.l.b16 %v4435
    %v5589 = vunpack.c.l.b16 %v4436
    %v5590 = vunpack.c.l.b16 %v4437
    %v5591 = vunpack.c.l.b16 %v4438
    %v5592 = vunpack.c.l.b16 %v4439
    %v5593 = vunpack.c.l.b16 %v4440
    %v5594 = vunpack.c.l.b16 %v4441
    %v5595 = vunpack.c.l.b16 %v4442
    %v5596 = vunpack.c.l.b16 %v4443
    %v5597 = vunpack.c.l.b16 %v4444
    %v5598 = vunpack.c.l.b16 %v4445
    %v5599 = vunpack.c.l.b16 %v4446
    %v5600 = vunpack.c.l.b16 %v4447
    %v5601 = vunpack.c.l.b16 %v4448
    %v5602 = vunpack.c.l.b16 %v4449
    %v5603 = vunpack.c.l.b16 %v4450
    %v5604 = vunpack.c.l.b16 %v4451
    %v5605 = vunpack.c.l.b16 %v4452
    %v5606 = vunpack.c.l.b16 %v4453
    %v5607 = vunpack.c.l.b16 %v4454
    %v5608 = vunpack.c.l.b16 %v4455
    %v5609 = vunpack.c.l.b16 %v4456
    %v5610 = vunpack.c.l.b16 %v4457
    %v5611 = vunpack.c.l.b16 %v4458
    %v5612 = vunpack.c.l.b16 %v4459
    %v5613 = vunpack.c.l.b16 %v4460
    %v5614 = vunpack.c.l.b16 %v4461
    %v5615 = vunpack.c.l.b16 %v4462
    %v5616 = vunpack.c.l.b16 %v4463
    %v5617 = vunpack.c.l.b16 %v4464
    %v5618 = vunpack.c.l.b16 %v4465
    %v5619 = vunpack.c.l.b16 %v4466
    %v5620 = vunpack.c.l.b16 %v4467
    %v5621 = vunpack.c.l.b16 %v4468
    %v5622 = vunpack.c.l.b16 %v4469
    %v5623 = vunpack.c.l.b16 %v4470
    %v5624 = vunpack.c.l.b16 %v4471
    %v5625 = vunpack.c.l.b16 %v4472
    %v5626 = vunpack.c.l.b16 %v4473
    %v5627 = vunpack.c.l.b16 %v4474
    %v5628 = vunpack.c.l.b16 %v4475
    %v5629 = vunpack.c.l.b16 %v4476
    %v5630 = vunpack.c.l.b16 %v4477
    %v5631 = vunpack.c.l.b16 %v4478
    %v5632 = vunpack.c.l.b16 %v4479
    %v5633 = vunpack.c.l.b16 %v4480
    %v5634 = vunpack.c.l.b16 %v4481
    %v5635 = vunpack.c.l.b16 %v4482
    %v5636 = vunpack.c.l.b16 %v4483
    %v5637 = vunpack.c.l.b16 %v4484
    %v5638 = vunpack.c.l.b16 %v4485
    %v5639 = vunpack.c.l.b16 %v4486
    %v5640 = vunpack.c.l.b16 %v4487
    %v5641 = vunpack.c.l.b16 %v4488
    %v5642 = vunpack.c.l.b16 %v4489
    %v5643 = vunpack.c.l.b16 %v4490
    %v5644 = vunpack.c.l.b16 %v4491
    %v5645 = vunpack.c.l.b16 %v4492
    %v5646 = vunpack.c.l.b16 %v4493
    %v5647 = vunpack.c.l.b16 %v4494
    %v5648 = vunpack.c.l.b16 %v4495
    %v5649 = vunpack.c.l.b16 %v4496
    %v5650 = vunpack.c.l.b16 %v4497
    %v5651 = vunpack.c.l.b16 %v4498
    %v5652 = vunpack.c.l.b16 %v4499
    %v5653 = vunpack.c.l.b16 %v4500
    %v5654 = vunpack.c.l.b16 %v4501
    %v5655 = vunpack.c.l.b16 %v4502
    %v5656 = vunpack.c.l.b16 %v4503
    %v5657 = vunpack.c.l.b16 %v4504
    %v5658 = vunpack.c.l.b16 %v4505
    %v5659 = vunpack.c.l.b16 %v4506
    %v5660 = vunpack.c.l.b16 %v4507
    %v5661 = vunpack.c.l.b16 %v4508
    %v5662 = vpack.c.b16 %v5087, %v5086
    %v5663 = vpack.c.b16 %v5089, %v5088
    %v5664 = vpack.c.b16 %v5091, %v5090
    %v5665 = vpack.c.b16 %v5093, %v5092
    %v5666 = vpack.c.b16 %v5095, %v5094
    %v5667 = vpack.c.b16 %v5097, %v5096
    %v5668 = vpack.c.b16 %v5099, %v5098
    %v5669 = vpack.c.b16 %v5101, %v5100
    %v5670 = vpack.c.b16 %v5103, %v5102
    %v5671 = vpack.c.b16 %v5105, %v5104
    %v5672 = vpack.c.b16 %v5107, %v5106
    %v5673 = vpack.c.b16 %v5109, %v5108
    %v5674 = vpack.c.b16 %v5111, %v5110
    %v5675 = vpack.c.b16 %v5113, %v5112
    %v5676 = vpack.c.b16 %v5115, %v5114
    %v5677 = vpack.c.b16 %v5117, %v5116
    %v5678 = vpack.c.b16 %v5119, %v5118
    %v5679 = vpack.c.b16 %v5121, %v5120
    %v5680 = vpack.c.b16 %v5123, %v5122
    %v5681 = vpack.c.b16 %v5125, %v5124
    %v5682 = vpack.c.b16 %v5127, %v5126
    %v5683 = vpack.c.b16 %v5129, %v5128
    %v5684 = vpack.c.b16 %v5131, %v5130
    %v5685 = vpack.c.b16 %v5133, %v5132
    %v5686 = vpack.c.b16 %v5135, %v5134
    %v5687 = vpack.c.b16 %v5137, %v5136
    %v5688 = vpack.c.b16 %v5139, %v5138
    %v5689 = vpack.c.b16 %v5141, %v5140
    %v5690 = vpack.c.b16 %v5143, %v5142
    %v5691 = vpack.c.b16 %v5145, %v5144
    %v5692 = vpack.c.b16 %v5147, %v5146
    %v5693 = vpack.c.b16 %v5149, %v5148
    %v5694 = vpack.c.b16 %v5151, %v5150
    %v5695 = vpack.c.b16 %v5153, %v5152
    %v5696 = vpack.c.b16 %v5155, %v5154
    %v5697 = vpack.c.b16 %v5157, %v5156
    %v5698 = vpack.c.b16 %v5159, %v5158
    %v5699 = vpack.c.b16 %v5161, %v5160
    %v5700 = vpack.c.b16 %v5163, %v5162
    %v5701 = vpack.c.b16 %v5165, %v5164
    %v5702 = vpack.c.b16 %v5167, %v5166
    %v5703 = vpack.c.b16 %v5169, %v5168
    %v5704 = vpack.c.b16 %v5171, %v5170
    %v5705 = vpack.c.b16 %v5173, %v5172
    %v5706 = vpack.c.b16 %v5175, %v5174
    %v5707 = vpack.c.b16 %v5177, %v5176
    %v5708 = vpack.c.b16 %v5179, %v5178
    %v5709 = vpack.c.b16 %v5181, %v5180
    %v5710 = vpack.c.b16 %v5183, %v5182
    %v5711 = vpack.c.b16 %v5185, %v5184
    %v5712 = vpack.c.b16 %v5187, %v5186
    %v5713 = vpack.c.b16 %v5189, %v5188
    %v5714 = vpack.c.b16 %v5191, %v5190
    %v5715 = vpack.c.b16 %v5193, %v5192
    %v5716 = vpack.c.b16 %v5195, %v5194
    %v5717 = vpack.c.b16 %v5197, %v5196
    %v5718 = vpack.c.b16 %v5199, %v5198
    %v5719 = vpack.c.b16 %v5201, %v5200
    %v5720 = vpack.c.b16 %v5203, %v5202
    %v5721 = vpack.c.b16 %v5205, %v5204
    %v5722 = vpack.c.b16 %v5207, %v5206
    %v5723 = vpack.c.b16 %v5209, %v5208
    %v5724 = vpack.c.b16 %v5211, %v5210
    %v5725 = vpack.c.b16 %v5213, %v5212
    %v5726 = vpack.c.b16 %v5215, %v5214
    %v5727 = vpack.c.b16 %v5217, %v5216
    %v5728 = vpack.c.b16 %v5219, %v5218
    %v5729 = vpack.c.b16 %v5221, %v5220
    %v5730 = vpack.c.b16 %v5223, %v5222
    %v5731 = vpack.c.b16 %v5225, %v5224
    %v5732 = vpack.c.b16 %v5227, %v5226
    %v5733 = vpack.c.b16 %v5229, %v5228
    %v5734 = vpack.c.b16 %v5231, %v5230
    %v5735 = vpack.c.b16 %v5233, %v5232
    %v5736 = vpack.c.b16 %v5235, %v5234
    %v5737 = vpack.c.b16 %v5237, %v5236
    %v5738 = vpack.c.b16 %v5239, %v5238
    %v5739 = vpack.c.b16 %v5241, %v5240
    %v5740 = vpack.c.b16 %v5243, %v5242
    %v5741 = vpack.c.b16 %v5245, %v5244
    %v5742 = vpack.c.b16 %v5247, %v5246
    %v5743 = vpack.c.b16 %v5249, %v5248
    %v5744 = vpack.c.b16 %v5251, %v5250
    %v5745 = vpack.c.b16 %v5253, %v5252
    %v5746 = vpack.c.b16 %v5255, %v5254
    %v5747 = vpack.c.b16 %v5257, %v5256
    %v5748 = vpack.c.b16 %v5259, %v5258
    %v5749 = vpack.c.b16 %v5261, %v5260
    %v5750 = vpack.c.b16 %v5263, %v5262
    %v5751 = vpack.c.b16 %v5265, %v5264
    %v5752 = vpack.c.b16 %v5267, %v5266
    %v5753 = vpack.c.b16 %v5269, %v5268
    %v5754 = vpack.c.b16 %v5271, %v5270
    %v5755 = vpack.c.b16 %v5273, %v5272
    %v5756 = vpack.c.b16 %v5275, %v5274
    %v5757 = vpack.c.b16 %v5277, %v5276
    %v5758 = vpack.c.b16 %v5279, %v5278
    %v5759 = vpack.c.b16 %v5281, %v5280
    %v5760 = vpack.c.b16 %v5283, %v5282
    %v5761 = vpack.c.b16 %v5285, %v5284
    %v5762 = vpack.c.b16 %v5287, %v5286
    %v5763 = vpack.c.b16 %v5289, %v5288
    %v5764 = vpack.c.b16 %v5291, %v5290
    %v5765 = vpack.c.b16 %v5293, %v5292
    %v5766 = vpack.c.b16 %v5295, %v5294
    %v5767 = vpack.c.b16 %v5297, %v5296
    %v5768 = vpack.c.b16 %v5299, %v5298
    %v5769 = vpack.c.b16 %v5301, %v5300
    %v5770 = vpack.c.b16 %v5303, %v5302
    %v5771 = vpack.c.b16 %v5305, %v5304
    %v5772 = vpack.c.b16 %v5307, %v5306
    %v5773 = vpack.c.b16 %v5309, %v5308
    %v5774 = vpack.c.b16 %v5311, %v5310
    %v5775 = vpack.c.b16 %v5313, %v5312
    %v5776 = vpack.c.b16 %v5315, %v5314
    %v5777 = vpack.c.b16 %v5317, %v5316
    %v5778 = vpack.c.b16 %v5319, %v5318
    %v5779 = vpack.c.b16 %v5321, %v5320
    %v5780 = vpack.c.b16 %v5323, %v5322
    %v5781 = vpack.c.b16 %v5325, %v5324
    %v5782 = vpack.c.b16 %v5327, %v5326
    %v5783 = vpack.c.b16 %v5329, %v5328
    %v5784 = vpack.c.b16 %v5331, %v5330
    %v5785 = vpack.c.b16 %v5333, %v5332
    %v5786 = vpack.c.b16 %v5335, %v5334
    %v5787 = vpack.c.b16 %v5337, %v5336
    %v5788 = vpack.c.b16 %v5339, %v5338
    %v5789 = vpack.c.b16 %v5341, %v5340
    %v5790 = vpack.c.b16 %v5343, %v5342
    %v5791 = vpack.c.b16 %v5345, %v5344
    %v5792 = vpack.c.b16 %v5347, %v5346
    %v5793 = vpack.c.b16 %v5349, %v5348
    %v5794 = vpack.c.b16 %v5351, %v5350
    %v5795 = vpack.c.b16 %v5353, %v5352
    %v5796 = vpack.c.b16 %v5355, %v5354
    %v5797 = vpack.c.b16 %v5357, %v5356
    %v5798 = vpack.c.b16 %v5359, %v5358
    %v5799 = vpack.c.b16 %v5361, %v5360
    %v5800 = vpack.c.b16 %v5363, %v5362
    %v5801 = vpack.c.b16 %v5365, %v5364
    %v5802 = vpack.c.b16 %v5367, %v5366
    %v5803 = vpack.c.b16 %v5369, %v5368
    %v5804 = vpack.c.b16 %v5371, %v5370
    %v5805 = vpack.c.b16 %v5373, %v5372
    %v5806 = vpack.c.b16 %v5375, %v5374
    %v5807 = vpack.c.b16 %v5377, %v5376
    %v5808 = vpack.c.b16 %v5379, %v5378
    %v5809 = vpack.c.b16 %v5381, %v5380
    %v5810 = vpack.c.b16 %v5383, %v5382
    %v5811 = vpack.c.b16 %v5385, %v5384
    %v5812 = vpack.c.b16 %v5387, %v5386
    %v5813 = vpack.c.b16 %v5389, %v5388
    %v5814 = vpack.c.b16 %v5391, %v5390
    %v5815 = vpack.c.b16 %v5393, %v5392
    %v5816 = vpack.c.b16 %v5395, %v5394
    %v5817 = vpack.c.b16 %v5397, %v5396
    %v5818 = vpack.c.b16 %v5399, %v5398
    %v5819 = vpack.c.b16 %v5401, %v5400
    %v5820 = vpack.c.b16 %v5403, %v5402
    %v5821 = vpack.c.b16 %v5405, %v5404
    %v5822 = vpack.c.b16 %v5407, %v5406
    %v5823 = vpack.c.b16 %v5409, %v5408
    %v5824 = vpack.c.b16 %v5411, %v5410
    %v5825 = vpack.c.b16 %v5413, %v5412
    %v5826 = vpack.c.b16 %v5415, %v5414
    %v5827 = vpack.c.b16 %v5417, %v5416
    %v5828 = vpack.c.b16 %v5419, %v5418
    %v5829 = vpack.c.b16 %v5421, %v5420
    %v5830 = vpack.c.b16 %v5423, %v5422
    %v5831 = vpack.c.b16 %v5425, %v5424
    %v5832 = vpack.c.b16 %v5427, %v5426
    %v5833 = vpack.c.b16 %v5429, %v5428
    %v5834 = vpack.c.b16 %v5431, %v5430
    %v5835 = vpack.c.b16 %v5433, %v5432
    %v5836 = vpack.c.b16 %v5435, %v5434
    %v5837 = vpack.c.b16 %v5437, %v5436
    %v5838 = vpack.c.b16 %v5439, %v5438
    %v5839 = vpack.c.b16 %v5441, %v5440
    %v5840 = vpack.c.b16 %v5443, %v5442
    %v5841 = vpack.c.b16 %v5445, %v5444
    %v5842 = vpack.c.b16 %v5447, %v5446
    %v5843 = vpack.c.b16 %v5449, %v5448
    %v5844 = vpack.c.b16 %v5451, %v5450
    %v5845 = vpack.c.b16 %v5453, %v5452
    %v5846 = vpack.c.b16 %v5455, %v5454
    %v5847 = vpack.c.b16 %v5457, %v5456
    %v5848 = vpack.c.b16 %v5459, %v5458
    %v5849 = vpack.c.b16 %v5461, %v5460
    %v5850 = vpack.c.b16 %v5463, %v5462
    %v5851 = vpack.c.b16 %v5465, %v5464
    %v5852 = vpack.c.b16 %v5467, %v5466
    %v5853 = vpack.c.b16 %v5469, %v5468
    %v5854 = vpack.c.b16 %v5471, %v5470
    %v5855 = vpack.c.b16 %v5473, %v5472
    %v5856 = vpack.c.b16 %v5475, %v5474
    %v5857 = vpack.c.b16 %v5477, %v5476
    %v5858 = vpack.c.b16 %v5479, %v5478
    %v5859 = vpack.c.b16 %v5481, %v5480
    %v5860 = vpack.c.b16 %v5483, %v5482
    %v5861 = vpack.c.b16 %v5485, %v5484
    %v5862 = vpack.c.b16 %v5487, %v5486
    %v5863 = vpack.c.b16 %v5489, %v5488
    %v5864 = vpack.c.b16 %v5491, %v5490
    %v5865 = vpack.c.b16 %v5493, %v5492
    %v5866 = vpack.c.b16 %v5495, %v5494
    %v5867 = vpack.c.b16 %v5497, %v5496
    %v5868 = vpack.c.b16 %v5499, %v5498
    %v5869 = vpack.c.b16 %v5501, %v5500
    %v5870 = vpack.c.b16 %v5503, %v5502
    %v5871 = vpack.c.b16 %v5505, %v5504
    %v5872 = vpack.c.b16 %v5507, %v5506
    %v5873 = vpack.c.b16 %v5509, %v5508
    %v5874 = vpack.c.b16 %v5511, %v5510
    %v5875 = vpack.c.b16 %v5513, %v5512
    %v5876 = vpack.c.b16 %v5515, %v5514
    %v5877 = vpack.c.b16 %v5517, %v5516
    %v5878 = vpack.c.b16 %v5519, %v5518
    %v5879 = vpack.c.b16 %v5521, %v5520
    %v5880 = vpack.c.b16 %v5523, %v5522
    %v5881 = vpack.c.b16 %v5525, %v5524
    %v5882 = vpack.c.b16 %v5527, %v5526
    %v5883 = vpack.c.b16 %v5529, %v5528
    %v5884 = vpack.c.b16 %v5531, %v5530
    %v5885 = vpack.c.b16 %v5533, %v5532
    %v5886 = vpack.c.b16 %v5535, %v5534
    %v5887 = vpack.c.b16 %v5537, %v5536
    %v5888 = vpack.c.b16 %v5539, %v5538
    %v5889 = vpack.c.b16 %v5541, %v5540
    %v5890 = vpack.c.b16 %v5543, %v5542
    %v5891 = vpack.c.b16 %v5545, %v5544
    %v5892 = vpack.c.b16 %v5547, %v5546
    %v5893 = vpack.c.b16 %v5549, %v5548
    %v5894 = vpack.c.b16 %v5551, %v5550
    %v5895 = vpack.c.b16 %v5553, %v5552
    %v5896 = vpack.c.b16 %v5555, %v5554
    %v5897 = vpack.c.b16 %v5557, %v5556
    %v5898 = vpack.c.b16 %v5559, %v5558
    %v5899 = vpack.c.b16 %v5561, %v5560
    %v5900 = vpack.c.b16 %v5563, %v5562
    %v5901 = vpack.c.b16 %v5565, %v5564
    %v5902 = vpack.c.b16 %v5567, %v5566
    %v5903 = vpack.c.b16 %v5569, %v5568
    %v5904 = vpack.c.b16 %v5571, %v5570
    %v5905 = vpack.c.b16 %v5573, %v5572
    %v5906 = vpack.c.b16 %v5575, %v5574
    %v5907 = vpack.c.b16 %v5577, %v5576
    %v5908 = vpack.c.b16 %v5579, %v5578
    %v5909 = vpack.c.b16 %v5581, %v5580
    %v5910 = vpack.c.b16 %v5583, %v5582
    %v5911 = vpack.c.b16 %v5585, %v5584
    %v5912 = vpack.c.b16 %v5587, %v5586
    %v5913 = vpack.c.b16 %v5589, %v5588
    %v5914 = vpack.c.b16 %v5591, %v5590
    %v5915 = vpack.c.b16 %v5593, %v5592
    %v5916 = vpack.c.b16 %v5595, %v5594
    %v5917 = vpack.c.b16 %v5597, %v5596
    %v5918 = vpack.c.b16 %v5599, %v5598
    %v5919 = vpack.c.b16 %v5601, %v5600
    %v5920 = vpack.c.b16 %v5603, %v5602
    %v5921 = vpack.c.b16 %v5605, %v5604
    %v5922 = vpack.c.b16 %v5607, %v5606
    %v5923 = vpack.c.b16 %v5609, %v5608
    %v5924 = vpack.c.b16 %v5611, %v5610
    %v5925 = vpack.c.b16 %v5613, %v5612
    %v5926 = vpack.c.b16 %v5615, %v5614
    %v5927 = vpack.c.b16 %v5617, %v5616
    %v5928 = vpack.c.b16 %v5619, %v5618
    %v5929 = vpack.c.b16 %v5621, %v5620
    %v5930 = vpack.c.b16 %v5623, %v5622
    %v5931 = vpack.c.b16 %v5625, %v5624
    %v5932 = vpack.c.b16 %v5627, %v5626
    %v5933 = vpack.c.b16 %v5629, %v5628
    %v5934 = vpack.c.b16 %v5631, %v5630
    %v5935 = vpack.c.b16 %v5633, %v5632
    %v5936 = vpack.c.b16 %v5635, %v5634
    %v5937 = vpack.c.b16 %v5637, %v5636
    %v5938 = vpack.c.b16 %v5639, %v5638
    %v5939 = vpack.c.b16 %v5641, %v5640
    %v5940 = vpack.c.b16 %v5643, %v5642
    %v5941 = vpack.c.b16 %v5645, %v5644
    %v5942 = vpack.c.b16 %v5647, %v5646
    %v5943 = vpack.c.b16 %v5649, %v5648
    %v5944 = vpack.c.b16 %v5651, %v5650
    %v5945 = vpack.c.b16 %v5653, %v5652
    %v5946 = vpack.c.b16 %v5655, %v5654
    %v5947 = vpack.c.b16 %v5657, %v5656
    %v5948 = vpack.c.b16 %v5659, %v5658
    %v5949 = vpack.c.b16 %v5661, %v5660
    %6238 = vmatprep.subr.bf16.mxu0 0
    %6239 = vmatpush1.bf16.msra.mxu0 %v5662
    %6240 = vmatprep.subr.bf16.mxu0 0
    %6241 = vmatpush1.bf16.msra.mxu0 %v5663
    %6242 = vmatprep.subr.bf16.mxu0 0
    %6243 = vmatpush1.bf16.msra.mxu0 %v5664
    %6244 = vmatprep.subr.bf16.mxu0 0
    %6245 = vmatpush1.bf16.msra.mxu0 %v5665
    %6246 = vmatprep.subr.bf16.mxu0 0
    %6247 = vmatpush1.bf16.msra.mxu0 %v5666
    %6248 = vmatprep.subr.bf16.mxu0 0
    %6249 = vmatpush1.bf16.msra.mxu0 %v5667
    %6250 = vmatprep.subr.bf16.mxu0 0
    %6251 = vmatpush1.bf16.msra.mxu0 %v5668
    %6252 = vmatprep.subr.bf16.mxu0 0
    %6253 = vmatpush1.bf16.msra.mxu0 %v5669
    %6254 = vmatprep.subr.bf16.mxu0 0
    %6255 = vmatpush1.bf16.msra.mxu0 %v5670
    %6256 = vmatprep.subr.bf16.mxu0 0
    %6257 = vmatpush1.bf16.msra.mxu0 %v5671
    %6258 = vmatprep.subr.bf16.mxu0 0
    %6259 = vmatpush1.bf16.msra.mxu0 %v5672
    %6260 = vmatprep.subr.bf16.mxu0 0
    %6261 = vmatpush1.bf16.msra.mxu0 %v5673
    %6262 = vmatprep.subr.bf16.mxu0 0
    %6263 = vmatpush1.bf16.msra.mxu0 %v5674
    %6264 = vmatprep.subr.bf16.mxu0 0
    %6265 = vmatpush1.bf16.msra.mxu0 %v5675
    %6266 = vmatprep.subr.bf16.mxu0 0
    %6267 = vmatpush1.bf16.msra.mxu0 %v5676
    %6268 = vmatprep.subr.bf16.mxu0 0
    %6269 = vmatpush1.bf16.msra.mxu0 %v5677
    %6270 = vmatprep.mubr.bf16.mxu0 %v3898
    %6271 = vmatmul.mubr.bf16.gmra.mrb[0].mxu0 %v3897
    %v6272 = vpop.f32.mrb[0].mxu0
    %v6273 = vadd.f32 %v4509, %v6272
    %v6274 = vpop.f32.mrb[0].mxu0
    %v6275 = vpop.f32.mrb[0].mxu0
    %v6276 = vpop.f32.mrb[0].mxu0
    %6277 = vdwg.mxu0
    %6278 = vmatprep.subr.bf16.mxu0 0
    %6279 = vmatpush1.bf16.msra.mxu0 %v5678
    %6280 = vmatprep.subr.bf16.mxu0 0
    %6281 = vmatpush1.bf16.msra.mxu0 %v5679
    %6282 = vmatprep.subr.bf16.mxu0 0
    %6283 = vmatpush1.bf16.msra.mxu0 %v5680
    %6284 = vmatprep.subr.bf16.mxu0 0
    %6285 = vmatpush1.bf16.msra.mxu0 %v5681
    %6286 = vmatprep.subr.bf16.mxu0 0
    %6287 = vmatpush1.bf16.msra.mxu0 %v5682
    %6288 = vmatprep.subr.bf16.mxu0 0
    %6289 = vmatpush1.bf16.msra.mxu0 %v5683
    %6290 = vmatprep.subr.bf16.mxu0 0
    %6291 = vmatpush1.bf16.msra.mxu0 %v5684
    %6292 = vmatprep.subr.bf16.mxu0 0
    %6293 = vmatpush1.bf16.msra.mxu0 %v5685
    %6294 = vmatprep.subr.bf16.mxu0 0
    %6295 = vmatpush1.bf16.msra.mxu0 %v5686
    %6296 = vmatprep.subr.bf16.mxu0 0
    %6297 = vmatpush1.bf16.msra.mxu0 %v5687
    %6298 = vmatprep.subr.bf16.mxu0 0
    %6299 = vmatpush1.bf16.msra.mxu0 %v5688
    %6300 = vmatprep.subr.bf16.mxu0 0
    %6301 = vmatpush1.bf16.msra.mxu0 %v5689
    %6302 = vmatprep.subr.bf16.mxu0 0
    %6303 = vmatpush1.bf16.msra.mxu0 %v5690
    %6304 = vmatprep.subr.bf16.mxu0 0
    %6305 = vmatpush1.bf16.msra.mxu0 %v5691
    %6306 = vmatprep.subr.bf16.mxu0 0
    %6307 = vmatpush1.bf16.msra.mxu0 %v5692
    %6308 = vmatprep.subr.bf16.mxu0 0
    %6309 = vmatpush1.bf16.msra.mxu0 %v5693
    %6310 = vmatprep.mubr.bf16.mxu0 %v3900
    %6311 = vmatmul.mubr.bf16.gmra.mrb[0].mxu0 %v3899
    %v6312 = vpop.f32.mrb[0].mxu0
    %v6313 = vadd.f32 %v6273, %v6312
    %v6314 = vpop.f32.mrb[0].mxu0
    %v6315 = vpop.f32.mrb[0].mxu0
    %v6316 = vpop.f32.mrb[0].mxu0
    %6317 = vdwg.mxu0
    %6318 = vmatprep.subr.bf16.mxu0 0
    %6319 = vmatpush1.bf16.msra.mxu0 %v5694
    %6320 = vmatprep.subr.bf16.mxu0 0
    %6321 = vmatpush1.bf16.msra.mxu0 %v5695
    %6322 = vmatprep.subr.bf16.mxu0 0
    %6323 = vmatpush1.bf16.msra.mxu0 %v5696
    %6324 = vmatprep.subr.bf16.mxu0 0
    %6325 = vmatpush1.bf16.msra.mxu0 %v5697
    %6326 = vmatprep.subr.bf16.mxu0 0
    %6327 = vmatpush1.bf16.msra.mxu0 %v5698
    %6328 = vmatprep.subr.bf16.mxu0 0
    %6329 = vmatpush1.bf16.msra.mxu0 %v5699
    %6330 = vmatprep.subr.bf16.mxu0 0
    %6331 = vmatpush1.bf16.msra.mxu0 %v5700
    %6332 = vmatprep.subr.bf16.mxu0 0
    %6333 = vmatpush1.bf16.msra.mxu0 %v5701
    %6334 = vmatprep.subr.bf16.mxu0 0
    %6335 = vmatpush1.bf16.msra.mxu0 %v5702
    %6336 = vmatprep.subr.bf16.mxu0 0
    %6337 = vmatpush1.bf16.msra.mxu0 %v5703
    %6338 = vmatprep.subr.bf16.mxu0 0
    %6339 = vmatpush1.bf16.msra.mxu0 %v5704
    %6340 = vmatprep.subr.bf16.mxu0 0
    %6341 = vmatpush1.bf16.msra.mxu0 %v5705
    %6342 = vmatprep.subr.bf16.mxu0 0
    %6343 = vmatpush1.bf16.msra.mxu0 %v5706
    %6344 = vmatprep.subr.bf16.mxu0 0
    %6345 = vmatpush1.bf16.msra.mxu0 %v5707
    %6346 = vmatprep.subr.bf16.mxu0 0
    %6347 = vmatpush1.bf16.msra.mxu0 %v5708
    %6348 = vmatprep.subr.bf16.mxu0 0
    %6349 = vmatpush1.bf16.msra.mxu0 %v5709
    %6350 = vmatprep.mubr.bf16.mxu0 %v3902
    %6351 = vmatmul.mubr.bf16.gmra.mrb[0].mxu0 %v3901
    %v6352 = vpop.f32.mrb[0].mxu0
    %v6353 = vadd.f32 %v6313, %v6352
    %v6354 = vpop.f32.mrb[0].mxu0
    %v6355 = vpop.f32.mrb[0].mxu0
    %v6356 = vpop.f32.mrb[0].mxu0
    %6357 = vdwg.mxu0
    %6358 = vmatprep.subr.bf16.mxu0 0
    %6359 = vmatpush1.bf16.msra.mxu0 %v5710
    %6360 = vmatprep.subr.bf16.mxu0 0
    %6361 = vmatpush1.bf16.msra.mxu0 %v5711
    %6362 = vmatprep.subr.bf16.mxu0 0
    %6363 = vmatpush1.bf16.msra.mxu0 %v5712
    %6364 = vmatprep.subr.bf16.mxu0 0
    %6365 = vmatpush1.bf16.msra.mxu0 %v5713
    %6366 = vmatprep.subr.bf16.mxu0 0
    %6367 = vmatpush1.bf16.msra.mxu0 %v5714
    %6368 = vmatprep.subr.bf16.mxu0 0
    %6369 = vmatpush1.bf16.msra.mxu0 %v5715
    %6370 = vmatprep.subr.bf16.mxu0 0
    %6371 = vmatpush1.bf16.msra.mxu0 %v5716
    %6372 = vmatprep.subr.bf16.mxu0 0
    %6373 = vmatpush1.bf16.msra.mxu0 %v5717
    %6374 = vmatprep.subr.bf16.mxu0 0
    %6375 = vmatpush1.bf16.msra.mxu0 %v5718
    %6376 = vmatprep.subr.bf16.mxu0 0
    %6377 = vmatpush1.bf16.msra.mxu0 %v5719
    %6378 = vmatprep.subr.bf16.mxu0 0
    %6379 = vmatpush1.bf16.msra.mxu0 %v5720
    %6380 = vmatprep.subr.bf16.mxu0 0
    %6381 = vmatpush1.bf16.msra.mxu0 %v5721
    %6382 = vmatprep.subr.bf16.mxu0 0
    %6383 = vmatpush1.bf16.msra.mxu0 %v5722
    %6384 = vmatprep.subr.bf16.mxu0 0
    %6385 = vmatpush1.bf16.msra.mxu0 %v5723
    %6386 = vmatprep.subr.bf16.mxu0 0
    %6387 = vmatpush1.bf16.msra.mxu0 %v5724
    %6388 = vmatprep.subr.bf16.mxu0 0
    %6389 = vmatpush1.bf16.msra.mxu0 %v5725
    %6390 = vmatprep.mubr.bf16.mxu0 %v3904
    %6391 = vmatmul.mubr.bf16.gmra.mrb[0].mxu0 %v3903
    %v6392 = vpop.f32.mrb[0].mxu0
    %v6393 = vadd.f32 %v6353, %v6392
    %v6394 = vpop.f32.mrb[0].mxu0
    %v6395 = vpop.f32.mrb[0].mxu0
    %v6396 = vpop.f32.mrb[0].mxu0
    %6397 = vdwg.mxu0
    %6398 = vmatprep.subr.bf16.mxu0 0
    %6399 = vmatpush1.bf16.msra.mxu0 %v5726
    %6400 = vmatprep.subr.bf16.mxu0 0
    %6401 = vmatpush1.bf16.msra.mxu0 %v5727
    %6402 = vmatprep.subr.bf16.mxu0 0
    %6403 = vmatpush1.bf16.msra.mxu0 %v5728
    %6404 = vmatprep.subr.bf16.mxu0 0
    %6405 = vmatpush1.bf16.msra.mxu0 %v5729
    %6406 = vmatprep.subr.bf16.mxu0 0
    %6407 = vmatpush1.bf16.msra.mxu0 %v5730
    %6408 = vmatprep.subr.bf16.mxu0 0
    %6409 = vmatpush1.bf16.msra.mxu0 %v5731
    %6410 = vmatprep.subr.bf16.mxu0 0
    %6411 = vmatpush1.bf16.msra.mxu0 %v5732
    %6412 = vmatprep.subr.bf16.mxu0 0
    %6413 = vmatpush1.bf16.msra.mxu0 %v5733
    %6414 = vmatprep.subr.bf16.mxu0 0
    %6415 = vmatpush1.bf16.msra.mxu0 %v5734
    %6416 = vmatprep.subr.bf16.mxu0 0
    %6417 = vmatpush1.bf16.msra.mxu0 %v5735
    %6418 = vmatprep.subr.bf16.mxu0 0
    %6419 = vmatpush1.bf16.msra.mxu0 %v5736
    %6420 = vmatprep.subr.bf16.mxu0 0
    %6421 = vmatpush1.bf16.msra.mxu0 %v5737
    %6422 = vmatprep.subr.bf16.mxu0 0
    %6423 = vmatpush1.bf16.msra.mxu0 %v5738
    %6424 = vmatprep.subr.bf16.mxu0 0
    %6425 = vmatpush1.bf16.msra.mxu0 %v5739
    %6426 = vmatprep.subr.bf16.mxu0 0
    %6427 = vmatpush1.bf16.msra.mxu0 %v5740
    %6428 = vmatprep.subr.bf16.mxu0 0
    %6429 = vmatpush1.bf16.msra.mxu0 %v5741
    %6430 = vmatprep.mubr.bf16.mxu0 %v3906
    %6431 = vmatmul.mubr.bf16.gmra.mrb[0].mxu0 %v3905
    %v6432 = vpop.f32.mrb[0].mxu0
    %v6433 = vadd.f32 %v6393, %v6432
    %v6434 = vpop.f32.mrb[0].mxu0
    %v6435 = vpop.f32.mrb[0].mxu0
    %v6436 = vpop.f32.mrb[0].mxu0
    %6437 = vdwg.mxu0
    %6438 = vmatprep.subr.bf16.mxu0 0
    %6439 = vmatpush1.bf16.msra.mxu0 %v5742
    %6440 = vmatprep.subr.bf16.mxu0 0
    %6441 = vmatpush1.bf16.msra.mxu0 %v5743
    %6442 = vmatprep.subr.bf16.mxu0 0
    %6443 = vmatpush1.bf16.msra.mxu0 %v5744
    %6444 = vmatprep.subr.bf16.mxu0 0
    %6445 = vmatpush1.bf16.msra.mxu0 %v5745
    %6446 = vmatprep.subr.bf16.mxu0 0
    %6447 = vmatpush1.bf16.msra.mxu0 %v5746
    %6448 = vmatprep.subr.bf16.mxu0 0
    %6449 = vmatpush1.bf16.msra.mxu0 %v5747
    %6450 = vmatprep.subr.bf16.mxu0 0
    %6451 = vmatpush1.bf16.msra.mxu0 %v5748
    %6452 = vmatprep.subr.bf16.mxu0 0
    %6453 = vmatpush1.bf16.msra.mxu0 %v5749
    %6454 = vmatprep.subr.bf16.mxu0 0
    %6455 = vmatpush1.bf16.msra.mxu0 %v5750
    %6456 = vmatprep.subr.bf16.mxu0 0
    %6457 = vmatpush1.bf16.msra.mxu0 %v5751
    %6458 = vmatprep.subr.bf16.mxu0 0
    %6459 = vmatpush1.bf16.msra.mxu0 %v5752
    %6460 = vmatprep.subr.bf16.mxu0 0
    %6461 = vmatpush1.bf16.msra.mxu0 %v5753
    %6462 = vmatprep.subr.bf16.mxu0 0
    %6463 = vmatpush1.bf16.msra.mxu0 %v5754
    %6464 = vmatprep.subr.bf16.mxu0 0
    %6465 = vmatpush1.bf16.msra.mxu0 %v5755
    %6466 = vmatprep.subr.bf16.mxu0 0
    %6467 = vmatpush1.bf16.msra.mxu0 %v5756
    %6468 = vmatprep.subr.bf16.mxu0 0
    %6469 = vmatpush1.bf16.msra.mxu0 %v5757
    %6470 = vmatprep.mubr.bf16.mxu0 %v3908
    %6471 = vmatmul.mubr.bf16.gmra.mrb[0].mxu0 %v3907
    %v6472 = vpop.f32.mrb[0].mxu0
    %v6473 = vadd.f32 %v6433, %v6472
    %v6474 = vpop.f32.mrb[0].mxu0
    %v6475 = vpop.f32.mrb[0].mxu0
    %v6476 = vpop.f32.mrb[0].mxu0
    %6477 = vdwg.mxu0
    %6478 = vmatprep.subr.bf16.mxu0 0
    %6479 = vmatpush1.bf16.msra.mxu0 %v5758
    %6480 = vmatprep.subr.bf16.mxu0 0
    %6481 = vmatpush1.bf16.msra.mxu0 %v5759
    %6482 = vmatprep.subr.bf16.mxu0 0
    %6483 = vmatpush1.bf16.msra.mxu0 %v5760
    %6484 = vmatprep.subr.bf16.mxu0 0
    %6485 = vmatpush1.bf16.msra.mxu0 %v5761
    %6486 = vmatprep.subr.bf16.mxu0 0
    %6487 = vmatpush1.bf16.msra.mxu0 %v5762
    %6488 = vmatprep.subr.bf16.mxu0 0
    %6489 = vmatpush1.bf16.msra.mxu0 %v5763
    %6490 = vmatprep.subr.bf16.mxu0 0
    %6491 = vmatpush1.bf16.msra.mxu0 %v5764
    %6492 = vmatprep.subr.bf16.mxu0 0
    %6493 = vmatpush1.bf16.msra.mxu0 %v5765
    %6494 = vmatprep.subr.bf16.mxu0 0
    %6495 = vmatpush1.bf16.msra.mxu0 %v5766
    %6496 = vmatprep.subr.bf16.mxu0 0
    %6497 = vmatpush1.bf16.msra.mxu0 %v5767
    %6498 = vmatprep.subr.bf16.mxu0 0
    %6499 = vmatpush1.bf16.msra.mxu0 %v5768
    %6500 = vmatprep.subr.bf16.mxu0 0
    %6501 = vmatpush1.bf16.msra.mxu0 %v5769
    %6502 = vmatprep.subr.bf16.mxu0 0
    %6503 = vmatpush1.bf16.msra.mxu0 %v5770
    %6504 = vmatprep.subr.bf16.mxu0 0
    %6505 = vmatpush1.bf16.msra.mxu0 %v5771
    %6506 = vmatprep.subr.bf16.mxu0 0
    %6507 = vmatpush1.bf16.msra.mxu0 %v5772
    %6508 = vmatprep.subr.bf16.mxu0 0
    %6509 = vmatpush1.bf16.msra.mxu0 %v5773
    %6510 = vmatprep.mubr.bf16.mxu0 %v3910
    %6511 = vmatmul.mubr.bf16.gmra.mrb[0].mxu0 %v3909
    %v6512 = vpop.f32.mrb[0].mxu0
    %v6513 = vadd.f32 %v6473, %v6512
    %v6514 = vpop.f32.mrb[0].mxu0
    %v6515 = vpop.f32.mrb[0].mxu0
    %v6516 = vpop.f32.mrb[0].mxu0
    %6517 = vdwg.mxu0
    %6518 = vmatprep.subr.bf16.mxu0 0
    %6519 = vmatpush1.bf16.msra.mxu0 %v5774
    %6520 = vmatprep.subr.bf16.mxu0 0
    %6521 = vmatpush1.bf16.msra.mxu0 %v5775
    %6522 = vmatprep.subr.bf16.mxu0 0
    %6523 = vmatpush1.bf16.msra.mxu0 %v5776
    %6524 = vmatprep.subr.bf16.mxu0 0
    %6525 = vmatpush1.bf16.msra.mxu0 %v5777
    %6526 = vmatprep.subr.bf16.mxu0 0
    %6527 = vmatpush1.bf16.msra.mxu0 %v5778
    %6528 = vmatprep.subr.bf16.mxu0 0
    %6529 = vmatpush1.bf16.msra.mxu0 %v5779
    %6530 = vmatprep.subr.bf16.mxu0 0
    %6531 = vmatpush1.bf16.msra.mxu0 %v5780
    %6532 = vmatprep.subr.bf16.mxu0 0
    %6533 = vmatpush1.bf16.msra.mxu0 %v5781
    %6534 = vmatprep.subr.bf16.mxu0 0
    %6535 = vmatpush1.bf16.msra.mxu0 %v5782
    %6536 = vmatprep.subr.bf16.mxu0 0
    %6537 = vmatpush1.bf16.msra.mxu0 %v5783
    %6538 = vmatprep.subr.bf16.mxu0 0
    %6539 = vmatpush1.bf16.msra.mxu0 %v5784
    %6540 = vmatprep.subr.bf16.mxu0 0
    %6541 = vmatpush1.bf16.msra.mxu0 %v5785
    %6542 = vmatprep.subr.bf16.mxu0 0
    %6543 = vmatpush1.bf16.msra.mxu0 %v5786
    %6544 = vmatprep.subr.bf16.mxu0 0
    %6545 = vmatpush1.bf16.msra.mxu0 %v5787
    %6546 = vmatprep.subr.bf16.mxu0 0
    %6547 = vmatpush1.bf16.msra.mxu0 %v5788
    %6548 = vmatprep.subr.bf16.mxu0 0
    %6549 = vmatpush1.bf16.msra.mxu0 %v5789
    %6550 = vmatprep.mubr.bf16.mxu0 %v3912
    %6551 = vmatmul.mubr.bf16.gmra.mrb[0].mxu0 %v3911
    %v6552 = vpop.f32.mrb[0].mxu0
    %v6553 = vadd.f32 %v6513, %v6552
    %v6554 = vpop.f32.mrb[0].mxu0
    %v6555 = vpop.f32.mrb[0].mxu0
    %v6556 = vpop.f32.mrb[0].mxu0
    %6557 = vdwg.mxu0
    %6558 = vmatprep.subr.bf16.mxu0 0
    %6559 = vmatpush1.bf16.msra.mxu0 %v5790
    %6560 = vmatprep.subr.bf16.mxu0 0
    %6561 = vmatpush1.bf16.msra.mxu0 %v5791
    %6562 = vmatprep.subr.bf16.mxu0 0
    %6563 = vmatpush1.bf16.msra.mxu0 %v5792
    %6564 = vmatprep.subr.bf16.mxu0 0
    %6565 = vmatpush1.bf16.msra.mxu0 %v5793
    %6566 = vmatprep.subr.bf16.mxu0 0
    %6567 = vmatpush1.bf16.msra.mxu0 %v5794
    %6568 = vmatprep.subr.bf16.mxu0 0
    %6569 = vmatpush1.bf16.msra.mxu0 %v5795
    %6570 = vmatprep.subr.bf16.mxu0 0
    %6571 = vmatpush1.bf16.msra.mxu0 %v5796
    %6572 = vmatprep.subr.bf16.mxu0 0
    %6573 = vmatpush1.bf16.msra.mxu0 %v5797
    %6574 = vmatprep.subr.bf16.mxu0 0
    %6575 = vmatpush1.bf16.msra.mxu0 %v5798
    %6576 = vmatprep.subr.bf16.mxu0 0
    %6577 = vmatpush1.bf16.msra.mxu0 %v5799
    %6578 = vmatprep.subr.bf16.mxu0 0
    %6579 = vmatpush1.bf16.msra.mxu0 %v5800
    %6580 = vmatprep.subr.bf16.mxu0 0
    %6581 = vmatpush1.bf16.msra.mxu0 %v5801
    %6582 = vmatprep.subr.bf16.mxu0 0
    %6583 = vmatpush1.bf16.msra.mxu0 %v5802
    %6584 = vmatprep.subr.bf16.mxu0 0
    %6585 = vmatpush1.bf16.msra.mxu0 %v5803
    %6586 = vmatprep.subr.bf16.mxu0 0
    %6587 = vmatpush1.bf16.msra.mxu0 %v5804
    %6588 = vmatprep.subr.bf16.mxu0 0
    %6589 = vmatpush1.bf16.msra.mxu0 %v5805
    %6590 = vmatprep.mubr.bf16.mxu0 %v3914
    %6591 = vmatmul.mubr.bf16.gmra.mrb[0].mxu0 %v3913
    %v6592 = vpop.f32.mrb[0].mxu0
    %v6593 = vadd.f32 %v6553, %v6592
    %v6594 = vpop.f32.mrb[0].mxu0
    %v6595 = vpop.f32.mrb[0].mxu0
    %v6596 = vpop.f32.mrb[0].mxu0
    %6597 = vdwg.mxu0
    %6598 = vmatprep.subr.bf16.mxu0 0
    %6599 = vmatpush1.bf16.msra.mxu0 %v5806
    %6600 = vmatprep.subr.bf16.mxu0 0
    %6601 = vmatpush1.bf16.msra.mxu0 %v5807
    %6602 = vmatprep.subr.bf16.mxu0 0
    %6603 = vmatpush1.bf16.msra.mxu0 %v5808
    %6604 = vmatprep.subr.bf16.mxu0 0
    %6605 = vmatpush1.bf16.msra.mxu0 %v5809
    %6606 = vmatprep.subr.bf16.mxu0 0
    %6607 = vmatpush1.bf16.msra.mxu0 %v5810
    %6608 = vmatprep.subr.bf16.mxu0 0
    %6609 = vmatpush1.bf16.msra.mxu0 %v5811
    %6610 = vmatprep.subr.bf16.mxu0 0
    %6611 = vmatpush1.bf16.msra.mxu0 %v5812
    %6612 = vmatprep.subr.bf16.mxu0 0
    %6613 = vmatpush1.bf16.msra.mxu0 %v5813
    %6614 = vmatprep.subr.bf16.mxu0 0
    %6615 = vmatpush1.bf16.msra.mxu0 %v5814
    %6616 = vmatprep.subr.bf16.mxu0 0
    %6617 = vmatpush1.bf16.msra.mxu0 %v5815
    %6618 = vmatprep.subr.bf16.mxu0 0
    %6619 = vmatpush1.bf16.msra.mxu0 %v5816
    %6620 = vmatprep.subr.bf16.mxu0 0
    %6621 = vmatpush1.bf16.msra.mxu0 %v5817
    %6622 = vmatprep.subr.bf16.mxu0 0
    %6623 = vmatpush1.bf16.msra.mxu0 %v5818
    %6624 = vmatprep.subr.bf16.mxu0 0
    %6625 = vmatpush1.bf16.msra.mxu0 %v5819
    %6626 = vmatprep.subr.bf16.mxu0 0
    %6627 = vmatpush1.bf16.msra.mxu0 %v5820
    %6628 = vmatprep.subr.bf16.mxu0 0
    %6629 = vmatpush1.bf16.msra.mxu0 %v5821
    %6630 = vmatprep.mubr.bf16.mxu0 %v3916
    %6631 = vmatmul.mubr.bf16.gmra.mrb[0].mxu0 %v3915
    %v6632 = vpop.f32.mrb[0].mxu0
    %v6633 = vadd.f32 %v6593, %v6632
    %v6634 = vpop.f32.mrb[0].mxu0
    %v6635 = vpop.f32.mrb[0].mxu0
    %v6636 = vpop.f32.mrb[0].mxu0
    %6637 = vdwg.mxu0
    %6638 = vmatprep.subr.bf16.mxu0 0
    %6639 = vmatpush1.bf16.msra.mxu0 %v5822
    %6640 = vmatprep.subr.bf16.mxu0 0
    %6641 = vmatpush1.bf16.msra.mxu0 %v5823
    %6642 = vmatprep.subr.bf16.mxu0 0
    %6643 = vmatpush1.bf16.msra.mxu0 %v5824
    %6644 = vmatprep.subr.bf16.mxu0 0
    %6645 = vmatpush1.bf16.msra.mxu0 %v5825
    %6646 = vmatprep.subr.bf16.mxu0 0
    %6647 = vmatpush1.bf16.msra.mxu0 %v5826
    %6648 = vmatprep.subr.bf16.mxu0 0
    %6649 = vmatpush1.bf16.msra.mxu0 %v5827
    %6650 = vmatprep.subr.bf16.mxu0 0
    %6651 = vmatpush1.bf16.msra.mxu0 %v5828
    %6652 = vmatprep.subr.bf16.mxu0 0
    %6653 = vmatpush1.bf16.msra.mxu0 %v5829
    %6654 = vmatprep.subr.bf16.mxu0 0
    %6655 = vmatpush1.bf16.msra.mxu0 %v5830
    %6656 = vmatprep.subr.bf16.mxu0 0
    %6657 = vmatpush1.bf16.msra.mxu0 %v5831
    %6658 = vmatprep.subr.bf16.mxu0 0
    %6659 = vmatpush1.bf16.msra.mxu0 %v5832
    %6660 = vmatprep.subr.bf16.mxu0 0
    %6661 = vmatpush1.bf16.msra.mxu0 %v5833
    %6662 = vmatprep.subr.bf16.mxu0 0
    %6663 = vmatpush1.bf16.msra.mxu0 %v5834
    %6664 = vmatprep.subr.bf16.mxu0 0
    %6665 = vmatpush1.bf16.msra.mxu0 %v5835
    %6666 = vmatprep.subr.bf16.mxu0 0
    %6667 = vmatpush1.bf16.msra.mxu0 %v5836
    %6668 = vmatprep.subr.bf16.mxu0 0
    %6669 = vmatpush1.bf16.msra.mxu0 %v5837
    %6670 = vmatprep.mubr.bf16.mxu0 %v3918
    %6671 = vmatmul.mubr.bf16.gmra.mrb[0].mxu0 %v3917
    %v6672 = vpop.f32.mrb[0].mxu0
    %v6673 = vadd.f32 %v6633, %v6672
    %v6674 = vpop.f32.mrb[0].mxu0
    %v6675 = vpop.f32.mrb[0].mxu0
    %v6676 = vpop.f32.mrb[0].mxu0
    %6677 = vdwg.mxu0
    %6678 = vmatprep.subr.bf16.mxu0 0
    %6679 = vmatpush1.bf16.msra.mxu0 %v5838
    %6680 = vmatprep.subr.bf16.mxu0 0
    %6681 = vmatpush1.bf16.msra.mxu0 %v5839
    %6682 = vmatprep.subr.bf16.mxu0 0
    %6683 = vmatpush1.bf16.msra.mxu0 %v5840
    %6684 = vmatprep.subr.bf16.mxu0 0
    %6685 = vmatpush1.bf16.msra.mxu0 %v5841
    %6686 = vmatprep.subr.bf16.mxu0 0
    %6687 = vmatpush1.bf16.msra.mxu0 %v5842
    %6688 = vmatprep.subr.bf16.mxu0 0
    %6689 = vmatpush1.bf16.msra.mxu0 %v5843
    %6690 = vmatprep.subr.bf16.mxu0 0
    %6691 = vmatpush1.bf16.msra.mxu0 %v5844
    %6692 = vmatprep.subr.bf16.mxu0 0
    %6693 = vmatpush1.bf16.msra.mxu0 %v5845
    %6694 = vmatprep.subr.bf16.mxu0 0
    %6695 = vmatpush1.bf16.msra.mxu0 %v5846
    %6696 = vmatprep.subr.bf16.mxu0 0
    %6697 = vmatpush1.bf16.msra.mxu0 %v5847
    %6698 = vmatprep.subr.bf16.mxu0 0
    %6699 = vmatpush1.bf16.msra.mxu0 %v5848
    %6700 = vmatprep.subr.bf16.mxu0 0
    %6701 = vmatpush1.bf16.msra.mxu0 %v5849
    %6702 = vmatprep.subr.bf16.mxu0 0
    %6703 = vmatpush1.bf16.msra.mxu0 %v5850
    %6704 = vmatprep.subr.bf16.mxu0 0
    %6705 = vmatpush1.bf16.msra.mxu0 %v5851
    %6706 = vmatprep.subr.bf16.mxu0 0
    %6707 = vmatpush1.bf16.msra.mxu0 %v5852
    %6708 = vmatprep.subr.bf16.mxu0 0
    %6709 = vmatpush1.bf16.msra.mxu0 %v5853
    %6710 = vmatprep.mubr.bf16.mxu0 %v3920
    %6711 = vmatmul.mubr.bf16.gmra.mrb[0].mxu0 %v3919
    %v6712 = vpop.f32.mrb[0].mxu0
    %v6713 = vadd.f32 %v6673, %v6712
    %v6714 = vpop.f32.mrb[0].mxu0
    %v6715 = vpop.f32.mrb[0].mxu0
    %v6716 = vpop.f32.mrb[0].mxu0
    %6717 = vdwg.mxu0
    %6718 = vmatprep.subr.bf16.mxu0 0
    %6719 = vmatpush1.bf16.msra.mxu0 %v5854
    %6720 = vmatprep.subr.bf16.mxu0 0
    %6721 = vmatpush1.bf16.msra.mxu0 %v5855
    %6722 = vmatprep.subr.bf16.mxu0 0
    %6723 = vmatpush1.bf16.msra.mxu0 %v5856
    %6724 = vmatprep.subr.bf16.mxu0 0
    %6725 = vmatpush1.bf16.msra.mxu0 %v5857
    %6726 = vmatprep.subr.bf16.mxu0 0
    %6727 = vmatpush1.bf16.msra.mxu0 %v5858
    %6728 = vmatprep.subr.bf16.mxu0 0
    %6729 = vmatpush1.bf16.msra.mxu0 %v5859
    %6730 = vmatprep.subr.bf16.mxu0 0
    %6731 = vmatpush1.bf16.msra.mxu0 %v5860
    %6732 = vmatprep.subr.bf16.mxu0 0
    %6733 = vmatpush1.bf16.msra.mxu0 %v5861
    %6734 = vmatprep.subr.bf16.mxu0 0
    %6735 = vmatpush1.bf16.msra.mxu0 %v5862
    %6736 = vmatprep.subr.bf16.mxu0 0
    %6737 = vmatpush1.bf16.msra.mxu0 %v5863
    %6738 = vmatprep.subr.bf16.mxu0 0
    %6739 = vmatpush1.bf16.msra.mxu0 %v5864
    %6740 = vmatprep.subr.bf16.mxu0 0
    %6741 = vmatpush1.bf16.msra.mxu0 %v5865
    %6742 = vmatprep.subr.bf16.mxu0 0
    %6743 = vmatpush1.bf16.msra.mxu0 %v5866
    %6744 = vmatprep.subr.bf16.mxu0 0
    %6745 = vmatpush1.bf16.msra.mxu0 %v5867
    %6746 = vmatprep.subr.bf16.mxu0 0
    %6747 = vmatpush1.bf16.msra.mxu0 %v5868
    %6748 = vmatprep.subr.bf16.mxu0 0
    %6749 = vmatpush1.bf16.msra.mxu0 %v5869
    %6750 = vmatprep.mubr.bf16.mxu0 %v3922
    %6751 = vmatmul.mubr.bf16.gmra.mrb[0].mxu0 %v3921
    %v6752 = vpop.f32.mrb[0].mxu0
    %v6753 = vadd.f32 %v6713, %v6752
    %v6754 = vpop.f32.mrb[0].mxu0
    %v6755 = vpop.f32.mrb[0].mxu0
    %v6756 = vpop.f32.mrb[0].mxu0
    %6757 = vdwg.mxu0
    %6758 = vmatprep.subr.bf16.mxu0 0
    %6759 = vmatpush1.bf16.msra.mxu0 %v5870
    %6760 = vmatprep.subr.bf16.mxu0 0
    %6761 = vmatpush1.bf16.msra.mxu0 %v5871
    %6762 = vmatprep.subr.bf16.mxu0 0
    %6763 = vmatpush1.bf16.msra.mxu0 %v5872
    %6764 = vmatprep.subr.bf16.mxu0 0
    %6765 = vmatpush1.bf16.msra.mxu0 %v5873
    %6766 = vmatprep.subr.bf16.mxu0 0
    %6767 = vmatpush1.bf16.msra.mxu0 %v5874
    %6768 = vmatprep.subr.bf16.mxu0 0
    %6769 = vmatpush1.bf16.msra.mxu0 %v5875
    %6770 = vmatprep.subr.bf16.mxu0 0
    %6771 = vmatpush1.bf16.msra.mxu0 %v5876
    %6772 = vmatprep.subr.bf16.mxu0 0
    %6773 = vmatpush1.bf16.msra.mxu0 %v5877
    %6774 = vmatprep.subr.bf16.mxu0 0
    %6775 = vmatpush1.bf16.msra.mxu0 %v5878
    %6776 = vmatprep.subr.bf16.mxu0 0
    %6777 = vmatpush1.bf16.msra.mxu0 %v5879
    %6778 = vmatprep.subr.bf16.mxu0 0
    %6779 = vmatpush1.bf16.msra.mxu0 %v5880
    %6780 = vmatprep.subr.bf16.mxu0 0
    %6781 = vmatpush1.bf16.msra.mxu0 %v5881
    %6782 = vmatprep.subr.bf16.mxu0 0
    %6783 = vmatpush1.bf16.msra.mxu0 %v5882
    %6784 = vmatprep.subr.bf16.mxu0 0
    %6785 = vmatpush1.bf16.msra.mxu0 %v5883
    %6786 = vmatprep.subr.bf16.mxu0 0
    %6787 = vmatpush1.bf16.msra.mxu0 %v5884
    %6788 = vmatprep.subr.bf16.mxu0 0
    %6789 = vmatpush1.bf16.msra.mxu0 %v5885
    %6790 = vmatprep.mubr.bf16.mxu0 %v3924
    %6791 = vmatmul.mubr.bf16.gmra.mrb[0].mxu0 %v3923
    %v6792 = vpop.f32.mrb[0].mxu0
    %v6793 = vadd.f32 %v6753, %v6792
    %v6794 = vpop.f32.mrb[0].mxu0
    %v6795 = vpop.f32.mrb[0].mxu0
    %v6796 = vpop.f32.mrb[0].mxu0
    %6797 = vdwg.mxu0
    %6798 = vmatprep.subr.bf16.mxu0 0
    %6799 = vmatpush1.bf16.msra.mxu0 %v5886
    %6800 = vmatprep.subr.bf16.mxu0 0
    %6801 = vmatpush1.bf16.msra.mxu0 %v5887
    %6802 = vmatprep.subr.bf16.mxu0 0
    %6803 = vmatpush1.bf16.msra.mxu0 %v5888
    %6804 = vmatprep.subr.bf16.mxu0 0
    %6805 = vmatpush1.bf16.msra.mxu0 %v5889
    %6806 = vmatprep.subr.bf16.mxu0 0
    %6807 = vmatpush1.bf16.msra.mxu0 %v5890
    %6808 = vmatprep.subr.bf16.mxu0 0
    %6809 = vmatpush1.bf16.msra.mxu0 %v5891
    %6810 = vmatprep.subr.bf16.mxu0 0
    %6811 = vmatpush1.bf16.msra.mxu0 %v5892
    %6812 = vmatprep.subr.bf16.mxu0 0
    %6813 = vmatpush1.bf16.msra.mxu0 %v5893
    %6814 = vmatprep.subr.bf16.mxu0 0
    %6815 = vmatpush1.bf16.msra.mxu0 %v5894
    %6816 = vmatprep.subr.bf16.mxu0 0
    %6817 = vmatpush1.bf16.msra.mxu0 %v5895
    %6818 = vmatprep.subr.bf16.mxu0 0
    %6819 = vmatpush1.bf16.msra.mxu0 %v5896
    %6820 = vmatprep.subr.bf16.mxu0 0
    %6821 = vmatpush1.bf16.msra.mxu0 %v5897
    %6822 = vmatprep.subr.bf16.mxu0 0
    %6823 = vmatpush1.bf16.msra.mxu0 %v5898
    %6824 = vmatprep.subr.bf16.mxu0 0
    %6825 = vmatpush1.bf16.msra.mxu0 %v5899
    %6826 = vmatprep.subr.bf16.mxu0 0
    %6827 = vmatpush1.bf16.msra.mxu0 %v5900
    %6828 = vmatprep.subr.bf16.mxu0 0
    %6829 = vmatpush1.bf16.msra.mxu0 %v5901
    %6830 = vmatprep.mubr.bf16.mxu0 %v3926
    %6831 = vmatmul.mubr.bf16.gmra.mrb[0].mxu0 %v3925
    %v6832 = vpop.f32.mrb[0].mxu0
    %v6833 = vadd.f32 %v6793, %v6832
    %v6834 = vpop.f32.mrb[0].mxu0
    %v6835 = vpop.f32.mrb[0].mxu0
    %v6836 = vpop.f32.mrb[0].mxu0
    %6837 = vdwg.mxu0
    %6838 = vmatprep.subr.bf16.mxu0 0
    %6839 = vmatpush1.bf16.msra.mxu0 %v5902
    %6840 = vmatprep.subr.bf16.mxu0 0
    %6841 = vmatpush1.bf16.msra.mxu0 %v5903
    %6842 = vmatprep.subr.bf16.mxu0 0
    %6843 = vmatpush1.bf16.msra.mxu0 %v5904
    %6844 = vmatprep.subr.bf16.mxu0 0
    %6845 = vmatpush1.bf16.msra.mxu0 %v5905
    %6846 = vmatprep.subr.bf16.mxu0 0
    %6847 = vmatpush1.bf16.msra.mxu0 %v5906
    %6848 = vmatprep.subr.bf16.mxu0 0
    %6849 = vmatpush1.bf16.msra.mxu0 %v5907
    %6850 = vmatprep.subr.bf16.mxu0 0
    %6851 = vmatpush1.bf16.msra.mxu0 %v5908
    %6852 = vmatprep.subr.bf16.mxu0 0
    %6853 = vmatpush1.bf16.msra.mxu0 %v5909
    %6854 = vmatprep.subr.bf16.mxu0 0
    %6855 = vmatpush1.bf16.msra.mxu0 %v5910
    %6856 = vmatprep.subr.bf16.mxu0 0
    %6857 = vmatpush1.bf16.msra.mxu0 %v5911
    %6858 = vmatprep.subr.bf16.mxu0 0
    %6859 = vmatpush1.bf16.msra.mxu0 %v5912
    %6860 = vmatprep.subr.bf16.mxu0 0
    %6861 = vmatpush1.bf16.msra.mxu0 %v5913
    %6862 = vmatprep.subr.bf16.mxu0 0
    %6863 = vmatpush1.bf16.msra.mxu0 %v5914
    %6864 = vmatprep.subr.bf16.mxu0 0
    %6865 = vmatpush1.bf16.msra.mxu0 %v5915
    %6866 = vmatprep.subr.bf16.mxu0 0
    %6867 = vmatpush1.bf16.msra.mxu0 %v5916
    %6868 = vmatprep.subr.bf16.mxu0 0
    %6869 = vmatpush1.bf16.msra.mxu0 %v5917
    %6870 = vmatprep.mubr.bf16.mxu0 %v3928
    %6871 = vmatmul.mubr.bf16.gmra.mrb[0].mxu0 %v3927
    %v6872 = vpop.f32.mrb[0].mxu0
    %v6873 = vadd.f32 %v6833, %v6872
    %v6874 = vpop.f32.mrb[0].mxu0
    %v6875 = vpop.f32.mrb[0].mxu0
    %v6876 = vpop.f32.mrb[0].mxu0
    %6877 = vdwg.mxu0
    %6878 = vmatprep.subr.bf16.mxu0 0
    %6879 = vmatpush1.bf16.msra.mxu0 %v5918
    %6880 = vmatprep.subr.bf16.mxu0 0
    %6881 = vmatpush1.bf16.msra.mxu0 %v5919
    %6882 = vmatprep.subr.bf16.mxu0 0
    %6883 = vmatpush1.bf16.msra.mxu0 %v5920
    %6884 = vmatprep.subr.bf16.mxu0 0
    %6885 = vmatpush1.bf16.msra.mxu0 %v5921
    %6886 = vmatprep.subr.bf16.mxu0 0
    %6887 = vmatpush1.bf16.msra.mxu0 %v5922
    %6888 = vmatprep.subr.bf16.mxu0 0
    %6889 = vmatpush1.bf16.msra.mxu0 %v5923
    %6890 = vmatprep.subr.bf16.mxu0 0
    %6891 = vmatpush1.bf16.msra.mxu0 %v5924
    %6892 = vmatprep.subr.bf16.mxu0 0
    %6893 = vmatpush1.bf16.msra.mxu0 %v5925
    %6894 = vmatprep.subr.bf16.mxu0 0
    %6895 = vmatpush1.bf16.msra.mxu0 %v5926
    %6896 = vmatprep.subr.bf16.mxu0 0
    %6897 = vmatpush1.bf16.msra.mxu0 %v5927
    %6898 = vmatprep.subr.bf16.mxu0 0
    %6899 = vmatpush1.bf16.msra.mxu0 %v5928
    %6900 = vmatprep.subr.bf16.mxu0 0
    %6901 = vmatpush1.bf16.msra.mxu0 %v5929
    %6902 = vmatprep.subr.bf16.mxu0 0
    %6903 = vmatpush1.bf16.msra.mxu0 %v5930
    %6904 = vmatprep.subr.bf16.mxu0 0
    %6905 = vmatpush1.bf16.msra.mxu0 %v5931
    %6906 = vmatprep.subr.bf16.mxu0 0
    %6907 = vmatpush1.bf16.msra.mxu0 %v5932
    %6908 = vmatprep.subr.bf16.mxu0 0
    %6909 = vmatpush1.bf16.msra.mxu0 %v5933
    %6910 = vmatprep.mubr.bf16.mxu0 %v3930
    %6911 = vmatmul.mubr.bf16.gmra.mrb[0].mxu0 %v3929
    %v6912 = vpop.f32.mrb[0].mxu0
    %v6913 = vadd.f32 %v6873, %v6912
    %v6914 = vpop.f32.mrb[0].mxu0
    %v6915 = vpop.f32.mrb[0].mxu0
    %v6916 = vpop.f32.mrb[0].mxu0
    %6917 = vdwg.mxu0
    %6918 = vmatprep.subr.bf16.mxu0 0
    %6919 = vmatpush1.bf16.msra.mxu0 %v5934
    %6920 = vmatprep.subr.bf16.mxu0 0
    %6921 = vmatpush1.bf16.msra.mxu0 %v5935
    %6922 = vmatprep.subr.bf16.mxu0 0
    %6923 = vmatpush1.bf16.msra.mxu0 %v5936
    %6924 = vmatprep.subr.bf16.mxu0 0
    %6925 = vmatpush1.bf16.msra.mxu0 %v5937
    %6926 = vmatprep.subr.bf16.mxu0 0
    %6927 = vmatpush1.bf16.msra.mxu0 %v5938
    %6928 = vmatprep.subr.bf16.mxu0 0
    %6929 = vmatpush1.bf16.msra.mxu0 %v5939
    %6930 = vmatprep.subr.bf16.mxu0 0
    %6931 = vmatpush1.bf16.msra.mxu0 %v5940
    %6932 = vmatprep.subr.bf16.mxu0 0
    %6933 = vmatpush1.bf16.msra.mxu0 %v5941
    %6934 = vmatprep.subr.bf16.mxu0 0
    %6935 = vmatpush1.bf16.msra.mxu0 %v5942
    %6936 = vmatprep.subr.bf16.mxu0 0
    %6937 = vmatpush1.bf16.msra.mxu0 %v5943
    %6938 = vmatprep.subr.bf16.mxu0 0
    %6939 = vmatpush1.bf16.msra.mxu0 %v5944
    %6940 = vmatprep.subr.bf16.mxu0 0
    %6941 = vmatpush1.bf16.msra.mxu0 %v5945
    %6942 = vmatprep.subr.bf16.mxu0 0
    %6943 = vmatpush1.bf16.msra.mxu0 %v5946
    %6944 = vmatprep.subr.bf16.mxu0 0
    %6945 = vmatpush1.bf16.msra.mxu0 %v5947
    %6946 = vmatprep.subr.bf16.mxu0 0
    %6947 = vmatpush1.bf16.msra.mxu0 %v5948
    %6948 = vmatprep.subr.bf16.mxu0 0
    %6949 = vmatpush1.bf16.msra.mxu0 %v5949
    %6950 = vmatprep.mubr.bf16.mxu0 %v3932
    %6951 = vmatmul.mubr.bf16.gmra.mrb[0].mxu0 %v3931
    %v6952 = vpop.f32.mrb[0].mxu0
    %v6953 = vadd.f32 %v6913, %v6952
    %v6954 = vpop.f32.mrb[0].mxu0
    %v6955 = vpop.f32.mrb[0].mxu0
    %v6956 = vpop.f32.mrb[0].mxu0
    %6957 = vdwg.mxu0
    %v6958 = vmax.f32 %v6953, 0.0
    %v6959 = vpack.c.bf16 %v6958, %v6958
    %v6960 = vld [vmem:[#allocation13] sm:$0xf]
    %v6961 = vld [vmem:[#allocation13 + $0x4] sm:$0xf]
    %v6962 = vld [vmem:[#allocation13 + $0x8] sm:$0xf]
    %v6963 = vld [vmem:[#allocation13 + $0xc] sm:$0xf]
    %v6964 = vld [vmem:[#allocation13 + $0x10] sm:$0xf]
    %v6965 = vld [vmem:[#allocation13 + $0x14] sm:$0xf]
    %v6966 = vld [vmem:[#allocation13 + $0x18] sm:$0xf]
    %v6967 = vld [vmem:[#allocation13 + $0x1c] sm:$0xf]
    %v6968 = vld [vmem:[#allocation13 + $0x20] sm:$0xf]
    %v6969 = vld [vmem:[#allocation13 + $0x24] sm:$0xf]
    %v6970 = vld [vmem:[#allocation13 + $0x28] sm:$0xf]
    %v6971 = vld [vmem:[#allocation13 + $0x2c] sm:$0xf]
    %v6972 = vld [vmem:[#allocation13 + $0x30] sm:$0xf]
    %v6973 = vld [vmem:[#allocation13 + $0x34] sm:$0xf]
    %v6974 = vld [vmem:[#allocation13 + $0x38] sm:$0xf]
    %v6975 = vld [vmem:[#allocation13 + $0x3c] sm:$0xf]
    %v6976 = vld [vmem:[#allocation14] sm:$0x1]
    %v6993 = vunpack.c.l.b16 %v6960
    %v6994 = vunpack.c.l.b16 %v6961
    %v6995 = vunpack.c.l.b16 %v6962
    %v6996 = vunpack.c.l.b16 %v6963
    %v6997 = vunpack.c.l.b16 %v6964
    %v6998 = vunpack.c.l.b16 %v6965
    %v6999 = vunpack.c.l.b16 %v6966
    %v7000 = vunpack.c.l.b16 %v6967
    %v7001 = vunpack.c.l.b16 %v6968
    %v7002 = vunpack.c.l.b16 %v6969
    %v7003 = vunpack.c.l.b16 %v6970
    %v7004 = vunpack.c.l.b16 %v6971
    %v7005 = vunpack.c.l.b16 %v6972
    %v7006 = vunpack.c.l.b16 %v6973
    %v7007 = vunpack.c.l.b16 %v6974
    %v7008 = vunpack.c.l.b16 %v6975
    %v7009 = vpack.c.b16 %v6994, %v6993
    %v7010 = vpack.c.b16 %v6996, %v6995
    %v7011 = vpack.c.b16 %v6998, %v6997
    %v7012 = vpack.c.b16 %v7000, %v6999
    %v7013 = vpack.c.b16 %v7002, %v7001
    %v7014 = vpack.c.b16 %v7004, %v7003
    %v7015 = vpack.c.b16 %v7006, %v7005
    %v7016 = vpack.c.b16 %v7008, %v7007
    %7025 = vmatprep.subr.bf16.mxu0 0
    %7026 = vmatpush1.bf16.msra.mxu0 %v7009
    %7027 = vmatprep.subr.bf16.mxu0 0
    %7028 = vmatpush1.bf16.msra.mxu0 %v7010
    %7029 = vmatprep.subr.bf16.mxu0 0
    %7030 = vmatpush1.bf16.msra.mxu0 %v7011
    %7031 = vmatprep.subr.bf16.mxu0 0
    %7032 = vmatpush1.bf16.msra.mxu0 %v7012
    %7033 = vmatprep.subr.bf16.mxu0 0
    %7034 = vmatpush1.bf16.msra.mxu0 %v7013
    %7035 = vmatprep.subr.bf16.mxu0 0
    %7036 = vmatpush1.bf16.msra.mxu0 %v7014
    %7037 = vmatprep.subr.bf16.mxu0 0
    %7038 = vmatpush1.bf16.msra.mxu0 %v7015
    %7039 = vmatprep.subr.bf16.mxu0 0
    %7040 = vmatpush1.bf16.msra.mxu0 %v7016
    %7041 = vmatprep.subr.bf16.mxu0 0
    %7042 = vmatpush1.bf16.msra.mxu0 0
    %7043 = vmatprep.subr.bf16.mxu0 0
    %7044 = vmatpush1.bf16.msra.mxu0 0
    %7045 = vmatprep.subr.bf16.mxu0 0
    %7046 = vmatpush1.bf16.msra.mxu0 0
    %7047 = vmatprep.subr.bf16.mxu0 0
    %7048 = vmatpush1.bf16.msra.mxu0 0
    %7049 = vmatprep.subr.bf16.mxu0 0
    %7050 = vmatpush1.bf16.msra.mxu0 0
    %7051 = vmatprep.subr.bf16.mxu0 0
    %7052 = vmatpush1.bf16.msra.mxu0 0
    %7053 = vmatprep.subr.bf16.mxu0 0
    %7054 = vmatpush1.bf16.msra.mxu0 0
    %7055 = vmatprep.subr.bf16.mxu0 0
    %7056 = vmatpush1.bf16.msra.mxu0 0
    %7057 = vmatprep.mubr.bf16.mxu0 0
    %7058 = vmatmul.mubr.bf16.gmra.mrb[0].mxu0 %v6959
    %v7059 = vpop.f32.mrb[0].mxu0
    %v7060 = vadd.f32 %v6976, %v7059
    %v7061 = vpop.f32.mrb[0].mxu0
    %v7062 = vpop.f32.mrb[0].mxu0
    %v7063 = vpop.f32.mrb[0].mxu0
    %7064 = vdwg.mxu0
    %7065 = vst [vmem:[%s9] sm:$0x1] %v7060
    // Predicated region
    $region70: #{net_forward.1} parent=1 // pred_check
      _
    $region71: #{net_forward.1} parent=1 // pred_check_branch
      %7067 = sbr.rel (0) target = $region73
    $region72: #{net_forward.1} parent=1 // pred_region
      _
    $region73: #{net_forward.1} parent=1 // pred_fallthru
      _
    // Predicated region
    $region74: #{net_forward.1} parent=1 // pred_check
      _
    $region75: #{net_forward.1} parent=1 // pred_check_branch
      %7069 = sbr.rel (0) target = $region77
    $region76: #{net_forward.1} parent=1 // pred_region
      _
    $region77: #{net_forward.1} parent=1 // pred_fallthru
      _
    %7070 = vsyncpa [#allocation4], 1
    %7071 = vsyncpa [#allocation6], 1
    %7072 = vsyncpa [#allocation9], 1
    %7073 = vsyncpa [#allocation12], 1
    %7074 = vsyncpa [#allocation15], 1

</llo_original>
